<compile_context>
chip_gen: v6e
topology: v6e:2x2x1
jax: 0.10.0
libtpu: 0.0.40
codegen_flags: <defaults>
</compile_context>

<pallas_src>
import functools

import jax
import jax.numpy as jnp
from jax import lax
from jax.experimental import pallas as pl
from jax.experimental.pallas import tpu as pltpu


def _round_up(v, m):
    return (v + m - 1) // m * m


def _pick_sub_rows(row_tile, w_out):
    """Largest divisor of row_tile keeping the f32 accumulator <= ~32 vregs."""
    limit = max(1, 32 // max(1, (w_out + 7) // 8))
    for s in range(min(row_tile, limit), 0, -1):
        if row_tile % s == 0:
            return s
    return 1


def _ppeg_kernel(xpad_hbm, w_ref, b_ref, o_ref, strip_buf, in_sem, *, sub_rows):
    # xpad_hbm : (B, Hp+6, Wp, C) zero-padded NHWC feature map, left in HBM.
    # w_ref    : (49, Ct)  folded depthwise weights (7x7 + 5x5 + 3x3 + identity)
    # b_ref    : (1, Ct)   folded bias (b7 + b5 + b3)
    # o_ref    : (1, rt, Wo, Ct) output tile for this grid step
    # strip_buf: (2, rt+6, Wp, Ct) VMEM double buffer for the input halo strip
    # in_sem   : (2,) DMA semaphores
    c = pl.program_id(0)
    b = pl.program_id(1)
    h = pl.program_id(2)
    n_h = pl.num_programs(2)

    _, rt, Wo, ct = o_ref.shape
    c0 = pl.multiple_of(c * ct, ct)

    def strip_copy(h_idx, slot):
        # (rt+6) padded rows starting at padded row h_idx*rt, this channel tile.
        return pltpu.make_async_copy(
            xpad_hbm.at[b, pl.ds(h_idx * rt, rt + 6), :, pl.ds(c0, ct)],
            strip_buf.at[slot],
            in_sem.at[slot],
        )

    slot = h % 2

    # Cold start: the first row-block of each (c, b) fetches its own strip.
    @pl.when(h == 0)
    def _():
        strip_copy(0, 0).start()

    # Wait for this step's strip (issued just above when h == 0, otherwise
    # prefetched by the previous row-block step on this core).
    strip_copy(h, slot).wait()

    # Prefetch the next row-block's strip into the other slot; overlaps with
    # the compute below.  Requires sequential h -> the h grid axis is
    # "arbitrary" (c and b stay "parallel" for megacore).
    @pl.when(h + 1 < n_h)
    def _():
        strip_copy(h + 1, 1 - slot).start()

    # ---- compute: y[r, q] = bias + sum_{kh,kw} w[kh,kw] * xpad[r+kh, q+kw] ----
    # Hoist the 49 per-tap lane vectors and the bias out of the row loop
    # (JAX does not CSE broadcasts; keep them loop-invariant).
    wtaps = [w_ref[i, :].astype(jnp.float32).reshape(1, 1, ct) for i in range(49)]
    bias = b_ref[0, :].astype(jnp.float32).reshape(1, 1, ct)

    def do_rows(s0):
        # Per-tap ref loads: the live set is the (sub_rows, Wo, ct) f32
        # accumulator plus one streamed tap; no full strip is materialized.
        acc = None
        for kh in range(7):
            rows = pl.ds(s0 + kh, sub_rows)
            for kw in range(7):
                tap = strip_buf[slot, rows, kw:kw + Wo, :].astype(jnp.float32)
                term = tap * wtaps[kh * 7 + kw]
                acc = term if acc is None else acc + term
        o_ref[0, pl.ds(s0, sub_rows), :, :] = (acc + bias).astype(o_ref.dtype)

    n_sub = rt // sub_rows
    if n_sub == 1:
        do_rows(0)
    else:
        # fori_loop (not an unrolled Python loop) bounds code size and vreg
        # live ranges at large H / W.
        def body(i, carry):
            do_rows(pl.multiple_of(i * sub_rows, sub_rows))
            return carry

        lax.fori_loop(0, n_sub, body, 0)


def ppeg_forward(x, H, W, params, *, c_tile=128, row_tile=16):
    """x: (B, N, C) with N = 1 + H*W. Returns (B, N, C)."""
    B, N, C = x.shape
    assert N == 1 + H * W

    cls_token = x[:, :1, :]                            # (B, 1, C)
    feat = x[:, 1:, :].reshape(B, H, W, C)             # NHWC, C on lanes

    ct = min(c_tile, C)
    assert C % ct == 0, "channel count must divide the channel tile"
    n_ct = C // ct

    rt = min(row_tile, _round_up(H, 8))                # rows per grid step
    Hp = _round_up(H, rt)
    Wo = _round_up(W, 8)                               # lane/sublane-dense stores
    Wp = _round_up(Wo + 6, 8)                          # padded input width
    n_h = Hp // rt
    sub_rows = _pick_sub_rows(rt, Wo)

    # Zero halo: 3 rows/cols top/left, alignment padding bottom/right.
    # TODO(synk): fold the halo zero-fill into the kernel's DMA path (masked
    # edge strips) to drop this wrapper copy.
    xpad = jnp.pad(feat, ((0, 0), (3, 3 + Hp - H), (3, Wp - W - 3), (0, 0)))

    # Fold 7x7 + centered 5x5 + centered 3x3 + identity into one 49-tap filter.
    w = params["w7"].reshape(7, 7, C)
    w = w.at[1:6, 1:6, :].add(params["w5"].reshape(5, 5, C))
    w = w.at[2:5, 2:5, :].add(params["w3"].reshape(3, 3, C))
    w = w.at[3, 3, :].add(1.0)                         # identity term
    w = w.reshape(49, C).astype(jnp.float32)
    bias = (params["b7"] + params["b5"] + params["b3"])[None, :].astype(jnp.float32)

    # VMEM: 2x input strip + double-buffered output block + weight tiles.
    elt = jnp.dtype(x.dtype).itemsize
    vmem_need = (2 * (rt + 6) * Wp * ct + 2 * rt * Wo * ct) * elt + 4 * 2 * 50 * ct
    vmem_limit = int(min(max(2 * vmem_need, 32 << 20), 60 << 20))  # <= v7x 64 MiB

    kernel = functools.partial(_ppeg_kernel, sub_rows=sub_rows)
    y = pl.pallas_call(
        kernel,
        out_shape=jax.ShapeDtypeStruct((B, Hp, Wo, C), x.dtype),
        grid_spec=pltpu.PrefetchScalarGridSpec(
            num_scalar_prefetch=0,
            # c outermost: weight/bias tiles re-fetched only when c changes.
            # h innermost + sequential: the strip prefetch runs one step ahead.
            grid=(n_ct, B, n_h),
            in_specs=[
                pl.BlockSpec(memory_space=pl.ANY),            # padded input, HBM
                pl.BlockSpec((49, ct), lambda c, b, h: (0, c)),
                pl.BlockSpec((1, ct), lambda c, b, h: (0, c)),
            ],
            out_specs=pl.BlockSpec((1, rt, Wo, ct), lambda c, b, h: (b, h, 0, c)),
            scratch_shapes=[
                pltpu.VMEM((2, rt + 6, Wp, ct), x.dtype),     # strip double buffer
                pltpu.SemaphoreType.DMA((2,)),
            ],
        ),
        compiler_params=pltpu.CompilerParams(
            dimension_semantics=("parallel", "parallel", "arbitrary"),
            vmem_limit_bytes=vmem_limit),
    )(xpad, w, bias)

    y = y[:, :H, :W, :].reshape(B, H * W, C)
    # TODO(synk): write y straight into a (B, N, C) buffer inside the kernel
    # (the +1 cls offset needs element-indexed / manual output DMA) to drop
    # this concatenate pass.
    return jnp.concatenate([cls_token, y], axis=1)


def _reference_forward(x, H, W, params):
    """Pure-JAX reference using lax.conv (NCHW, depthwise) mirroring PyTorch."""
    B, N, C = x.shape
    cls_token = x[:, :1, :]
    feat = x[:, 1:, :].reshape(B, H, W, C).transpose(0, 3, 1, 2)  # NCHW

    def dwconv(inp, w_flat, k, pad, bias):
        # w_flat: (k*k, C) -> PyTorch depthwise layout (C, 1, k, k) = OIHW
        w = w_flat.reshape(k, k, C).transpose(2, 0, 1)[:, None, :, :]
        out = lax.conv_general_dilated(
            inp, w, window_strides=(1, 1), padding=[(pad, pad), (pad, pad)],
            feature_group_count=C,
            dimension_numbers=("NCHW", "OIHW", "NCHW"))
        return out + bias[None, :, None, None]

    y = (dwconv(feat, params["w7"], 7, 3, params["b7"]) + feat
         + dwconv(feat, params["w5"], 5, 2, params["b5"])
         + dwconv(feat, params["w3"], 3, 1, params["b3"]))
    y = y.reshape(B, C, H * W).transpose(0, 2, 1)
    return jnp.concatenate([cls_token, y], axis=1)


def init_params(key, C):
    k7, k5, k3, kb7, kb5, kb3 = jax.random.split(key, 6)
    # depthwise conv weights stored as (k*k, C) with channel last (lane dim)
    w7 = jax.random.normal(k7, (49, C), jnp.float32) * 0.05
    w5 = jax.random.normal(k5, (25, C), jnp.float32) * 0.05
    w3 = jax.random.normal(k3, (9, C), jnp.float32) * 0.05
    b7 = jax.random.normal(kb7, (C,), jnp.float32) * 0.05
    b5 = jax.random.normal(kb5, (C,), jnp.float32) * 0.05
    b3 = jax.random.normal(kb3, (C,), jnp.float32) * 0.05
    return {"w7": w7, "w5": w5, "w3": w3, "b7": b7, "b5": b5, "b3": b3}


if __name__ == "__main__":
    # Small shapes; C=128 keeps lanes dense.  row_tile=8 with H=16 gives two
    # row-blocks per image so the strip double-buffer / prefetch path is
    # exercised (not just the cold-start step).
    B, C, H, W = 2, 128, 16, 16
    N = 1 + H * W

    key = jax.random.PRNGKey(0)
    kx, kp = jax.random.split(key)
    x = jax.random.normal(kx, (B, N, C), jnp.float32)
    params = init_params(kp, C)

    out = ppeg_forward(x, H, W, params, row_tile=8)
    out = jax.block_until_ready(out)

    ref = _reference_forward(x, H, W, params)
    assert out.shape == (B, N, C)
    assert jnp.allclose(out, ref, atol=1e-4, rtol=1e-4), "mismatch vs reference"

    print("KERNEL_OK")
</pallas_src>

<mosaic_0001>
module attributes {stable_mosaic.version = 11 : i64} {
  func.func @_ppeg_kernel(%arg0: i32, %arg1: i32, %arg2: i32, %arg3: memref<2x22x24x128xf32, #tpu.memory_space<any>>, %arg4: memref<49x128xf32, #tpu.memory_space<vmem>>, %arg5: memref<1x128xf32, #tpu.memory_space<vmem>>, %arg6: memref<1x8x16x128xf32, #tpu.memory_space<vmem>>, %arg7: memref<2x14x24x128xf32, #tpu.memory_space<vmem>>, %arg8: memref<2x!tpu.dma_semaphore, #tpu.memory_space<semaphore_mem>>) attributes {dimension_semantics = [#tpu.dimension_semantics<parallel>, #tpu.dimension_semantics<parallel>, #tpu.dimension_semantics<arbitrary>], iteration_bounds = array<i64: 1, 2, 2>, scalar_prefetch = 0 : i64, scratch_operands = 2 : i64, tpu.core_type = #tpu.core_type<tc>, window_params = [{}, {transform_indices = @transform_1, window_bounds = array<i64: 49, 128>}, {transform_indices = @transform_2, window_bounds = array<i64: 1, 128>}, {transform_indices = @transform_3, window_bounds = array<i64: 1, 8, 16, 128>}]} {
    %c128_i32 = arith.constant 128 : i32
    %0 = arith.muli %arg0, %c128_i32 : i32
    %1 = tpu.assume_multiple %0, 128 : i32
    %c2_i32 = arith.constant 2 : i32
    %c0_i32 = arith.constant 0 : i32
    %2 = arith.cmpi eq, %c2_i32, %c0_i32 : i32
    %c1_i32 = arith.constant 1 : i32
    %3 = arith.select %2, %c1_i32, %c2_i32 : i32
    %4 = arith.remsi %arg2, %3 : i32
    %c0_i32_0 = arith.constant 0 : i32
    %5 = arith.cmpi ne, %4, %c0_i32_0 : i32
    %c0_i32_1 = arith.constant 0 : i32
    %6 = arith.cmpi slt, %4, %c0_i32_1 : i32
    %c0_i32_2 = arith.constant 0 : i32
    %7 = arith.cmpi slt, %3, %c0_i32_2 : i32
    %8 = arith.xori %6, %7 : i1
    %9 = arith.andi %8, %5 : i1
    %10 = arith.addi %4, %3 : i32
    %11 = arith.select %9, %10, %4 : i32
    %c0_i32_3 = arith.constant 0 : i32
    %12 = arith.cmpi eq, %arg2, %c0_i32_3 : i32
    %13 = arith.extui %12 : i1 to i32
    %c0_i32_4 = arith.constant 0 : i32
    %14 = arith.cmpi ne, %13, %c0_i32_4 : i32
    scf.if %14 {
      %c0_i32_214 = arith.constant 0 : i32
      %c0_i32_215 = arith.constant 0 : i32
      %c0_i32_216 = arith.constant 0 : i32
      %c0_i32_217 = arith.constant 0 : i32
      %474 = tpu.memref_slice %arg3[%arg1, %c0_i32_216, %c0_i32_217, %1] : memref<2x22x24x128xf32, #tpu.memory_space<any>> -> memref<1x14x24x128xf32, #tpu.memory_space<any>>
      %475 = tpu.memref_squeeze %474 : memref<1x14x24x128xf32, #tpu.memory_space<any>> -> memref<14x24x128xf32, #tpu.memory_space<any>>
      %c0_i32_218 = arith.constant 0 : i32
      %c0_i32_219 = arith.constant 0 : i32
      %c0_i32_220 = arith.constant 0 : i32
      %476 = tpu.memref_slice %arg7[%c0_i32_214, %c0_i32_218, %c0_i32_219, %c0_i32_220] : memref<2x14x24x128xf32, #tpu.memory_space<vmem>> -> memref<1x14x24x128xf32, #tpu.memory_space<vmem>>
      %477 = tpu.memref_squeeze %476 : memref<1x14x24x128xf32, #tpu.memory_space<vmem>> -> memref<14x24x128xf32, #tpu.memory_space<vmem>>
      %478 = tpu.memref_slice %arg8[%c0_i32_215] : memref<2x!tpu.dma_semaphore, #tpu.memory_space<semaphore_mem>> -> memref<1x!tpu.dma_semaphore, #tpu.memory_space<semaphore_mem>>
      %479 = tpu.memref_squeeze %478 : memref<1x!tpu.dma_semaphore, #tpu.memory_space<semaphore_mem>> -> memref<!tpu.dma_semaphore, #tpu.memory_space<semaphore_mem>>
      tpu.enqueue_dma source(%475 : memref<14x24x128xf32, #tpu.memory_space<any>>) target(%477 : memref<14x24x128xf32, #tpu.memory_space<vmem>>) target_semaphore(%479 : memref<!tpu.dma_semaphore, #tpu.memory_space<semaphore_mem>>)
    } else {
    }
    %c8_i32 = arith.constant 8 : i32
    %15 = arith.muli %arg2, %c8_i32 : i32
    %c0_i32_5 = arith.constant 0 : i32
    %16 = tpu.memref_slice %arg3[%arg1, %15, %c0_i32_5, %1] : memref<2x22x24x128xf32, #tpu.memory_space<any>> -> memref<1x14x24x128xf32, #tpu.memory_space<any>>
    %17 = tpu.memref_squeeze %16 : memref<1x14x24x128xf32, #tpu.memory_space<any>> -> memref<14x24x128xf32, #tpu.memory_space<any>>
    %c0_i32_6 = arith.constant 0 : i32
    %c0_i32_7 = arith.constant 0 : i32
    %c0_i32_8 = arith.constant 0 : i32
    %18 = tpu.memref_slice %arg7[%11, %c0_i32_6, %c0_i32_7, %c0_i32_8] : memref<2x14x24x128xf32, #tpu.memory_space<vmem>> -> memref<1x14x24x128xf32, #tpu.memory_space<vmem>>
    %19 = tpu.memref_squeeze %18 : memref<1x14x24x128xf32, #tpu.memory_space<vmem>> -> memref<14x24x128xf32, #tpu.memory_space<vmem>>
    %20 = tpu.memref_slice %arg8[%11] : memref<2x!tpu.dma_semaphore, #tpu.memory_space<semaphore_mem>> -> memref<1x!tpu.dma_semaphore, #tpu.memory_space<semaphore_mem>>
    %21 = tpu.memref_squeeze %20 : memref<1x!tpu.dma_semaphore, #tpu.memory_space<semaphore_mem>> -> memref<!tpu.dma_semaphore, #tpu.memory_space<semaphore_mem>>
    tpu.wait_dma2 semaphore(%21 : memref<!tpu.dma_semaphore, #tpu.memory_space<semaphore_mem>>) src(%17 : memref<14x24x128xf32, #tpu.memory_space<any>>) dst(%19 : memref<14x24x128xf32, #tpu.memory_space<vmem>>)
    %c1_i32_9 = arith.constant 1 : i32
    %22 = arith.addi %arg2, %c1_i32_9 : i32
    %c2_i32_10 = arith.constant 2 : i32
    %23 = arith.cmpi slt, %22, %c2_i32_10 : i32
    %24 = arith.extui %23 : i1 to i32
    %c0_i32_11 = arith.constant 0 : i32
    %25 = arith.cmpi ne, %24, %c0_i32_11 : i32
    scf.if %25 {
      %c1_i32_214 = arith.constant 1 : i32
      %474 = arith.addi %arg2, %c1_i32_214 : i32
      %c1_i32_215 = arith.constant 1 : i32
      %475 = arith.subi %c1_i32_215, %11 : i32
      %c8_i32_216 = arith.constant 8 : i32
      %476 = arith.muli %474, %c8_i32_216 : i32
      %c0_i32_217 = arith.constant 0 : i32
      %477 = tpu.memref_slice %arg3[%arg1, %476, %c0_i32_217, %1] : memref<2x22x24x128xf32, #tpu.memory_space<any>> -> memref<1x14x24x128xf32, #tpu.memory_space<any>>
      %478 = tpu.memref_squeeze %477 : memref<1x14x24x128xf32, #tpu.memory_space<any>> -> memref<14x24x128xf32, #tpu.memory_space<any>>
      %c0_i32_218 = arith.constant 0 : i32
      %c0_i32_219 = arith.constant 0 : i32
      %c0_i32_220 = arith.constant 0 : i32
      %479 = tpu.memref_slice %arg7[%475, %c0_i32_218, %c0_i32_219, %c0_i32_220] : memref<2x14x24x128xf32, #tpu.memory_space<vmem>> -> memref<1x14x24x128xf32, #tpu.memory_space<vmem>>
      %480 = tpu.memref_squeeze %479 : memref<1x14x24x128xf32, #tpu.memory_space<vmem>> -> memref<14x24x128xf32, #tpu.memory_space<vmem>>
      %481 = tpu.memref_slice %arg8[%475] : memref<2x!tpu.dma_semaphore, #tpu.memory_space<semaphore_mem>> -> memref<1x!tpu.dma_semaphore, #tpu.memory_space<semaphore_mem>>
      %482 = tpu.memref_squeeze %481 : memref<1x!tpu.dma_semaphore, #tpu.memory_space<semaphore_mem>> -> memref<!tpu.dma_semaphore, #tpu.memory_space<semaphore_mem>>
      tpu.enqueue_dma source(%478 : memref<14x24x128xf32, #tpu.memory_space<any>>) target(%480 : memref<14x24x128xf32, #tpu.memory_space<vmem>>) target_semaphore(%482 : memref<!tpu.dma_semaphore, #tpu.memory_space<semaphore_mem>>)
    } else {
    }
    %c0 = arith.constant 0 : index
    %c0_12 = arith.constant 0 : index
    %26 = vector.load %arg4[%c0, %c0_12] : memref<49x128xf32, #tpu.memory_space<vmem>>, vector<1x128xf32>
    %27 = vector.shape_cast %26 : vector<1x128xf32> to vector<128xf32>
    %28 = vector.shape_cast %27 : vector<128xf32> to vector<1x1x128xf32>
    %c1 = arith.constant 1 : index
    %c0_13 = arith.constant 0 : index
    %29 = vector.load %arg4[%c1, %c0_13] : memref<49x128xf32, #tpu.memory_space<vmem>>, vector<1x128xf32>
    %30 = vector.shape_cast %29 : vector<1x128xf32> to vector<128xf32>
    %31 = vector.shape_cast %30 : vector<128xf32> to vector<1x1x128xf32>
    %c2 = arith.constant 2 : index
    %c0_14 = arith.constant 0 : index
    %32 = vector.load %arg4[%c2, %c0_14] : memref<49x128xf32, #tpu.memory_space<vmem>>, vector<1x128xf32>
    %33 = vector.shape_cast %32 : vector<1x128xf32> to vector<128xf32>
    %34 = vector.shape_cast %33 : vector<128xf32> to vector<1x1x128xf32>
    %c3 = arith.constant 3 : index
    %c0_15 = arith.constant 0 : index
    %35 = vector.load %arg4[%c3, %c0_15] : memref<49x128xf32, #tpu.memory_space<vmem>>, vector<1x128xf32>
    %36 = vector.shape_cast %35 : vector<1x128xf32> to vector<128xf32>
    %37 = vector.shape_cast %36 : vector<128xf32> to vector<1x1x128xf32>
    %c4 = arith.constant 4 : index
    %c0_16 = arith.constant 0 : index
    %38 = vector.load %arg4[%c4, %c0_16] : memref<49x128xf32, #tpu.memory_space<vmem>>, vector<1x128xf32>
    %39 = vector.shape_cast %38 : vector<1x128xf32> to vector<128xf32>
    %40 = vector.shape_cast %39 : vector<128xf32> to vector<1x1x128xf32>
    %c5 = arith.constant 5 : index
    %c0_17 = arith.constant 0 : index
    %41 = vector.load %arg4[%c5, %c0_17] : memref<49x128xf32, #tpu.memory_space<vmem>>, vector<1x128xf32>
    %42 = vector.shape_cast %41 : vector<1x128xf32> to vector<128xf32>
    %43 = vector.shape_cast %42 : vector<128xf32> to vector<1x1x128xf32>
    %c6 = arith.constant 6 : index
    %c0_18 = arith.constant 0 : index
    %44 = vector.load %arg4[%c6, %c0_18] : memref<49x128xf32, #tpu.memory_space<vmem>>, vector<1x128xf32>
    %45 = vector.shape_cast %44 : vector<1x128xf32> to vector<128xf32>
    %46 = vector.shape_cast %45 : vector<128xf32> to vector<1x1x128xf32>
    %c7 = arith.constant 7 : index
    %c0_19 = arith.constant 0 : index
    %47 = vector.load %arg4[%c7, %c0_19] : memref<49x128xf32, #tpu.memory_space<vmem>>, vector<1x128xf32>
    %48 = vector.shape_cast %47 : vector<1x128xf32> to vector<128xf32>
    %49 = vector.shape_cast %48 : vector<128xf32> to vector<1x1x128xf32>
    %c8 = arith.constant 8 : index
    %c0_20 = arith.constant 0 : index
    %50 = vector.load %arg4[%c8, %c0_20] : memref<49x128xf32, #tpu.memory_space<vmem>>, vector<1x128xf32>
    %51 = vector.shape_cast %50 : vector<1x128xf32> to vector<128xf32>
    %52 = vector.shape_cast %51 : vector<128xf32> to vector<1x1x128xf32>
    %c9 = arith.constant 9 : index
    %c0_21 = arith.constant 0 : index
    %53 = vector.load %arg4[%c9, %c0_21] : memref<49x128xf32, #tpu.memory_space<vmem>>, vector<1x128xf32>
    %54 = vector.shape_cast %53 : vector<1x128xf32> to vector<128xf32>
    %55 = vector.shape_cast %54 : vector<128xf32> to vector<1x1x128xf32>
    %c10 = arith.constant 10 : index
    %c0_22 = arith.constant 0 : index
    %56 = vector.load %arg4[%c10, %c0_22] : memref<49x128xf32, #tpu.memory_space<vmem>>, vector<1x128xf32>
    %57 = vector.shape_cast %56 : vector<1x128xf32> to vector<128xf32>
    %58 = vector.shape_cast %57 : vector<128xf32> to vector<1x1x128xf32>
    %c11 = arith.constant 11 : index
    %c0_23 = arith.constant 0 : index
    %59 = vector.load %arg4[%c11, %c0_23] : memref<49x128xf32, #tpu.memory_space<vmem>>, vector<1x128xf32>
    %60 = vector.shape_cast %59 : vector<1x128xf32> to vector<128xf32>
    %61 = vector.shape_cast %60 : vector<128xf32> to vector<1x1x128xf32>
    %c12 = arith.constant 12 : index
    %c0_24 = arith.constant 0 : index
    %62 = vector.load %arg4[%c12, %c0_24] : memref<49x128xf32, #tpu.memory_space<vmem>>, vector<1x128xf32>
    %63 = vector.shape_cast %62 : vector<1x128xf32> to vector<128xf32>
    %64 = vector.shape_cast %63 : vector<128xf32> to vector<1x1x128xf32>
    %c13 = arith.constant 13 : index
    %c0_25 = arith.constant 0 : index
    %65 = vector.load %arg4[%c13, %c0_25] : memref<49x128xf32, #tpu.memory_space<vmem>>, vector<1x128xf32>
    %66 = vector.shape_cast %65 : vector<1x128xf32> to vector<128xf32>
    %67 = vector.shape_cast %66 : vector<128xf32> to vector<1x1x128xf32>
    %c14 = arith.constant 14 : index
    %c0_26 = arith.constant 0 : index
    %68 = vector.load %arg4[%c14, %c0_26] : memref<49x128xf32, #tpu.memory_space<vmem>>, vector<1x128xf32>
    %69 = vector.shape_cast %68 : vector<1x128xf32> to vector<128xf32>
    %70 = vector.shape_cast %69 : vector<128xf32> to vector<1x1x128xf32>
    %c15 = arith.constant 15 : index
    %c0_27 = arith.constant 0 : index
    %71 = vector.load %arg4[%c15, %c0_27] : memref<49x128xf32, #tpu.memory_space<vmem>>, vector<1x128xf32>
    %72 = vector.shape_cast %71 : vector<1x128xf32> to vector<128xf32>
    %73 = vector.shape_cast %72 : vector<128xf32> to vector<1x1x128xf32>
    %c16 = arith.constant 16 : index
    %c0_28 = arith.constant 0 : index
    %74 = vector.load %arg4[%c16, %c0_28] : memref<49x128xf32, #tpu.memory_space<vmem>>, vector<1x128xf32>
    %75 = vector.shape_cast %74 : vector<1x128xf32> to vector<128xf32>
    %76 = vector.shape_cast %75 : vector<128xf32> to vector<1x1x128xf32>
    %c17 = arith.constant 17 : index
    %c0_29 = arith.constant 0 : index
    %77 = vector.load %arg4[%c17, %c0_29] : memref<49x128xf32, #tpu.memory_space<vmem>>, vector<1x128xf32>
    %78 = vector.shape_cast %77 : vector<1x128xf32> to vector<128xf32>
    %79 = vector.shape_cast %78 : vector<128xf32> to vector<1x1x128xf32>
    %c18 = arith.constant 18 : index
    %c0_30 = arith.constant 0 : index
    %80 = vector.load %arg4[%c18, %c0_30] : memref<49x128xf32, #tpu.memory_space<vmem>>, vector<1x128xf32>
    %81 = vector.shape_cast %80 : vector<1x128xf32> to vector<128xf32>
    %82 = vector.shape_cast %81 : vector<128xf32> to vector<1x1x128xf32>
    %c19 = arith.constant 19 : index
    %c0_31 = arith.constant 0 : index
    %83 = vector.load %arg4[%c19, %c0_31] : memref<49x128xf32, #tpu.memory_space<vmem>>, vector<1x128xf32>
    %84 = vector.shape_cast %83 : vector<1x128xf32> to vector<128xf32>
    %85 = vector.shape_cast %84 : vector<128xf32> to vector<1x1x128xf32>
    %c20 = arith.constant 20 : index
    %c0_32 = arith.constant 0 : index
    %86 = vector.load %arg4[%c20, %c0_32] : memref<49x128xf32, #tpu.memory_space<vmem>>, vector<1x128xf32>
    %87 = vector.shape_cast %86 : vector<1x128xf32> to vector<128xf32>
    %88 = vector.shape_cast %87 : vector<128xf32> to vector<1x1x128xf32>
    %c21 = arith.constant 21 : index
    %c0_33 = arith.constant 0 : index
    %89 = vector.load %arg4[%c21, %c0_33] : memref<49x128xf32, #tpu.memory_space<vmem>>, vector<1x128xf32>
    %90 = vector.shape_cast %89 : vector<1x128xf32> to vector<128xf32>
    %91 = vector.shape_cast %90 : vector<128xf32> to vector<1x1x128xf32>
    %c22 = arith.constant 22 : index
    %c0_34 = arith.constant 0 : index
    %92 = vector.load %arg4[%c22, %c0_34] : memref<49x128xf32, #tpu.memory_space<vmem>>, vector<1x128xf32>
    %93 = vector.shape_cast %92 : vector<1x128xf32> to vector<128xf32>
    %94 = vector.shape_cast %93 : vector<128xf32> to vector<1x1x128xf32>
    %c23 = arith.constant 23 : index
    %c0_35 = arith.constant 0 : index
    %95 = vector.load %arg4[%c23, %c0_35] : memref<49x128xf32, #tpu.memory_space<vmem>>, vector<1x128xf32>
    %96 = vector.shape_cast %95 : vector<1x128xf32> to vector<128xf32>
    %97 = vector.shape_cast %96 : vector<128xf32> to vector<1x1x128xf32>
    %c24 = arith.constant 24 : index
    %c0_36 = arith.constant 0 : index
    %98 = vector.load %arg4[%c24, %c0_36] : memref<49x128xf32, #tpu.memory_space<vmem>>, vector<1x128xf32>
    %99 = vector.shape_cast %98 : vector<1x128xf32> to vector<128xf32>
    %100 = vector.shape_cast %99 : vector<128xf32> to vector<1x1x128xf32>
    %c25 = arith.constant 25 : index
    %c0_37 = arith.constant 0 : index
    %101 = vector.load %arg4[%c25, %c0_37] : memref<49x128xf32, #tpu.memory_space<vmem>>, vector<1x128xf32>
    %102 = vector.shape_cast %101 : vector<1x128xf32> to vector<128xf32>
    %103 = vector.shape_cast %102 : vector<128xf32> to vector<1x1x128xf32>
    %c26 = arith.constant 26 : index
    %c0_38 = arith.constant 0 : index
    %104 = vector.load %arg4[%c26, %c0_38] : memref<49x128xf32, #tpu.memory_space<vmem>>, vector<1x128xf32>
    %105 = vector.shape_cast %104 : vector<1x128xf32> to vector<128xf32>
    %106 = vector.shape_cast %105 : vector<128xf32> to vector<1x1x128xf32>
    %c27 = arith.constant 27 : index
    %c0_39 = arith.constant 0 : index
    %107 = vector.load %arg4[%c27, %c0_39] : memref<49x128xf32, #tpu.memory_space<vmem>>, vector<1x128xf32>
    %108 = vector.shape_cast %107 : vector<1x128xf32> to vector<128xf32>
    %109 = vector.shape_cast %108 : vector<128xf32> to vector<1x1x128xf32>
    %c28 = arith.constant 28 : index
    %c0_40 = arith.constant 0 : index
    %110 = vector.load %arg4[%c28, %c0_40] : memref<49x128xf32, #tpu.memory_space<vmem>>, vector<1x128xf32>
    %111 = vector.shape_cast %110 : vector<1x128xf32> to vector<128xf32>
    %112 = vector.shape_cast %111 : vector<128xf32> to vector<1x1x128xf32>
    %c29 = arith.constant 29 : index
    %c0_41 = arith.constant 0 : index
    %113 = vector.load %arg4[%c29, %c0_41] : memref<49x128xf32, #tpu.memory_space<vmem>>, vector<1x128xf32>
    %114 = vector.shape_cast %113 : vector<1x128xf32> to vector<128xf32>
    %115 = vector.shape_cast %114 : vector<128xf32> to vector<1x1x128xf32>
    %c30 = arith.constant 30 : index
    %c0_42 = arith.constant 0 : index
    %116 = vector.load %arg4[%c30, %c0_42] : memref<49x128xf32, #tpu.memory_space<vmem>>, vector<1x128xf32>
    %117 = vector.shape_cast %116 : vector<1x128xf32> to vector<128xf32>
    %118 = vector.shape_cast %117 : vector<128xf32> to vector<1x1x128xf32>
    %c31 = arith.constant 31 : index
    %c0_43 = arith.constant 0 : index
    %119 = vector.load %arg4[%c31, %c0_43] : memref<49x128xf32, #tpu.memory_space<vmem>>, vector<1x128xf32>
    %120 = vector.shape_cast %119 : vector<1x128xf32> to vector<128xf32>
    %121 = vector.shape_cast %120 : vector<128xf32> to vector<1x1x128xf32>
    %c32 = arith.constant 32 : index
    %c0_44 = arith.constant 0 : index
    %122 = vector.load %arg4[%c32, %c0_44] : memref<49x128xf32, #tpu.memory_space<vmem>>, vector<1x128xf32>
    %123 = vector.shape_cast %122 : vector<1x128xf32> to vector<128xf32>
    %124 = vector.shape_cast %123 : vector<128xf32> to vector<1x1x128xf32>
    %c33 = arith.constant 33 : index
    %c0_45 = arith.constant 0 : index
    %125 = vector.load %arg4[%c33, %c0_45] : memref<49x128xf32, #tpu.memory_space<vmem>>, vector<1x128xf32>
    %126 = vector.shape_cast %125 : vector<1x128xf32> to vector<128xf32>
    %127 = vector.shape_cast %126 : vector<128xf32> to vector<1x1x128xf32>
    %c34 = arith.constant 34 : index
    %c0_46 = arith.constant 0 : index
    %128 = vector.load %arg4[%c34, %c0_46] : memref<49x128xf32, #tpu.memory_space<vmem>>, vector<1x128xf32>
    %129 = vector.shape_cast %128 : vector<1x128xf32> to vector<128xf32>
    %130 = vector.shape_cast %129 : vector<128xf32> to vector<1x1x128xf32>
    %c35 = arith.constant 35 : index
    %c0_47 = arith.constant 0 : index
    %131 = vector.load %arg4[%c35, %c0_47] : memref<49x128xf32, #tpu.memory_space<vmem>>, vector<1x128xf32>
    %132 = vector.shape_cast %131 : vector<1x128xf32> to vector<128xf32>
    %133 = vector.shape_cast %132 : vector<128xf32> to vector<1x1x128xf32>
    %c36 = arith.constant 36 : index
    %c0_48 = arith.constant 0 : index
    %134 = vector.load %arg4[%c36, %c0_48] : memref<49x128xf32, #tpu.memory_space<vmem>>, vector<1x128xf32>
    %135 = vector.shape_cast %134 : vector<1x128xf32> to vector<128xf32>
    %136 = vector.shape_cast %135 : vector<128xf32> to vector<1x1x128xf32>
    %c37 = arith.constant 37 : index
    %c0_49 = arith.constant 0 : index
    %137 = vector.load %arg4[%c37, %c0_49] : memref<49x128xf32, #tpu.memory_space<vmem>>, vector<1x128xf32>
    %138 = vector.shape_cast %137 : vector<1x128xf32> to vector<128xf32>
    %139 = vector.shape_cast %138 : vector<128xf32> to vector<1x1x128xf32>
    %c38 = arith.constant 38 : index
    %c0_50 = arith.constant 0 : index
    %140 = vector.load %arg4[%c38, %c0_50] : memref<49x128xf32, #tpu.memory_space<vmem>>, vector<1x128xf32>
    %141 = vector.shape_cast %140 : vector<1x128xf32> to vector<128xf32>
    %142 = vector.shape_cast %141 : vector<128xf32> to vector<1x1x128xf32>
    %c39 = arith.constant 39 : index
    %c0_51 = arith.constant 0 : index
    %143 = vector.load %arg4[%c39, %c0_51] : memref<49x128xf32, #tpu.memory_space<vmem>>, vector<1x128xf32>
    %144 = vector.shape_cast %143 : vector<1x128xf32> to vector<128xf32>
    %145 = vector.shape_cast %144 : vector<128xf32> to vector<1x1x128xf32>
    %c40 = arith.constant 40 : index
    %c0_52 = arith.constant 0 : index
    %146 = vector.load %arg4[%c40, %c0_52] : memref<49x128xf32, #tpu.memory_space<vmem>>, vector<1x128xf32>
    %147 = vector.shape_cast %146 : vector<1x128xf32> to vector<128xf32>
    %148 = vector.shape_cast %147 : vector<128xf32> to vector<1x1x128xf32>
    %c41 = arith.constant 41 : index
    %c0_53 = arith.constant 0 : index
    %149 = vector.load %arg4[%c41, %c0_53] : memref<49x128xf32, #tpu.memory_space<vmem>>, vector<1x128xf32>
    %150 = vector.shape_cast %149 : vector<1x128xf32> to vector<128xf32>
    %151 = vector.shape_cast %150 : vector<128xf32> to vector<1x1x128xf32>
    %c42 = arith.constant 42 : index
    %c0_54 = arith.constant 0 : index
    %152 = vector.load %arg4[%c42, %c0_54] : memref<49x128xf32, #tpu.memory_space<vmem>>, vector<1x128xf32>
    %153 = vector.shape_cast %152 : vector<1x128xf32> to vector<128xf32>
    %154 = vector.shape_cast %153 : vector<128xf32> to vector<1x1x128xf32>
    %c43 = arith.constant 43 : index
    %c0_55 = arith.constant 0 : index
    %155 = vector.load %arg4[%c43, %c0_55] : memref<49x128xf32, #tpu.memory_space<vmem>>, vector<1x128xf32>
    %156 = vector.shape_cast %155 : vector<1x128xf32> to vector<128xf32>
    %157 = vector.shape_cast %156 : vector<128xf32> to vector<1x1x128xf32>
    %c44 = arith.constant 44 : index
    %c0_56 = arith.constant 0 : index
    %158 = vector.load %arg4[%c44, %c0_56] : memref<49x128xf32, #tpu.memory_space<vmem>>, vector<1x128xf32>
    %159 = vector.shape_cast %158 : vector<1x128xf32> to vector<128xf32>
    %160 = vector.shape_cast %159 : vector<128xf32> to vector<1x1x128xf32>
    %c45 = arith.constant 45 : index
    %c0_57 = arith.constant 0 : index
    %161 = vector.load %arg4[%c45, %c0_57] : memref<49x128xf32, #tpu.memory_space<vmem>>, vector<1x128xf32>
    %162 = vector.shape_cast %161 : vector<1x128xf32> to vector<128xf32>
    %163 = vector.shape_cast %162 : vector<128xf32> to vector<1x1x128xf32>
    %c46 = arith.constant 46 : index
    %c0_58 = arith.constant 0 : index
    %164 = vector.load %arg4[%c46, %c0_58] : memref<49x128xf32, #tpu.memory_space<vmem>>, vector<1x128xf32>
    %165 = vector.shape_cast %164 : vector<1x128xf32> to vector<128xf32>
    %166 = vector.shape_cast %165 : vector<128xf32> to vector<1x1x128xf32>
    %c47 = arith.constant 47 : index
    %c0_59 = arith.constant 0 : index
    %167 = vector.load %arg4[%c47, %c0_59] : memref<49x128xf32, #tpu.memory_space<vmem>>, vector<1x128xf32>
    %168 = vector.shape_cast %167 : vector<1x128xf32> to vector<128xf32>
    %169 = vector.shape_cast %168 : vector<128xf32> to vector<1x1x128xf32>
    %c48 = arith.constant 48 : index
    %c0_60 = arith.constant 0 : index
    %170 = vector.load %arg4[%c48, %c0_60] : memref<49x128xf32, #tpu.memory_space<vmem>>, vector<1x128xf32>
    %171 = vector.shape_cast %170 : vector<1x128xf32> to vector<128xf32>
    %172 = vector.shape_cast %171 : vector<128xf32> to vector<1x1x128xf32>
    %c0_61 = arith.constant 0 : index
    %c0_62 = arith.constant 0 : index
    %173 = vector.load %arg5[%c0_61, %c0_62] : memref<1x128xf32, #tpu.memory_space<vmem>>, vector<1x128xf32>
    %174 = vector.shape_cast %173 : vector<1x128xf32> to vector<128xf32>
    %175 = vector.shape_cast %174 : vector<128xf32> to vector<1x1x128xf32>
    %176 = arith.index_cast %11 : i32 to index
    %c0_63 = arith.constant 0 : index
    %c0_64 = arith.constant 0 : index
    %c0_65 = arith.constant 0 : index
    %177 = vector.load %arg7[%176, %c0_63, %c0_64, %c0_65] : memref<2x14x24x128xf32, #tpu.memory_space<vmem>>, vector<1x8x16x128xf32>
    %178 = vector.shape_cast %177 : vector<1x8x16x128xf32> to vector<8x16x128xf32>
    %179 = vector.broadcast %28 : vector<1x1x128xf32> to vector<8x16x128xf32>
    %180 = arith.mulf %178, %179 : vector<8x16x128xf32>
    %181 = arith.index_cast %11 : i32 to index
    %c0_66 = arith.constant 0 : index
    %c1_67 = arith.constant 1 : index
    %c0_68 = arith.constant 0 : index
    %182 = vector.load %arg7[%181, %c0_66, %c1_67, %c0_68] : memref<2x14x24x128xf32, #tpu.memory_space<vmem>>, vector<1x8x16x128xf32>
    %183 = vector.shape_cast %182 : vector<1x8x16x128xf32> to vector<8x16x128xf32>
    %184 = vector.broadcast %31 : vector<1x1x128xf32> to vector<8x16x128xf32>
    %185 = arith.mulf %183, %184 : vector<8x16x128xf32>
    %186 = arith.addf %180, %185 : vector<8x16x128xf32>
    %187 = arith.index_cast %11 : i32 to index
    %c0_69 = arith.constant 0 : index
    %c2_70 = arith.constant 2 : index
    %c0_71 = arith.constant 0 : index
    %188 = vector.load %arg7[%187, %c0_69, %c2_70, %c0_71] : memref<2x14x24x128xf32, #tpu.memory_space<vmem>>, vector<1x8x16x128xf32>
    %189 = vector.shape_cast %188 : vector<1x8x16x128xf32> to vector<8x16x128xf32>
    %190 = vector.broadcast %34 : vector<1x1x128xf32> to vector<8x16x128xf32>
    %191 = arith.mulf %189, %190 : vector<8x16x128xf32>
    %192 = arith.addf %186, %191 : vector<8x16x128xf32>
    %193 = arith.index_cast %11 : i32 to index
    %c0_72 = arith.constant 0 : index
    %c3_73 = arith.constant 3 : index
    %c0_74 = arith.constant 0 : index
    %194 = vector.load %arg7[%193, %c0_72, %c3_73, %c0_74] : memref<2x14x24x128xf32, #tpu.memory_space<vmem>>, vector<1x8x16x128xf32>
    %195 = vector.shape_cast %194 : vector<1x8x16x128xf32> to vector<8x16x128xf32>
    %196 = vector.broadcast %37 : vector<1x1x128xf32> to vector<8x16x128xf32>
    %197 = arith.mulf %195, %196 : vector<8x16x128xf32>
    %198 = arith.addf %192, %197 : vector<8x16x128xf32>
    %199 = arith.index_cast %11 : i32 to index
    %c0_75 = arith.constant 0 : index
    %c4_76 = arith.constant 4 : index
    %c0_77 = arith.constant 0 : index
    %200 = vector.load %arg7[%199, %c0_75, %c4_76, %c0_77] : memref<2x14x24x128xf32, #tpu.memory_space<vmem>>, vector<1x8x16x128xf32>
    %201 = vector.shape_cast %200 : vector<1x8x16x128xf32> to vector<8x16x128xf32>
    %202 = vector.broadcast %40 : vector<1x1x128xf32> to vector<8x16x128xf32>
    %203 = arith.mulf %201, %202 : vector<8x16x128xf32>
    %204 = arith.addf %198, %203 : vector<8x16x128xf32>
    %205 = arith.index_cast %11 : i32 to index
    %c0_78 = arith.constant 0 : index
    %c5_79 = arith.constant 5 : index
    %c0_80 = arith.constant 0 : index
    %206 = vector.load %arg7[%205, %c0_78, %c5_79, %c0_80] : memref<2x14x24x128xf32, #tpu.memory_space<vmem>>, vector<1x8x16x128xf32>
    %207 = vector.shape_cast %206 : vector<1x8x16x128xf32> to vector<8x16x128xf32>
    %208 = vector.broadcast %43 : vector<1x1x128xf32> to vector<8x16x128xf32>
    %209 = arith.mulf %207, %208 : vector<8x16x128xf32>
    %210 = arith.addf %204, %209 : vector<8x16x128xf32>
    %211 = arith.index_cast %11 : i32 to index
    %c0_81 = arith.constant 0 : index
    %c6_82 = arith.constant 6 : index
    %c0_83 = arith.constant 0 : index
    %212 = vector.load %arg7[%211, %c0_81, %c6_82, %c0_83] : memref<2x14x24x128xf32, #tpu.memory_space<vmem>>, vector<1x8x16x128xf32>
    %213 = vector.shape_cast %212 : vector<1x8x16x128xf32> to vector<8x16x128xf32>
    %214 = vector.broadcast %46 : vector<1x1x128xf32> to vector<8x16x128xf32>
    %215 = arith.mulf %213, %214 : vector<8x16x128xf32>
    %216 = arith.addf %210, %215 : vector<8x16x128xf32>
    %217 = arith.index_cast %11 : i32 to index
    %c1_84 = arith.constant 1 : index
    %c0_85 = arith.constant 0 : index
    %c0_86 = arith.constant 0 : index
    %218 = vector.load %arg7[%217, %c1_84, %c0_85, %c0_86] : memref<2x14x24x128xf32, #tpu.memory_space<vmem>>, vector<1x8x16x128xf32>
    %219 = vector.shape_cast %218 : vector<1x8x16x128xf32> to vector<8x16x128xf32>
    %220 = vector.broadcast %49 : vector<1x1x128xf32> to vector<8x16x128xf32>
    %221 = arith.mulf %219, %220 : vector<8x16x128xf32>
    %222 = arith.addf %216, %221 : vector<8x16x128xf32>
    %223 = arith.index_cast %11 : i32 to index
    %c1_87 = arith.constant 1 : index
    %c1_88 = arith.constant 1 : index
    %c0_89 = arith.constant 0 : index
    %224 = vector.load %arg7[%223, %c1_87, %c1_88, %c0_89] : memref<2x14x24x128xf32, #tpu.memory_space<vmem>>, vector<1x8x16x128xf32>
    %225 = vector.shape_cast %224 : vector<1x8x16x128xf32> to vector<8x16x128xf32>
    %226 = vector.broadcast %52 : vector<1x1x128xf32> to vector<8x16x128xf32>
    %227 = arith.mulf %225, %226 : vector<8x16x128xf32>
    %228 = arith.addf %222, %227 : vector<8x16x128xf32>
    %229 = arith.index_cast %11 : i32 to index
    %c1_90 = arith.constant 1 : index
    %c2_91 = arith.constant 2 : index
    %c0_92 = arith.constant 0 : index
    %230 = vector.load %arg7[%229, %c1_90, %c2_91, %c0_92] : memref<2x14x24x128xf32, #tpu.memory_space<vmem>>, vector<1x8x16x128xf32>
    %231 = vector.shape_cast %230 : vector<1x8x16x128xf32> to vector<8x16x128xf32>
    %232 = vector.broadcast %55 : vector<1x1x128xf32> to vector<8x16x128xf32>
    %233 = arith.mulf %231, %232 : vector<8x16x128xf32>
    %234 = arith.addf %228, %233 : vector<8x16x128xf32>
    %235 = arith.index_cast %11 : i32 to index
    %c1_93 = arith.constant 1 : index
    %c3_94 = arith.constant 3 : index
    %c0_95 = arith.constant 0 : index
    %236 = vector.load %arg7[%235, %c1_93, %c3_94, %c0_95] : memref<2x14x24x128xf32, #tpu.memory_space<vmem>>, vector<1x8x16x128xf32>
    %237 = vector.shape_cast %236 : vector<1x8x16x128xf32> to vector<8x16x128xf32>
    %238 = vector.broadcast %58 : vector<1x1x128xf32> to vector<8x16x128xf32>
    %239 = arith.mulf %237, %238 : vector<8x16x128xf32>
    %240 = arith.addf %234, %239 : vector<8x16x128xf32>
    %241 = arith.index_cast %11 : i32 to index
    %c1_96 = arith.constant 1 : index
    %c4_97 = arith.constant 4 : index
    %c0_98 = arith.constant 0 : index
    %242 = vector.load %arg7[%241, %c1_96, %c4_97, %c0_98] : memref<2x14x24x128xf32, #tpu.memory_space<vmem>>, vector<1x8x16x128xf32>
    %243 = vector.shape_cast %242 : vector<1x8x16x128xf32> to vector<8x16x128xf32>
    %244 = vector.broadcast %61 : vector<1x1x128xf32> to vector<8x16x128xf32>
    %245 = arith.mulf %243, %244 : vector<8x16x128xf32>
    %246 = arith.addf %240, %245 : vector<8x16x128xf32>
    %247 = arith.index_cast %11 : i32 to index
    %c1_99 = arith.constant 1 : index
    %c5_100 = arith.constant 5 : index
    %c0_101 = arith.constant 0 : index
    %248 = vector.load %arg7[%247, %c1_99, %c5_100, %c0_101] : memref<2x14x24x128xf32, #tpu.memory_space<vmem>>, vector<1x8x16x128xf32>
    %249 = vector.shape_cast %248 : vector<1x8x16x128xf32> to vector<8x16x128xf32>
    %250 = vector.broadcast %64 : vector<1x1x128xf32> to vector<8x16x128xf32>
    %251 = arith.mulf %249, %250 : vector<8x16x128xf32>
    %252 = arith.addf %246, %251 : vector<8x16x128xf32>
    %253 = arith.index_cast %11 : i32 to index
    %c1_102 = arith.constant 1 : index
    %c6_103 = arith.constant 6 : index
    %c0_104 = arith.constant 0 : index
    %254 = vector.load %arg7[%253, %c1_102, %c6_103, %c0_104] : memref<2x14x24x128xf32, #tpu.memory_space<vmem>>, vector<1x8x16x128xf32>
    %255 = vector.shape_cast %254 : vector<1x8x16x128xf32> to vector<8x16x128xf32>
    %256 = vector.broadcast %67 : vector<1x1x128xf32> to vector<8x16x128xf32>
    %257 = arith.mulf %255, %256 : vector<8x16x128xf32>
    %258 = arith.addf %252, %257 : vector<8x16x128xf32>
    %259 = arith.index_cast %11 : i32 to index
    %c2_105 = arith.constant 2 : index
    %c0_106 = arith.constant 0 : index
    %c0_107 = arith.constant 0 : index
    %260 = vector.load %arg7[%259, %c2_105, %c0_106, %c0_107] : memref<2x14x24x128xf32, #tpu.memory_space<vmem>>, vector<1x8x16x128xf32>
    %261 = vector.shape_cast %260 : vector<1x8x16x128xf32> to vector<8x16x128xf32>
    %262 = vector.broadcast %70 : vector<1x1x128xf32> to vector<8x16x128xf32>
    %263 = arith.mulf %261, %262 : vector<8x16x128xf32>
    %264 = arith.addf %258, %263 : vector<8x16x128xf32>
    %265 = arith.index_cast %11 : i32 to index
    %c2_108 = arith.constant 2 : index
    %c1_109 = arith.constant 1 : index
    %c0_110 = arith.constant 0 : index
    %266 = vector.load %arg7[%265, %c2_108, %c1_109, %c0_110] : memref<2x14x24x128xf32, #tpu.memory_space<vmem>>, vector<1x8x16x128xf32>
    %267 = vector.shape_cast %266 : vector<1x8x16x128xf32> to vector<8x16x128xf32>
    %268 = vector.broadcast %73 : vector<1x1x128xf32> to vector<8x16x128xf32>
    %269 = arith.mulf %267, %268 : vector<8x16x128xf32>
    %270 = arith.addf %264, %269 : vector<8x16x128xf32>
    %271 = arith.index_cast %11 : i32 to index
    %c2_111 = arith.constant 2 : index
    %c2_112 = arith.constant 2 : index
    %c0_113 = arith.constant 0 : index
    %272 = vector.load %arg7[%271, %c2_111, %c2_112, %c0_113] : memref<2x14x24x128xf32, #tpu.memory_space<vmem>>, vector<1x8x16x128xf32>
    %273 = vector.shape_cast %272 : vector<1x8x16x128xf32> to vector<8x16x128xf32>
    %274 = vector.broadcast %76 : vector<1x1x128xf32> to vector<8x16x128xf32>
    %275 = arith.mulf %273, %274 : vector<8x16x128xf32>
    %276 = arith.addf %270, %275 : vector<8x16x128xf32>
    %277 = arith.index_cast %11 : i32 to index
    %c2_114 = arith.constant 2 : index
    %c3_115 = arith.constant 3 : index
    %c0_116 = arith.constant 0 : index
    %278 = vector.load %arg7[%277, %c2_114, %c3_115, %c0_116] : memref<2x14x24x128xf32, #tpu.memory_space<vmem>>, vector<1x8x16x128xf32>
    %279 = vector.shape_cast %278 : vector<1x8x16x128xf32> to vector<8x16x128xf32>
    %280 = vector.broadcast %79 : vector<1x1x128xf32> to vector<8x16x128xf32>
    %281 = arith.mulf %279, %280 : vector<8x16x128xf32>
    %282 = arith.addf %276, %281 : vector<8x16x128xf32>
    %283 = arith.index_cast %11 : i32 to index
    %c2_117 = arith.constant 2 : index
    %c4_118 = arith.constant 4 : index
    %c0_119 = arith.constant 0 : index
    %284 = vector.load %arg7[%283, %c2_117, %c4_118, %c0_119] : memref<2x14x24x128xf32, #tpu.memory_space<vmem>>, vector<1x8x16x128xf32>
    %285 = vector.shape_cast %284 : vector<1x8x16x128xf32> to vector<8x16x128xf32>
    %286 = vector.broadcast %82 : vector<1x1x128xf32> to vector<8x16x128xf32>
    %287 = arith.mulf %285, %286 : vector<8x16x128xf32>
    %288 = arith.addf %282, %287 : vector<8x16x128xf32>
    %289 = arith.index_cast %11 : i32 to index
    %c2_120 = arith.constant 2 : index
    %c5_121 = arith.constant 5 : index
    %c0_122 = arith.constant 0 : index
    %290 = vector.load %arg7[%289, %c2_120, %c5_121, %c0_122] : memref<2x14x24x128xf32, #tpu.memory_space<vmem>>, vector<1x8x16x128xf32>
    %291 = vector.shape_cast %290 : vector<1x8x16x128xf32> to vector<8x16x128xf32>
    %292 = vector.broadcast %85 : vector<1x1x128xf32> to vector<8x16x128xf32>
    %293 = arith.mulf %291, %292 : vector<8x16x128xf32>
    %294 = arith.addf %288, %293 : vector<8x16x128xf32>
    %295 = arith.index_cast %11 : i32 to index
    %c2_123 = arith.constant 2 : index
    %c6_124 = arith.constant 6 : index
    %c0_125 = arith.constant 0 : index
    %296 = vector.load %arg7[%295, %c2_123, %c6_124, %c0_125] : memref<2x14x24x128xf32, #tpu.memory_space<vmem>>, vector<1x8x16x128xf32>
    %297 = vector.shape_cast %296 : vector<1x8x16x128xf32> to vector<8x16x128xf32>
    %298 = vector.broadcast %88 : vector<1x1x128xf32> to vector<8x16x128xf32>
    %299 = arith.mulf %297, %298 : vector<8x16x128xf32>
    %300 = arith.addf %294, %299 : vector<8x16x128xf32>
    %301 = arith.index_cast %11 : i32 to index
    %c3_126 = arith.constant 3 : index
    %c0_127 = arith.constant 0 : index
    %c0_128 = arith.constant 0 : index
    %302 = vector.load %arg7[%301, %c3_126, %c0_127, %c0_128] : memref<2x14x24x128xf32, #tpu.memory_space<vmem>>, vector<1x8x16x128xf32>
    %303 = vector.shape_cast %302 : vector<1x8x16x128xf32> to vector<8x16x128xf32>
    %304 = vector.broadcast %91 : vector<1x1x128xf32> to vector<8x16x128xf32>
    %305 = arith.mulf %303, %304 : vector<8x16x128xf32>
    %306 = arith.addf %300, %305 : vector<8x16x128xf32>
    %307 = arith.index_cast %11 : i32 to index
    %c3_129 = arith.constant 3 : index
    %c1_130 = arith.constant 1 : index
    %c0_131 = arith.constant 0 : index
    %308 = vector.load %arg7[%307, %c3_129, %c1_130, %c0_131] : memref<2x14x24x128xf32, #tpu.memory_space<vmem>>, vector<1x8x16x128xf32>
    %309 = vector.shape_cast %308 : vector<1x8x16x128xf32> to vector<8x16x128xf32>
    %310 = vector.broadcast %94 : vector<1x1x128xf32> to vector<8x16x128xf32>
    %311 = arith.mulf %309, %310 : vector<8x16x128xf32>
    %312 = arith.addf %306, %311 : vector<8x16x128xf32>
    %313 = arith.index_cast %11 : i32 to index
    %c3_132 = arith.constant 3 : index
    %c2_133 = arith.constant 2 : index
    %c0_134 = arith.constant 0 : index
    %314 = vector.load %arg7[%313, %c3_132, %c2_133, %c0_134] : memref<2x14x24x128xf32, #tpu.memory_space<vmem>>, vector<1x8x16x128xf32>
    %315 = vector.shape_cast %314 : vector<1x8x16x128xf32> to vector<8x16x128xf32>
    %316 = vector.broadcast %97 : vector<1x1x128xf32> to vector<8x16x128xf32>
    %317 = arith.mulf %315, %316 : vector<8x16x128xf32>
    %318 = arith.addf %312, %317 : vector<8x16x128xf32>
    %319 = arith.index_cast %11 : i32 to index
    %c3_135 = arith.constant 3 : index
    %c3_136 = arith.constant 3 : index
    %c0_137 = arith.constant 0 : index
    %320 = vector.load %arg7[%319, %c3_135, %c3_136, %c0_137] : memref<2x14x24x128xf32, #tpu.memory_space<vmem>>, vector<1x8x16x128xf32>
    %321 = vector.shape_cast %320 : vector<1x8x16x128xf32> to vector<8x16x128xf32>
    %322 = vector.broadcast %100 : vector<1x1x128xf32> to vector<8x16x128xf32>
    %323 = arith.mulf %321, %322 : vector<8x16x128xf32>
    %324 = arith.addf %318, %323 : vector<8x16x128xf32>
    %325 = arith.index_cast %11 : i32 to index
    %c3_138 = arith.constant 3 : index
    %c4_139 = arith.constant 4 : index
    %c0_140 = arith.constant 0 : index
    %326 = vector.load %arg7[%325, %c3_138, %c4_139, %c0_140] : memref<2x14x24x128xf32, #tpu.memory_space<vmem>>, vector<1x8x16x128xf32>
    %327 = vector.shape_cast %326 : vector<1x8x16x128xf32> to vector<8x16x128xf32>
    %328 = vector.broadcast %103 : vector<1x1x128xf32> to vector<8x16x128xf32>
    %329 = arith.mulf %327, %328 : vector<8x16x128xf32>
    %330 = arith.addf %324, %329 : vector<8x16x128xf32>
    %331 = arith.index_cast %11 : i32 to index
    %c3_141 = arith.constant 3 : index
    %c5_142 = arith.constant 5 : index
    %c0_143 = arith.constant 0 : index
    %332 = vector.load %arg7[%331, %c3_141, %c5_142, %c0_143] : memref<2x14x24x128xf32, #tpu.memory_space<vmem>>, vector<1x8x16x128xf32>
    %333 = vector.shape_cast %332 : vector<1x8x16x128xf32> to vector<8x16x128xf32>
    %334 = vector.broadcast %106 : vector<1x1x128xf32> to vector<8x16x128xf32>
    %335 = arith.mulf %333, %334 : vector<8x16x128xf32>
    %336 = arith.addf %330, %335 : vector<8x16x128xf32>
    %337 = arith.index_cast %11 : i32 to index
    %c3_144 = arith.constant 3 : index
    %c6_145 = arith.constant 6 : index
    %c0_146 = arith.constant 0 : index
    %338 = vector.load %arg7[%337, %c3_144, %c6_145, %c0_146] : memref<2x14x24x128xf32, #tpu.memory_space<vmem>>, vector<1x8x16x128xf32>
    %339 = vector.shape_cast %338 : vector<1x8x16x128xf32> to vector<8x16x128xf32>
    %340 = vector.broadcast %109 : vector<1x1x128xf32> to vector<8x16x128xf32>
    %341 = arith.mulf %339, %340 : vector<8x16x128xf32>
    %342 = arith.addf %336, %341 : vector<8x16x128xf32>
    %343 = arith.index_cast %11 : i32 to index
    %c4_147 = arith.constant 4 : index
    %c0_148 = arith.constant 0 : index
    %c0_149 = arith.constant 0 : index
    %344 = vector.load %arg7[%343, %c4_147, %c0_148, %c0_149] : memref<2x14x24x128xf32, #tpu.memory_space<vmem>>, vector<1x8x16x128xf32>
    %345 = vector.shape_cast %344 : vector<1x8x16x128xf32> to vector<8x16x128xf32>
    %346 = vector.broadcast %112 : vector<1x1x128xf32> to vector<8x16x128xf32>
    %347 = arith.mulf %345, %346 : vector<8x16x128xf32>
    %348 = arith.addf %342, %347 : vector<8x16x128xf32>
    %349 = arith.index_cast %11 : i32 to index
    %c4_150 = arith.constant 4 : index
    %c1_151 = arith.constant 1 : index
    %c0_152 = arith.constant 0 : index
    %350 = vector.load %arg7[%349, %c4_150, %c1_151, %c0_152] : memref<2x14x24x128xf32, #tpu.memory_space<vmem>>, vector<1x8x16x128xf32>
    %351 = vector.shape_cast %350 : vector<1x8x16x128xf32> to vector<8x16x128xf32>
    %352 = vector.broadcast %115 : vector<1x1x128xf32> to vector<8x16x128xf32>
    %353 = arith.mulf %351, %352 : vector<8x16x128xf32>
    %354 = arith.addf %348, %353 : vector<8x16x128xf32>
    %355 = arith.index_cast %11 : i32 to index
    %c4_153 = arith.constant 4 : index
    %c2_154 = arith.constant 2 : index
    %c0_155 = arith.constant 0 : index
    %356 = vector.load %arg7[%355, %c4_153, %c2_154, %c0_155] : memref<2x14x24x128xf32, #tpu.memory_space<vmem>>, vector<1x8x16x128xf32>
    %357 = vector.shape_cast %356 : vector<1x8x16x128xf32> to vector<8x16x128xf32>
    %358 = vector.broadcast %118 : vector<1x1x128xf32> to vector<8x16x128xf32>
    %359 = arith.mulf %357, %358 : vector<8x16x128xf32>
    %360 = arith.addf %354, %359 : vector<8x16x128xf32>
    %361 = arith.index_cast %11 : i32 to index
    %c4_156 = arith.constant 4 : index
    %c3_157 = arith.constant 3 : index
    %c0_158 = arith.constant 0 : index
    %362 = vector.load %arg7[%361, %c4_156, %c3_157, %c0_158] : memref<2x14x24x128xf32, #tpu.memory_space<vmem>>, vector<1x8x16x128xf32>
    %363 = vector.shape_cast %362 : vector<1x8x16x128xf32> to vector<8x16x128xf32>
    %364 = vector.broadcast %121 : vector<1x1x128xf32> to vector<8x16x128xf32>
    %365 = arith.mulf %363, %364 : vector<8x16x128xf32>
    %366 = arith.addf %360, %365 : vector<8x16x128xf32>
    %367 = arith.index_cast %11 : i32 to index
    %c4_159 = arith.constant 4 : index
    %c4_160 = arith.constant 4 : index
    %c0_161 = arith.constant 0 : index
    %368 = vector.load %arg7[%367, %c4_159, %c4_160, %c0_161] : memref<2x14x24x128xf32, #tpu.memory_space<vmem>>, vector<1x8x16x128xf32>
    %369 = vector.shape_cast %368 : vector<1x8x16x128xf32> to vector<8x16x128xf32>
    %370 = vector.broadcast %124 : vector<1x1x128xf32> to vector<8x16x128xf32>
    %371 = arith.mulf %369, %370 : vector<8x16x128xf32>
    %372 = arith.addf %366, %371 : vector<8x16x128xf32>
    %373 = arith.index_cast %11 : i32 to index
    %c4_162 = arith.constant 4 : index
    %c5_163 = arith.constant 5 : index
    %c0_164 = arith.constant 0 : index
    %374 = vector.load %arg7[%373, %c4_162, %c5_163, %c0_164] : memref<2x14x24x128xf32, #tpu.memory_space<vmem>>, vector<1x8x16x128xf32>
    %375 = vector.shape_cast %374 : vector<1x8x16x128xf32> to vector<8x16x128xf32>
    %376 = vector.broadcast %127 : vector<1x1x128xf32> to vector<8x16x128xf32>
    %377 = arith.mulf %375, %376 : vector<8x16x128xf32>
    %378 = arith.addf %372, %377 : vector<8x16x128xf32>
    %379 = arith.index_cast %11 : i32 to index
    %c4_165 = arith.constant 4 : index
    %c6_166 = arith.constant 6 : index
    %c0_167 = arith.constant 0 : index
    %380 = vector.load %arg7[%379, %c4_165, %c6_166, %c0_167] : memref<2x14x24x128xf32, #tpu.memory_space<vmem>>, vector<1x8x16x128xf32>
    %381 = vector.shape_cast %380 : vector<1x8x16x128xf32> to vector<8x16x128xf32>
    %382 = vector.broadcast %130 : vector<1x1x128xf32> to vector<8x16x128xf32>
    %383 = arith.mulf %381, %382 : vector<8x16x128xf32>
    %384 = arith.addf %378, %383 : vector<8x16x128xf32>
    %385 = arith.index_cast %11 : i32 to index
    %c5_168 = arith.constant 5 : index
    %c0_169 = arith.constant 0 : index
    %c0_170 = arith.constant 0 : index
    %386 = vector.load %arg7[%385, %c5_168, %c0_169, %c0_170] : memref<2x14x24x128xf32, #tpu.memory_space<vmem>>, vector<1x8x16x128xf32>
    %387 = vector.shape_cast %386 : vector<1x8x16x128xf32> to vector<8x16x128xf32>
    %388 = vector.broadcast %133 : vector<1x1x128xf32> to vector<8x16x128xf32>
    %389 = arith.mulf %387, %388 : vector<8x16x128xf32>
    %390 = arith.addf %384, %389 : vector<8x16x128xf32>
    %391 = arith.index_cast %11 : i32 to index
    %c5_171 = arith.constant 5 : index
    %c1_172 = arith.constant 1 : index
    %c0_173 = arith.constant 0 : index
    %392 = vector.load %arg7[%391, %c5_171, %c1_172, %c0_173] : memref<2x14x24x128xf32, #tpu.memory_space<vmem>>, vector<1x8x16x128xf32>
    %393 = vector.shape_cast %392 : vector<1x8x16x128xf32> to vector<8x16x128xf32>
    %394 = vector.broadcast %136 : vector<1x1x128xf32> to vector<8x16x128xf32>
    %395 = arith.mulf %393, %394 : vector<8x16x128xf32>
    %396 = arith.addf %390, %395 : vector<8x16x128xf32>
    %397 = arith.index_cast %11 : i32 to index
    %c5_174 = arith.constant 5 : index
    %c2_175 = arith.constant 2 : index
    %c0_176 = arith.constant 0 : index
    %398 = vector.load %arg7[%397, %c5_174, %c2_175, %c0_176] : memref<2x14x24x128xf32, #tpu.memory_space<vmem>>, vector<1x8x16x128xf32>
    %399 = vector.shape_cast %398 : vector<1x8x16x128xf32> to vector<8x16x128xf32>
    %400 = vector.broadcast %139 : vector<1x1x128xf32> to vector<8x16x128xf32>
    %401 = arith.mulf %399, %400 : vector<8x16x128xf32>
    %402 = arith.addf %396, %401 : vector<8x16x128xf32>
    %403 = arith.index_cast %11 : i32 to index
    %c5_177 = arith.constant 5 : index
    %c3_178 = arith.constant 3 : index
    %c0_179 = arith.constant 0 : index
    %404 = vector.load %arg7[%403, %c5_177, %c3_178, %c0_179] : memref<2x14x24x128xf32, #tpu.memory_space<vmem>>, vector<1x8x16x128xf32>
    %405 = vector.shape_cast %404 : vector<1x8x16x128xf32> to vector<8x16x128xf32>
    %406 = vector.broadcast %142 : vector<1x1x128xf32> to vector<8x16x128xf32>
    %407 = arith.mulf %405, %406 : vector<8x16x128xf32>
    %408 = arith.addf %402, %407 : vector<8x16x128xf32>
    %409 = arith.index_cast %11 : i32 to index
    %c5_180 = arith.constant 5 : index
    %c4_181 = arith.constant 4 : index
    %c0_182 = arith.constant 0 : index
    %410 = vector.load %arg7[%409, %c5_180, %c4_181, %c0_182] : memref<2x14x24x128xf32, #tpu.memory_space<vmem>>, vector<1x8x16x128xf32>
    %411 = vector.shape_cast %410 : vector<1x8x16x128xf32> to vector<8x16x128xf32>
    %412 = vector.broadcast %145 : vector<1x1x128xf32> to vector<8x16x128xf32>
    %413 = arith.mulf %411, %412 : vector<8x16x128xf32>
    %414 = arith.addf %408, %413 : vector<8x16x128xf32>
    %415 = arith.index_cast %11 : i32 to index
    %c5_183 = arith.constant 5 : index
    %c5_184 = arith.constant 5 : index
    %c0_185 = arith.constant 0 : index
    %416 = vector.load %arg7[%415, %c5_183, %c5_184, %c0_185] : memref<2x14x24x128xf32, #tpu.memory_space<vmem>>, vector<1x8x16x128xf32>
    %417 = vector.shape_cast %416 : vector<1x8x16x128xf32> to vector<8x16x128xf32>
    %418 = vector.broadcast %148 : vector<1x1x128xf32> to vector<8x16x128xf32>
    %419 = arith.mulf %417, %418 : vector<8x16x128xf32>
    %420 = arith.addf %414, %419 : vector<8x16x128xf32>
    %421 = arith.index_cast %11 : i32 to index
    %c5_186 = arith.constant 5 : index
    %c6_187 = arith.constant 6 : index
    %c0_188 = arith.constant 0 : index
    %422 = vector.load %arg7[%421, %c5_186, %c6_187, %c0_188] : memref<2x14x24x128xf32, #tpu.memory_space<vmem>>, vector<1x8x16x128xf32>
    %423 = vector.shape_cast %422 : vector<1x8x16x128xf32> to vector<8x16x128xf32>
    %424 = vector.broadcast %151 : vector<1x1x128xf32> to vector<8x16x128xf32>
    %425 = arith.mulf %423, %424 : vector<8x16x128xf32>
    %426 = arith.addf %420, %425 : vector<8x16x128xf32>
    %427 = arith.index_cast %11 : i32 to index
    %c6_189 = arith.constant 6 : index
    %c0_190 = arith.constant 0 : index
    %c0_191 = arith.constant 0 : index
    %428 = vector.load %arg7[%427, %c6_189, %c0_190, %c0_191] : memref<2x14x24x128xf32, #tpu.memory_space<vmem>>, vector<1x8x16x128xf32>
    %429 = vector.shape_cast %428 : vector<1x8x16x128xf32> to vector<8x16x128xf32>
    %430 = vector.broadcast %154 : vector<1x1x128xf32> to vector<8x16x128xf32>
    %431 = arith.mulf %429, %430 : vector<8x16x128xf32>
    %432 = arith.addf %426, %431 : vector<8x16x128xf32>
    %433 = arith.index_cast %11 : i32 to index
    %c6_192 = arith.constant 6 : index
    %c1_193 = arith.constant 1 : index
    %c0_194 = arith.constant 0 : index
    %434 = vector.load %arg7[%433, %c6_192, %c1_193, %c0_194] : memref<2x14x24x128xf32, #tpu.memory_space<vmem>>, vector<1x8x16x128xf32>
    %435 = vector.shape_cast %434 : vector<1x8x16x128xf32> to vector<8x16x128xf32>
    %436 = vector.broadcast %157 : vector<1x1x128xf32> to vector<8x16x128xf32>
    %437 = arith.mulf %435, %436 : vector<8x16x128xf32>
    %438 = arith.addf %432, %437 : vector<8x16x128xf32>
    %439 = arith.index_cast %11 : i32 to index
    %c6_195 = arith.constant 6 : index
    %c2_196 = arith.constant 2 : index
    %c0_197 = arith.constant 0 : index
    %440 = vector.load %arg7[%439, %c6_195, %c2_196, %c0_197] : memref<2x14x24x128xf32, #tpu.memory_space<vmem>>, vector<1x8x16x128xf32>
    %441 = vector.shape_cast %440 : vector<1x8x16x128xf32> to vector<8x16x128xf32>
    %442 = vector.broadcast %160 : vector<1x1x128xf32> to vector<8x16x128xf32>
    %443 = arith.mulf %441, %442 : vector<8x16x128xf32>
    %444 = arith.addf %438, %443 : vector<8x16x128xf32>
    %445 = arith.index_cast %11 : i32 to index
    %c6_198 = arith.constant 6 : index
    %c3_199 = arith.constant 3 : index
    %c0_200 = arith.constant 0 : index
    %446 = vector.load %arg7[%445, %c6_198, %c3_199, %c0_200] : memref<2x14x24x128xf32, #tpu.memory_space<vmem>>, vector<1x8x16x128xf32>
    %447 = vector.shape_cast %446 : vector<1x8x16x128xf32> to vector<8x16x128xf32>
    %448 = vector.broadcast %163 : vector<1x1x128xf32> to vector<8x16x128xf32>
    %449 = arith.mulf %447, %448 : vector<8x16x128xf32>
    %450 = arith.addf %444, %449 : vector<8x16x128xf32>
    %451 = arith.index_cast %11 : i32 to index
    %c6_201 = arith.constant 6 : index
    %c4_202 = arith.constant 4 : index
    %c0_203 = arith.constant 0 : index
    %452 = vector.load %arg7[%451, %c6_201, %c4_202, %c0_203] : memref<2x14x24x128xf32, #tpu.memory_space<vmem>>, vector<1x8x16x128xf32>
    %453 = vector.shape_cast %452 : vector<1x8x16x128xf32> to vector<8x16x128xf32>
    %454 = vector.broadcast %166 : vector<1x1x128xf32> to vector<8x16x128xf32>
    %455 = arith.mulf %453, %454 : vector<8x16x128xf32>
    %456 = arith.addf %450, %455 : vector<8x16x128xf32>
    %457 = arith.index_cast %11 : i32 to index
    %c6_204 = arith.constant 6 : index
    %c5_205 = arith.constant 5 : index
    %c0_206 = arith.constant 0 : index
    %458 = vector.load %arg7[%457, %c6_204, %c5_205, %c0_206] : memref<2x14x24x128xf32, #tpu.memory_space<vmem>>, vector<1x8x16x128xf32>
    %459 = vector.shape_cast %458 : vector<1x8x16x128xf32> to vector<8x16x128xf32>
    %460 = vector.broadcast %169 : vector<1x1x128xf32> to vector<8x16x128xf32>
    %461 = arith.mulf %459, %460 : vector<8x16x128xf32>
    %462 = arith.addf %456, %461 : vector<8x16x128xf32>
    %463 = arith.index_cast %11 : i32 to index
    %c6_207 = arith.constant 6 : index
    %c6_208 = arith.constant 6 : index
    %c0_209 = arith.constant 0 : index
    %464 = vector.load %arg7[%463, %c6_207, %c6_208, %c0_209] : memref<2x14x24x128xf32, #tpu.memory_space<vmem>>, vector<1x8x16x128xf32>
    %465 = vector.shape_cast %464 : vector<1x8x16x128xf32> to vector<8x16x128xf32>
    %466 = vector.broadcast %172 : vector<1x1x128xf32> to vector<8x16x128xf32>
    %467 = arith.mulf %465, %466 : vector<8x16x128xf32>
    %468 = arith.addf %462, %467 : vector<8x16x128xf32>
    %469 = vector.broadcast %175 : vector<1x1x128xf32> to vector<8x16x128xf32>
    %470 = arith.addf %468, %469 : vector<8x16x128xf32>
    %c0_210 = arith.constant 0 : index
    %c0_211 = arith.constant 0 : index
    %c0_212 = arith.constant 0 : index
    %c0_213 = arith.constant 0 : index
    %471 = vector.load %arg6[%c0_210, %c0_211, %c0_212, %c0_213] : memref<1x8x16x128xf32, #tpu.memory_space<vmem>>, vector<1x8x16x128xf32>
    %472 = vector.shape_cast %471 : vector<1x8x16x128xf32> to vector<8x16x128xf32>
    %473 = vector.shape_cast %470 : vector<8x16x128xf32> to vector<1x8x16x128xf32>
    tpu.vector_store %arg6[%c0_210, %c0_211, %c0_212, %c0_213], %473 {strides = array<i32>} : memref<1x8x16x128xf32, #tpu.memory_space<vmem>>, vector<1x8x16x128xf32>,
    return
  }
  func.func @transform_1(%arg0: i32, %arg1: i32, %arg2: i32) -> (i32, i32) {
    %c0_i32 = arith.constant 0 : i32
    %c0_i32_0 = arith.constant 0 : i32
    return %c0_i32, %arg0 : i32, i32
  }
  func.func @transform_2(%arg0: i32, %arg1: i32, %arg2: i32) -> (i32, i32) {
    %c0_i32 = arith.constant 0 : i32
    %c0_i32_0 = arith.constant 0 : i32
    return %c0_i32, %arg0 : i32, i32
  }
  func.func @transform_3(%arg0: i32, %arg1: i32, %arg2: i32) -> (i32, i32, i32, i32) {
    %c0_i32 = arith.constant 0 : i32
    %c0_i32_0 = arith.constant 0 : i32
    return %arg1, %arg2, %c0_i32, %arg0 : i32, i32, i32, i32
  }
}

</mosaic_0001>

<llo_original>
// kernel: tpu_custom_call.1
$region0: #{tpu_custom_call.1}
  #allocation0 [shape = 'u32[]', space=smem, size = 0x4, offset = 0x4, fixed_abs, tag = 'smem constant byte address 0x4 - core index']
  #allocation1 [shape = 'u32[144,128]{1,0:T(1,128)}', space=vmem, size = 0x12000, scoped, tag = 'internal scratch']
  #allocation2 [shape = 'f32[2,14,24,128]{3,2,1,0:T(8,128)}', space=vmem, size = 0x54000, scoped, tag = 'scratch operand']
  #allocation3 [shape = 's32[2]{0}', space=sflag, size = 0x8, scoped, tag = 'scratch operand']
  #allocation8 [shape = 's32[]', space=sflag, size = 0x4, offset = 0, fixed_abs, tag = 'sflag constant byte address 0x0 - dummy sync flag']
  #allocation9 [shape = 's32[]', space=sflag, size = 0x4, offset = 0, fixed_abs, tag = 'sflag constant byte address 0x0 - dummy sync flag']
  #allocation10 [shape = 'u32[]', space=smem, size = 0x4, offset = 0x44, fixed_abs, tag = 'smem constant byte address 0x44 - assertion arg 0']
  #allocation11 [shape = 'u32[]', space=smem, size = 0x4, offset = 0x48, fixed_abs, tag = 'smem constant byte address 0x48 - assertion arg 1']
  #allocation12 [shape = 's32[]', space=sflag, size = 0x4, offset = 0, fixed_abs, tag = 'sflag constant byte address 0x0 - dummy sync flag']
  #allocation13 [shape = 's32[]', space=sflag, size = 0x4, offset = 0, fixed_abs, tag = 'sflag constant byte address 0x0 - dummy sync flag']
  %s0 = inlined_call_operand.hbm [shape: f32[2,22,24,128], index: 0, kind: input, shape index: {}]
  %s1 = inlined_call_operand.hbm [shape: f32[49,128], index: 1, kind: input, shape index: {}]
  %s2 = inlined_call_operand.vmem [shape: f32[1,128], index: 2, kind: input, shape index: {}]
  %s3 = inlined_call_operand.hbm [shape: f32[2,16,16,128], index: 3, kind: output, shape index: {}]
  %s4 = sld [smem:[#allocation0]]
  $region61: #{tpu_custom_call.1} parent=0
    _
  %s6 = ssub.s32 1, %s4
  %s7 = scalar_select 0, %s6, %s4
  $region1: #{tpu_custom_call.1} parent=0
    #allocation4 [shape = 'u8[28672]{0}', space=vmem, size = 0x7000, scoped, tag = 'input window, operand 1, single buffered']
    #allocation5 [shape = 's32[2]{0}', space=sflag, size = 0x8, scoped, tag = 'scoped memory for tpu_custom_call.1']
    #allocation6 [shape = 's32[2]{0}', space=sflag, size = 0x8, scoped, tag = 'scoped memory for tpu_custom_call.1']
    #allocation7 [shape = 'u8[131072]{0}', space=vmem, size = 0x20000, scoped, tag = 'output window, operand 0']
    %8 = vsyncpa [#allocation5], 0
    %9 = vsyncpa [#allocation6], 0
    %s10 = scalar_lea.sflag [#allocation6], 1
    %11 = vsyncpa %s10, 0
    loop: start=0, step=1, limit=6
    $region2: #{tpu_custom_call.1} parent=1 // loop_pre_header
      _
    $region3: #{tpu_custom_call.1} parent=1 // loop_header
      %s13 = sphi 0, %s17
      %p14 = scmp.ge.s32.totalorder %s13, 6
      %s20 = sphi 0, %s39
      %s21 = sphi 0, %s35
      %s22 = sphi 0, %s31
      %s23 = sphi 0, %s20
      %s24 = sphi 0, %s21
      %s25 = sphi 0, %s22
      %s26 = sphi 0, %s23
      %s27 = sphi 0, %s24
      %s28 = sphi 0, %s25
      %s42 = sphi 0, %s44
      %s45 = sphi 0, %s42
      %s46 = sphi 0, %s45
      %s62 = sphi 0, %s46
      %s68 = sphi 0, %s70
      %s71 = sphi 0, %s68
      %s72 = sphi 0, %s71
      %s88 = sphi 0, %s72
      %s98 = sphi 0, %s100
      %s101 = sphi 0, %s98
      %s102 = sphi 0, %s101
      %s118 = sphi 0, %s102
    $region4: #{tpu_custom_call.1} parent=1 // loop_header_branch
      %16 = sbr.rel (%p14) target = $region8
    $region5: #{tpu_custom_call.1} parent=1 // loop_body
      %s18 = ssub.s32 %s13, 1
      %s19 = ssub.s32 %s13, 2
      %s29 = sadd.s32 1, %s22
      %p30 = scmp.ge.s32.totalorder %s29, 2
      %s31 = scalar_select %p30, 0, %s29
      %s32 = sadd.s32 1, %s21
      %s33 = scalar_select %p30, %s32, %s21
      %p34 = scmp.ge.s32.totalorder %s33, 2
      %s35 = scalar_select %p34, 0, %s33
      %s36 = sadd.s32 1, %s20
      %s37 = scalar_select %p34, %s36, %s20
      %p38 = scmp.ge.s32.totalorder %s37, 1
      %s39 = scalar_select %p38, 0, %s37
      %s40 = ssub.s32 %s20, %s39
      %p41 = scmp.eq.s32.totalorder %s40, 0
      %s43 = sadd.s32 %s42, 1
      %s44 = scalar_select %p41, %s42, %s43
      %p47 = pneg %p41
      %p48 = scmp.eq.s32.totalorder %s13, 3
      %p49 = por %p47, %p48
      %p50 = scmp.ne.s32.totalorder %s42, %s45
      %p51 = scmp.eq.s32.totalorder %s13, 0
      %p52 = por %p50, %p51
      %p53 = scmp.ne.s32.totalorder %s42, %s45
      %p54 = scmp.eq.s32.totalorder %s18, 3
      %p55 = por %p53, %p54
      %p56 = scmp.ne.s32.totalorder %s45, %s46
      %p57 = scmp.eq.s32.totalorder %s18, 0
      %p58 = por %p56, %p57
      %p59 = scmp.ne.s32.totalorder %s45, %s46
      %p60 = scmp.eq.s32.totalorder %s19, 3
      %p61 = por %p59, %p60
      %p63 = scmp.ne.s32.totalorder %s46, %s62
      %p64 = scmp.eq.s32.totalorder %s19, 0
      %p65 = por %p63, %p64
      %s66 = ssub.s32 %s20, %s39
      %p67 = scmp.eq.s32.totalorder %s66, 0
      %s69 = sadd.s32 %s68, 1
      %s70 = scalar_select %p67, %s68, %s69
      %p73 = pneg %p67
      %p74 = scmp.eq.s32.totalorder %s13, 3
      %p75 = por %p73, %p74
      %p76 = scmp.ne.s32.totalorder %s68, %s71
      %p77 = scmp.eq.s32.totalorder %s13, 0
      %p78 = por %p76, %p77
      %p79 = scmp.ne.s32.totalorder %s68, %s71
      %p80 = scmp.eq.s32.totalorder %s18, 3
      %p81 = por %p79, %p80
      %p82 = scmp.ne.s32.totalorder %s71, %s72
      %p83 = scmp.eq.s32.totalorder %s18, 0
      %p84 = por %p82, %p83
      %p85 = scmp.ne.s32.totalorder %s71, %s72
      %p86 = scmp.eq.s32.totalorder %s19, 3
      %p87 = por %p85, %p86
      %p89 = scmp.ne.s32.totalorder %s72, %s88
      %p90 = scmp.eq.s32.totalorder %s19, 0
      %p91 = por %p89, %p90
      %s92 = ssub.s32 %s21, %s35
      %s93 = ssub.s32 %s22, %s31
      %s94 = sor.u32 %s92, %s93
      %s95 = ssub.s32 %s20, %s39
      %s96 = sor.u32 %s94, %s95
      %p97 = scmp.eq.s32.totalorder %s96, 0
      %s99 = sadd.s32 %s98, 1
      %s100 = scalar_select %p97, %s98, %s99
      %p103 = pneg %p97
      %p104 = scmp.eq.s32.totalorder %s13, 3
      %p105 = por %p103, %p104
      %p106 = scmp.ne.s32.totalorder %s98, %s101
      %p107 = scmp.eq.s32.totalorder %s13, 0
      %p108 = por %p106, %p107
      %p109 = scmp.ne.s32.totalorder %s98, %s101
      %p110 = scmp.eq.s32.totalorder %s18, 3
      %p111 = por %p109, %p110
      %p112 = scmp.ne.s32.totalorder %s101, %s102
      %p113 = scmp.eq.s32.totalorder %s18, 0
      %p114 = por %p112, %p113
      %p115 = scmp.ne.s32.totalorder %s101, %s102
      %p116 = scmp.eq.s32.totalorder %s19, 3
      %p117 = por %p115, %p116
      %p119 = scmp.ne.s32.totalorder %s102, %s118
      %p120 = scmp.eq.s32.totalorder %s19, 0
      %p121 = por %p119, %p120
      %p122 = scmp.le.s32.totalorder 1, %s13
      %p123 = scmp.lt.s32.totalorder %s13, 5
      %p124 = pnand %p122, %p123
      %p125 = pneg %p124
      // Predicated region
      $region9: #{tpu_custom_call.1} parent=5 // pred_check
        _
      $region10: #{tpu_custom_call.1} parent=5 // pred_check_branch
        %127 = sbr.rel (%p124) target = $region12
      $region11: #{tpu_custom_call.1} parent=5 // pred_region
        %s128 = ssub.s32 %s13, 1
        // Predicated region
        $region13: #{tpu_custom_call.1} parent=11 // pred_check
          %p129 = pneg %p58
        $region14: #{tpu_custom_call.1} parent=11 // pred_check_branch
          %131 = sbr.rel (%p129) target = $region16
        $region15: #{tpu_custom_call.1} parent=11 // pred_region
          %s133 = ssub.s32 896, 896
          %134 = vsyncadd [#allocation5], %s133
          %s135 = smul.addr %s23, 128
          %s136 = scalar_lea.hbm %s1, %s135
          %s137 = sshll.u32 [#allocation4], 4
          %s138 = int_to_ptr.vmem [resolvable:$true] %s137
          %143 = dma.hbm_to_vmem [thread:$0]  %s136, 896, %s138, [#allocation5], 128, 128, 8
        $region16: #{tpu_custom_call.1} parent=11 // pred_fallthru
          _
        // Predicated region
        $region17: #{tpu_custom_call.1} parent=11 // pred_check
          %p144 = pneg %p84
        $region18: #{tpu_custom_call.1} parent=11 // pred_check_branch
          %146 = sbr.rel (%p144) target = $region20
        $region19: #{tpu_custom_call.1} parent=11 // pred_region
          %p147 = scmp.lt.s32.totalorder %s23, 0
          %s148 = scalar_select %p147, %s23, 0
          %s149 = scalar_lea.vmem %s2, %s148
        $region20: #{tpu_custom_call.1} parent=11 // pred_fallthru
          _
      $region12: #{tpu_custom_call.1} parent=5 // pred_fallthru
        _
      %p150 = scmp.lt.s32.totalorder %s13, 4
      // Predicated region
      $region21: #{tpu_custom_call.1} parent=5 // pred_check
        %p151 = pneg %p150
      $region22: #{tpu_custom_call.1} parent=5 // pred_check_branch
        %153 = sbr.rel (%p151) target = $region24
      $region23: #{tpu_custom_call.1} parent=5 // pred_region
        _
      $region24: #{tpu_custom_call.1} parent=5 // pred_fallthru
        _
      %p154 = scmp.le.s32.totalorder 1, %s13
      %p155 = scmp.lt.s32.totalorder %s13, 5
      %p156 = pnand %p154, %p155
      %p157 = pneg %p156
      // Predicated region
      $region25: #{tpu_custom_call.1} parent=5 // pred_check
        _
      $region26: #{tpu_custom_call.1} parent=5 // pred_check_branch
        %159 = sbr.rel (%p156) target = $region28
      $region27: #{tpu_custom_call.1} parent=5 // pred_region
        %s160 = ssub.s32 %s13, 1
        // Predicated region
        $region29: #{tpu_custom_call.1} parent=27 // pred_check
          %p161 = pneg %p58
        $region30: #{tpu_custom_call.1} parent=27 // pred_check_branch
          %163 = sbr.rel (%p161) target = $region32
        $region31: #{tpu_custom_call.1} parent=27 // pred_region
          %164 = dma.done [#allocation5], 896
        $region32: #{tpu_custom_call.1} parent=27 // pred_fallthru
          _
        %p165 = pneg %p58
        %p166 = pneg %p55
        %p167 = scmp.lt.s32.totalorder %s23, 0
        %s168 = scalar_select %p167, %s23, 0
        %s169 = scalar_lea.vmem %s2, %s168
        %p170 = pneg %p84
        %p171 = pneg %p81
        %p172 = pneg %p114
        %p173 = pneg %p111
        %s174 = sand.u32 %s101, 1
        %s175 = scalar_lea.sflag [#allocation6], %s174
        %s176 = sand.u32 %s101, 1
        %s177 = smul.addr %s176, 128
        %s178 = scalar_lea.vmem [#allocation7], %s177
        %p179 = scmp.lt.s32.totalorder %s23, 0
        %s180 = scalar_select %p179, %s23, 0
        %s181 = scalar_lea.vmem %s2, %s180
        %s182 = smul.u32 8, %s25
        %s183 = smul.u32 %s23, 128
        %p184 = scmp.lt.s32.totalorder %s25, 0
        %s185 = ssub.s32 0, %s25
        %s186 = scalar_select %p184, %s185, %s25
        %s187 = sand.u32 %s186, 1
        %s188 = ssub.s32 0, %s187
        %s189 = scalar_select %p184, %s188, %s187
        %p190 = scmp.ne.s32.totalorder %s189, 0
        %p191 = scmp.lt.s32.totalorder %s189, 0
        %p192 = pnand %p191, %p190
        %p193 = pneg %p192
        %s194 = sadd.s32 %s189, 2
        %s195 = scalar_select %p193, %s194, %s189
        %p196 = scmp.eq.s32.totalorder %s25, 0
        // Predicated region
        $region33: #{tpu_custom_call.1} parent=27 // pred_check
          %p197 = pneg %p196
        $region34: #{tpu_custom_call.1} parent=27 // pred_check_branch
          %199 = sbr.rel (%p197) target = $region36
        $region35: #{tpu_custom_call.1} parent=27 // pred_region
          %s200 = sshra.s32 %s183, 7
          %s201 = sand.u32 %s183, 127
          %s202 = smul.u32 %s24, 528
          %s203 = sadd.s32 %s200, %s202
          %s204 = smul.addr %s203, 16
          %s205 = scalar_lea.hbm %s0, %s204
          // Predicated region
          $region37: #{tpu_custom_call.1} parent=35 // pred_check
            _
          $region38: #{tpu_custom_call.1} parent=35 // pred_check_branch
            %207 = sbr.rel target = $region40
          $region39: #{tpu_custom_call.1} parent=35 // pred_region
            %208 = sst [smem:[#allocation10]] [#allocation9]
            %209 = sst [smem:[#allocation11]] [#allocation8]
          $region40: #{tpu_custom_call.1} parent=35 // pred_fallthru
            _
          %211 = shalt.err (0)
          %s213 = sshll.u32 [#allocation2], 4
          %s214 = int_to_ptr.vmem [resolvable:$true] %s213
          %216 = dma.hbm_to_vmem [thread:$0]  %s205, 5376, %s214, [#allocation3]
        $region36: #{tpu_custom_call.1} parent=27 // pred_fallthru
          _
        %s217 = scalar_lea.sflag [#allocation3], %s195
        %s218 = smul.u32 14, 24
        %s219 = smul.u32 %s218, 1
        %s220 = sshll.u32 %s219, 4
        %221 = dma.done %s217, %s220
        %s222 = sadd.s32 %s25, 1
        %p223 = scmp.lt.s32.totalorder %s222, 2
        // Predicated region
        $region41: #{tpu_custom_call.1} parent=27 // pred_check
          %p224 = pneg %p223
        $region42: #{tpu_custom_call.1} parent=27 // pred_check_branch
          %226 = sbr.rel (%p224) target = $region44
        $region43: #{tpu_custom_call.1} parent=27 // pred_region
          %s227 = ssub.s32 1, %s195
          %s228 = smul.u32 %s222, 8
          %s229 = sshra.s32 %s183, 7
          %s230 = sand.u32 %s183, 127
          %s231 = smul.u32 %s228, 24
          %s232 = sadd.s32 %s229, %s231
          %s233 = smul.u32 %s24, 528
          %s234 = sadd.s32 %s232, %s233
          %s235 = smul.addr %s234, 16
          %s236 = scalar_lea.hbm %s0, %s235
          %s237 = smul.u32 %s227, 336
          %s238 = scalar_lea.vmem [#allocation2], %s237
          %s239 = scalar_lea.sflag [#allocation3], %s227
          // Predicated region
          $region45: #{tpu_custom_call.1} parent=43 // pred_check
            _
          $region46: #{tpu_custom_call.1} parent=43 // pred_check_branch
            %241 = sbr.rel target = $region48
          $region47: #{tpu_custom_call.1} parent=43 // pred_region
            %242 = sst [smem:[#allocation10]] [#allocation13]
            %243 = sst [smem:[#allocation11]] [#allocation12]
          $region48: #{tpu_custom_call.1} parent=43 // pred_fallthru
            _
          %245 = shalt.err (0)
          %s247 = sshll.u32 %s238, 4
          %s248 = int_to_ptr.vmem [resolvable:$true] %s247
          %250 = dma.hbm_to_vmem [thread:$0]  %s236, 5376, %s248, %s239
        $region44: #{tpu_custom_call.1} parent=27 // pred_fallthru
          _
        %v251 = vld [vmem:[#allocation4] sm:$0x1]
        %v252 = vld [vmem:[#allocation4 + $0x1] sm:$0x1]
        %v253 = vld [vmem:[#allocation4 + $0x2] sm:$0x1]
        %v254 = vld [vmem:[#allocation4 + $0x3] sm:$0x1]
        %v255 = vld [vmem:[#allocation4 + $0x4] sm:$0x1]
        %v256 = vld [vmem:[#allocation4 + $0x5] sm:$0x1]
        %v257 = vld [vmem:[#allocation4 + $0x6] sm:$0x1]
        %v258 = vld [vmem:[#allocation4 + $0x7] sm:$0x1]
        %v259 = vld [vmem:[#allocation4 + $0x8] sm:$0x1]
        %v260 = vld [vmem:[#allocation4 + $0x9] sm:$0x1]
        %v261 = vld [vmem:[#allocation4 + $0xa] sm:$0x1]
        %v262 = vld [vmem:[#allocation4 + $0xb] sm:$0x1]
        %v263 = vld [vmem:[#allocation4 + $0xc] sm:$0x1]
        %v264 = vld [vmem:[#allocation4 + $0xd] sm:$0x1]
        %v265 = vld [vmem:[#allocation4 + $0xe] sm:$0x1]
        %v266 = vld [vmem:[#allocation4 + $0xf] sm:$0x1]
        %v267 = vld [vmem:[#allocation4 + $0x10] sm:$0x1]
        %v268 = vld [vmem:[#allocation4 + $0x11] sm:$0x1]
        %v269 = vld [vmem:[#allocation4 + $0x12] sm:$0x1]
        %v270 = vld [vmem:[#allocation4 + $0x13] sm:$0x1]
        %v271 = vld [vmem:[#allocation4 + $0x14] sm:$0x1]
        %v272 = vld [vmem:[#allocation4 + $0x15] sm:$0x1]
        %v273 = vld [vmem:[#allocation4 + $0x16] sm:$0x1]
        %v274 = vld [vmem:[#allocation4 + $0x17] sm:$0x1]
        %v275 = vld [vmem:[#allocation4 + $0x18] sm:$0x1]
        %v276 = vld [vmem:[#allocation4 + $0x19] sm:$0x1]
        %v277 = vld [vmem:[#allocation4 + $0x1a] sm:$0x1]
        %v278 = vld [vmem:[#allocation4 + $0x1b] sm:$0x1]
        %v279 = vld [vmem:[#allocation4 + $0x1c] sm:$0x1]
        %v280 = vld [vmem:[#allocation4 + $0x1d] sm:$0x1]
        %v281 = vld [vmem:[#allocation4 + $0x1e] sm:$0x1]
        %v282 = vld [vmem:[#allocation4 + $0x1f] sm:$0x1]
        %v283 = vld [vmem:[#allocation4 + $0x20] sm:$0x1]
        %v284 = vld [vmem:[#allocation4 + $0x21] sm:$0x1]
        %v285 = vld [vmem:[#allocation4 + $0x22] sm:$0x1]
        %v286 = vld [vmem:[#allocation4 + $0x23] sm:$0x1]
        %v287 = vld [vmem:[#allocation4 + $0x24] sm:$0x1]
        %v288 = vld [vmem:[#allocation4 + $0x25] sm:$0x1]
        %v289 = vld [vmem:[#allocation4 + $0x26] sm:$0x1]
        %v290 = vld [vmem:[#allocation4 + $0x27] sm:$0x1]
        %v291 = vld [vmem:[#allocation4 + $0x28] sm:$0x1]
        %v292 = vld [vmem:[#allocation4 + $0x29] sm:$0x1]
        %v293 = vld [vmem:[#allocation4 + $0x2a] sm:$0x1]
        %v294 = vld [vmem:[#allocation4 + $0x2b] sm:$0x1]
        %v295 = vld [vmem:[#allocation4 + $0x2c] sm:$0x1]
        %v296 = vld [vmem:[#allocation4 + $0x2d] sm:$0x1]
        %v297 = vld [vmem:[#allocation4 + $0x2e] sm:$0x1]
        %v298 = vld [vmem:[#allocation4 + $0x2f] sm:$0x1]
        %v299 = vld [vmem:[#allocation4 + $0x30] sm:$0x1]
        %v300 = vld [vmem:[%s181] sm:$0x1]
        %s301 = smul.u32 %s195, 336
        %s302 = scalar_lea.vmem [#allocation2], %s301
        %v303 = vld [vmem:[%s302] sm:$0xff]
        %v304 = vld [vmem:[%s302 + $0x8] sm:$0xff]
        %v305 = vld [vmem:[%s302 + $0x18] sm:$0xff]
        %v306 = vld [vmem:[%s302 + $0x20] sm:$0xff]
        %v307 = vld [vmem:[%s302 + $0x30] sm:$0xff]
        %v308 = vld [vmem:[%s302 + $0x38] sm:$0xff]
        %v309 = vld [vmem:[%s302 + $0x48] sm:$0xff]
        %v310 = vld [vmem:[%s302 + $0x50] sm:$0xff]
        %v311 = vld [vmem:[%s302 + $0x60] sm:$0xff]
        %v312 = vld [vmem:[%s302 + $0x68] sm:$0xff]
        %v313 = vld [vmem:[%s302 + $0x78] sm:$0xff]
        %v314 = vld [vmem:[%s302 + $0x80] sm:$0xff]
        %v315 = vld [vmem:[%s302 + $0x90] sm:$0xff]
        %v316 = vld [vmem:[%s302 + $0x98] sm:$0xff]
        %v317 = vld [vmem:[%s302 + $0xa8] sm:$0xff]
        %v318 = vld [vmem:[%s302 + $0xb0] sm:$0xff]
        %v319 = vlaneseq
        %v320 = vshrl.u32 %v319, 7
        %v321 = vsub.s32 0, %v320
        %v322 = vrot.slane %v251, %v321
        %v323 = vmul.f32 %v303, %v322
        %v324 = vmul.f32 %v304, %v322
        %v325 = vmul.f32 %v305, %v322
        %v326 = vmul.f32 %v306, %v322
        %v327 = vmul.f32 %v307, %v322
        %v328 = vmul.f32 %v308, %v322
        %v329 = vmul.f32 %v309, %v322
        %v330 = vmul.f32 %v310, %v322
        %v331 = vmul.f32 %v311, %v322
        %v332 = vmul.f32 %v312, %v322
        %v333 = vmul.f32 %v313, %v322
        %v334 = vmul.f32 %v314, %v322
        %v335 = vmul.f32 %v315, %v322
        %v336 = vmul.f32 %v316, %v322
        %v337 = vmul.f32 %v317, %v322
        %v338 = vmul.f32 %v318, %v322
        %v339 = vld [vmem:[%s302 + $0x1] sm:$0xff]
        %v340 = vld [vmem:[%s302 + $0x9] sm:$0xff]
        %v341 = vld [vmem:[%s302 + $0x19] sm:$0xff]
        %v342 = vld [vmem:[%s302 + $0x21] sm:$0xff]
        %v343 = vld [vmem:[%s302 + $0x31] sm:$0xff]
        %v344 = vld [vmem:[%s302 + $0x39] sm:$0xff]
        %v345 = vld [vmem:[%s302 + $0x49] sm:$0xff]
        %v346 = vld [vmem:[%s302 + $0x51] sm:$0xff]
        %v347 = vld [vmem:[%s302 + $0x61] sm:$0xff]
        %v348 = vld [vmem:[%s302 + $0x69] sm:$0xff]
        %v349 = vld [vmem:[%s302 + $0x79] sm:$0xff]
        %v350 = vld [vmem:[%s302 + $0x81] sm:$0xff]
        %v351 = vld [vmem:[%s302 + $0x91] sm:$0xff]
        %v352 = vld [vmem:[%s302 + $0x99] sm:$0xff]
        %v353 = vld [vmem:[%s302 + $0xa9] sm:$0xff]
        %v354 = vld [vmem:[%s302 + $0xb1] sm:$0xff]
        %v355 = vlaneseq
        %v356 = vshrl.u32 %v355, 7
        %v357 = vsub.s32 0, %v356
        %v358 = vrot.slane %v252, %v357
        %v359 = vmul.f32 %v339, %v358
        %v360 = vmul.f32 %v340, %v358
        %v361 = vmul.f32 %v341, %v358
        %v362 = vmul.f32 %v342, %v358
        %v363 = vmul.f32 %v343, %v358
        %v364 = vmul.f32 %v344, %v358
        %v365 = vmul.f32 %v345, %v358
        %v366 = vmul.f32 %v346, %v358
        %v367 = vmul.f32 %v347, %v358
        %v368 = vmul.f32 %v348, %v358
        %v369 = vmul.f32 %v349, %v358
        %v370 = vmul.f32 %v350, %v358
        %v371 = vmul.f32 %v351, %v358
        %v372 = vmul.f32 %v352, %v358
        %v373 = vmul.f32 %v353, %v358
        %v374 = vmul.f32 %v354, %v358
        %v375 = vadd.f32 %v323, %v359
        %v376 = vadd.f32 %v324, %v360
        %v377 = vadd.f32 %v325, %v361
        %v378 = vadd.f32 %v326, %v362
        %v379 = vadd.f32 %v327, %v363
        %v380 = vadd.f32 %v328, %v364
        %v381 = vadd.f32 %v329, %v365
        %v382 = vadd.f32 %v330, %v366
        %v383 = vadd.f32 %v331, %v367
        %v384 = vadd.f32 %v332, %v368
        %v385 = vadd.f32 %v333, %v369
        %v386 = vadd.f32 %v334, %v370
        %v387 = vadd.f32 %v335, %v371
        %v388 = vadd.f32 %v336, %v372
        %v389 = vadd.f32 %v337, %v373
        %v390 = vadd.f32 %v338, %v374
        %v391 = vld [vmem:[%s302 + $0x2] sm:$0xff]
        %v392 = vld [vmem:[%s302 + $0xa] sm:$0xff]
        %v393 = vld [vmem:[%s302 + $0x1a] sm:$0xff]
        %v394 = vld [vmem:[%s302 + $0x22] sm:$0xff]
        %v395 = vld [vmem:[%s302 + $0x32] sm:$0xff]
        %v396 = vld [vmem:[%s302 + $0x3a] sm:$0xff]
        %v397 = vld [vmem:[%s302 + $0x4a] sm:$0xff]
        %v398 = vld [vmem:[%s302 + $0x52] sm:$0xff]
        %v399 = vld [vmem:[%s302 + $0x62] sm:$0xff]
        %v400 = vld [vmem:[%s302 + $0x6a] sm:$0xff]
        %v401 = vld [vmem:[%s302 + $0x7a] sm:$0xff]
        %v402 = vld [vmem:[%s302 + $0x82] sm:$0xff]
        %v403 = vld [vmem:[%s302 + $0x92] sm:$0xff]
        %v404 = vld [vmem:[%s302 + $0x9a] sm:$0xff]
        %v405 = vld [vmem:[%s302 + $0xaa] sm:$0xff]
        %v406 = vld [vmem:[%s302 + $0xb2] sm:$0xff]
        %v407 = vlaneseq
        %v408 = vshrl.u32 %v407, 7
        %v409 = vsub.s32 0, %v408
        %v410 = vrot.slane %v253, %v409
        %v411 = vmul.f32 %v391, %v410
        %v412 = vmul.f32 %v392, %v410
        %v413 = vmul.f32 %v393, %v410
        %v414 = vmul.f32 %v394, %v410
        %v415 = vmul.f32 %v395, %v410
        %v416 = vmul.f32 %v396, %v410
        %v417 = vmul.f32 %v397, %v410
        %v418 = vmul.f32 %v398, %v410
        %v419 = vmul.f32 %v399, %v410
        %v420 = vmul.f32 %v400, %v410
        %v421 = vmul.f32 %v401, %v410
        %v422 = vmul.f32 %v402, %v410
        %v423 = vmul.f32 %v403, %v410
        %v424 = vmul.f32 %v404, %v410
        %v425 = vmul.f32 %v405, %v410
        %v426 = vmul.f32 %v406, %v410
        %v427 = vadd.f32 %v375, %v411
        %v428 = vadd.f32 %v376, %v412
        %v429 = vadd.f32 %v377, %v413
        %v430 = vadd.f32 %v378, %v414
        %v431 = vadd.f32 %v379, %v415
        %v432 = vadd.f32 %v380, %v416
        %v433 = vadd.f32 %v381, %v417
        %v434 = vadd.f32 %v382, %v418
        %v435 = vadd.f32 %v383, %v419
        %v436 = vadd.f32 %v384, %v420
        %v437 = vadd.f32 %v385, %v421
        %v438 = vadd.f32 %v386, %v422
        %v439 = vadd.f32 %v387, %v423
        %v440 = vadd.f32 %v388, %v424
        %v441 = vadd.f32 %v389, %v425
        %v442 = vadd.f32 %v390, %v426
        %v443 = vld [vmem:[%s302 + $0x3] sm:$0xff]
        %v444 = vld [vmem:[%s302 + $0xb] sm:$0xff]
        %v445 = vld [vmem:[%s302 + $0x1b] sm:$0xff]
        %v446 = vld [vmem:[%s302 + $0x23] sm:$0xff]
        %v447 = vld [vmem:[%s302 + $0x33] sm:$0xff]
        %v448 = vld [vmem:[%s302 + $0x3b] sm:$0xff]
        %v449 = vld [vmem:[%s302 + $0x4b] sm:$0xff]
        %v450 = vld [vmem:[%s302 + $0x53] sm:$0xff]
        %v451 = vld [vmem:[%s302 + $0x63] sm:$0xff]
        %v452 = vld [vmem:[%s302 + $0x6b] sm:$0xff]
        %v453 = vld [vmem:[%s302 + $0x7b] sm:$0xff]
        %v454 = vld [vmem:[%s302 + $0x83] sm:$0xff]
        %v455 = vld [vmem:[%s302 + $0x93] sm:$0xff]
        %v456 = vld [vmem:[%s302 + $0x9b] sm:$0xff]
        %v457 = vld [vmem:[%s302 + $0xab] sm:$0xff]
        %v458 = vld [vmem:[%s302 + $0xb3] sm:$0xff]
        %v459 = vlaneseq
        %v460 = vshrl.u32 %v459, 7
        %v461 = vsub.s32 0, %v460
        %v462 = vrot.slane %v254, %v461
        %v463 = vmul.f32 %v443, %v462
        %v464 = vmul.f32 %v444, %v462
        %v465 = vmul.f32 %v445, %v462
        %v466 = vmul.f32 %v446, %v462
        %v467 = vmul.f32 %v447, %v462
        %v468 = vmul.f32 %v448, %v462
        %v469 = vmul.f32 %v449, %v462
        %v470 = vmul.f32 %v450, %v462
        %v471 = vmul.f32 %v451, %v462
        %v472 = vmul.f32 %v452, %v462
        %v473 = vmul.f32 %v453, %v462
        %v474 = vmul.f32 %v454, %v462
        %v475 = vmul.f32 %v455, %v462
        %v476 = vmul.f32 %v456, %v462
        %v477 = vmul.f32 %v457, %v462
        %v478 = vmul.f32 %v458, %v462
        %v479 = vadd.f32 %v427, %v463
        %v480 = vadd.f32 %v428, %v464
        %v481 = vadd.f32 %v429, %v465
        %v482 = vadd.f32 %v430, %v466
        %v483 = vadd.f32 %v431, %v467
        %v484 = vadd.f32 %v432, %v468
        %v485 = vadd.f32 %v433, %v469
        %v486 = vadd.f32 %v434, %v470
        %v487 = vadd.f32 %v435, %v471
        %v488 = vadd.f32 %v436, %v472
        %v489 = vadd.f32 %v437, %v473
        %v490 = vadd.f32 %v438, %v474
        %v491 = vadd.f32 %v439, %v475
        %v492 = vadd.f32 %v440, %v476
        %v493 = vadd.f32 %v441, %v477
        %v494 = vadd.f32 %v442, %v478
        %v495 = vld [vmem:[%s302 + $0x4] sm:$0xff]
        %v496 = vld [vmem:[%s302 + $0xc] sm:$0xff]
        %v497 = vld [vmem:[%s302 + $0x1c] sm:$0xff]
        %v498 = vld [vmem:[%s302 + $0x24] sm:$0xff]
        %v499 = vld [vmem:[%s302 + $0x34] sm:$0xff]
        %v500 = vld [vmem:[%s302 + $0x3c] sm:$0xff]
        %v501 = vld [vmem:[%s302 + $0x4c] sm:$0xff]
        %v502 = vld [vmem:[%s302 + $0x54] sm:$0xff]
        %v503 = vld [vmem:[%s302 + $0x64] sm:$0xff]
        %v504 = vld [vmem:[%s302 + $0x6c] sm:$0xff]
        %v505 = vld [vmem:[%s302 + $0x7c] sm:$0xff]
        %v506 = vld [vmem:[%s302 + $0x84] sm:$0xff]
        %v507 = vld [vmem:[%s302 + $0x94] sm:$0xff]
        %v508 = vld [vmem:[%s302 + $0x9c] sm:$0xff]
        %v509 = vld [vmem:[%s302 + $0xac] sm:$0xff]
        %v510 = vld [vmem:[%s302 + $0xb4] sm:$0xff]
        %v511 = vlaneseq
        %v512 = vshrl.u32 %v511, 7
        %v513 = vsub.s32 0, %v512
        %v514 = vrot.slane %v255, %v513
        %v515 = vmul.f32 %v495, %v514
        %v516 = vmul.f32 %v496, %v514
        %v517 = vmul.f32 %v497, %v514
        %v518 = vmul.f32 %v498, %v514
        %v519 = vmul.f32 %v499, %v514
        %v520 = vmul.f32 %v500, %v514
        %v521 = vmul.f32 %v501, %v514
        %v522 = vmul.f32 %v502, %v514
        %v523 = vmul.f32 %v503, %v514
        %v524 = vmul.f32 %v504, %v514
        %v525 = vmul.f32 %v505, %v514
        %v526 = vmul.f32 %v506, %v514
        %v527 = vmul.f32 %v507, %v514
        %v528 = vmul.f32 %v508, %v514
        %v529 = vmul.f32 %v509, %v514
        %v530 = vmul.f32 %v510, %v514
        %v531 = vadd.f32 %v479, %v515
        %v532 = vadd.f32 %v480, %v516
        %v533 = vadd.f32 %v481, %v517
        %v534 = vadd.f32 %v482, %v518
        %v535 = vadd.f32 %v483, %v519
        %v536 = vadd.f32 %v484, %v520
        %v537 = vadd.f32 %v485, %v521
        %v538 = vadd.f32 %v486, %v522
        %v539 = vadd.f32 %v487, %v523
        %v540 = vadd.f32 %v488, %v524
        %v541 = vadd.f32 %v489, %v525
        %v542 = vadd.f32 %v490, %v526
        %v543 = vadd.f32 %v491, %v527
        %v544 = vadd.f32 %v492, %v528
        %v545 = vadd.f32 %v493, %v529
        %v546 = vadd.f32 %v494, %v530
        %v547 = vld [vmem:[%s302 + $0x5] sm:$0xff]
        %v548 = vld [vmem:[%s302 + $0xd] sm:$0xff]
        %v549 = vld [vmem:[%s302 + $0x1d] sm:$0xff]
        %v550 = vld [vmem:[%s302 + $0x25] sm:$0xff]
        %v551 = vld [vmem:[%s302 + $0x35] sm:$0xff]
        %v552 = vld [vmem:[%s302 + $0x3d] sm:$0xff]
        %v553 = vld [vmem:[%s302 + $0x4d] sm:$0xff]
        %v554 = vld [vmem:[%s302 + $0x55] sm:$0xff]
        %v555 = vld [vmem:[%s302 + $0x65] sm:$0xff]
        %v556 = vld [vmem:[%s302 + $0x6d] sm:$0xff]
        %v557 = vld [vmem:[%s302 + $0x7d] sm:$0xff]
        %v558 = vld [vmem:[%s302 + $0x85] sm:$0xff]
        %v559 = vld [vmem:[%s302 + $0x95] sm:$0xff]
        %v560 = vld [vmem:[%s302 + $0x9d] sm:$0xff]
        %v561 = vld [vmem:[%s302 + $0xad] sm:$0xff]
        %v562 = vld [vmem:[%s302 + $0xb5] sm:$0xff]
        %v563 = vlaneseq
        %v564 = vshrl.u32 %v563, 7
        %v565 = vsub.s32 0, %v564
        %v566 = vrot.slane %v256, %v565
        %v567 = vmul.f32 %v547, %v566
        %v568 = vmul.f32 %v548, %v566
        %v569 = vmul.f32 %v549, %v566
        %v570 = vmul.f32 %v550, %v566
        %v571 = vmul.f32 %v551, %v566
        %v572 = vmul.f32 %v552, %v566
        %v573 = vmul.f32 %v553, %v566
        %v574 = vmul.f32 %v554, %v566
        %v575 = vmul.f32 %v555, %v566
        %v576 = vmul.f32 %v556, %v566
        %v577 = vmul.f32 %v557, %v566
        %v578 = vmul.f32 %v558, %v566
        %v579 = vmul.f32 %v559, %v566
        %v580 = vmul.f32 %v560, %v566
        %v581 = vmul.f32 %v561, %v566
        %v582 = vmul.f32 %v562, %v566
        %v583 = vadd.f32 %v531, %v567
        %v584 = vadd.f32 %v532, %v568
        %v585 = vadd.f32 %v533, %v569
        %v586 = vadd.f32 %v534, %v570
        %v587 = vadd.f32 %v535, %v571
        %v588 = vadd.f32 %v536, %v572
        %v589 = vadd.f32 %v537, %v573
        %v590 = vadd.f32 %v538, %v574
        %v591 = vadd.f32 %v539, %v575
        %v592 = vadd.f32 %v540, %v576
        %v593 = vadd.f32 %v541, %v577
        %v594 = vadd.f32 %v542, %v578
        %v595 = vadd.f32 %v543, %v579
        %v596 = vadd.f32 %v544, %v580
        %v597 = vadd.f32 %v545, %v581
        %v598 = vadd.f32 %v546, %v582
        %v599 = vld [vmem:[%s302 + $0x6] sm:$0xff]
        %v600 = vld [vmem:[%s302 + $0xe] sm:$0xff]
        %v601 = vld [vmem:[%s302 + $0x1e] sm:$0xff]
        %v602 = vld [vmem:[%s302 + $0x26] sm:$0xff]
        %v603 = vld [vmem:[%s302 + $0x36] sm:$0xff]
        %v604 = vld [vmem:[%s302 + $0x3e] sm:$0xff]
        %v605 = vld [vmem:[%s302 + $0x4e] sm:$0xff]
        %v606 = vld [vmem:[%s302 + $0x56] sm:$0xff]
        %v607 = vld [vmem:[%s302 + $0x66] sm:$0xff]
        %v608 = vld [vmem:[%s302 + $0x6e] sm:$0xff]
        %v609 = vld [vmem:[%s302 + $0x7e] sm:$0xff]
        %v610 = vld [vmem:[%s302 + $0x86] sm:$0xff]
        %v611 = vld [vmem:[%s302 + $0x96] sm:$0xff]
        %v612 = vld [vmem:[%s302 + $0x9e] sm:$0xff]
        %v613 = vld [vmem:[%s302 + $0xae] sm:$0xff]
        %v614 = vld [vmem:[%s302 + $0xb6] sm:$0xff]
        %v615 = vlaneseq
        %v616 = vshrl.u32 %v615, 7
        %v617 = vsub.s32 0, %v616
        %v618 = vrot.slane %v257, %v617
        %v619 = vmul.f32 %v599, %v618
        %v620 = vmul.f32 %v600, %v618
        %v621 = vmul.f32 %v601, %v618
        %v622 = vmul.f32 %v602, %v618
        %v623 = vmul.f32 %v603, %v618
        %v624 = vmul.f32 %v604, %v618
        %v625 = vmul.f32 %v605, %v618
        %v626 = vmul.f32 %v606, %v618
        %v627 = vmul.f32 %v607, %v618
        %v628 = vmul.f32 %v608, %v618
        %v629 = vmul.f32 %v609, %v618
        %v630 = vmul.f32 %v610, %v618
        %v631 = vmul.f32 %v611, %v618
        %v632 = vmul.f32 %v612, %v618
        %v633 = vmul.f32 %v613, %v618
        %v634 = vmul.f32 %v614, %v618
        %v635 = vadd.f32 %v583, %v619
        %v636 = vadd.f32 %v584, %v620
        %v637 = vadd.f32 %v585, %v621
        %v638 = vadd.f32 %v586, %v622
        %v639 = vadd.f32 %v587, %v623
        %v640 = vadd.f32 %v588, %v624
        %v641 = vadd.f32 %v589, %v625
        %v642 = vadd.f32 %v590, %v626
        %v643 = vadd.f32 %v591, %v627
        %v644 = vadd.f32 %v592, %v628
        %v645 = vadd.f32 %v593, %v629
        %v646 = vadd.f32 %v594, %v630
        %v647 = vadd.f32 %v595, %v631
        %v648 = vadd.f32 %v596, %v632
        %v649 = vadd.f32 %v597, %v633
        %v650 = vadd.f32 %v598, %v634
        %s651 = sadd.s32 24, %s301
        %s652 = scalar_lea.vmem [#allocation2], %s651
        %v653 = vld [vmem:[%s652] sm:$0xff]
        %v654 = vld [vmem:[%s652 + $0x8] sm:$0xff]
        %v655 = vld [vmem:[%s652 + $0x18] sm:$0xff]
        %v656 = vld [vmem:[%s652 + $0x20] sm:$0xff]
        %v657 = vld [vmem:[%s652 + $0x30] sm:$0xff]
        %v658 = vld [vmem:[%s652 + $0x38] sm:$0xff]
        %v659 = vld [vmem:[%s652 + $0x48] sm:$0xff]
        %v660 = vld [vmem:[%s652 + $0x50] sm:$0xff]
        %v661 = vld [vmem:[%s652 + $0x60] sm:$0xff]
        %v662 = vld [vmem:[%s652 + $0x68] sm:$0xff]
        %v663 = vld [vmem:[%s652 + $0x78] sm:$0xff]
        %v664 = vld [vmem:[%s652 + $0x80] sm:$0xff]
        %v665 = vld [vmem:[%s652 + $0x90] sm:$0xff]
        %v666 = vld [vmem:[%s652 + $0x98] sm:$0xff]
        %v667 = vld [vmem:[%s652 + $0xa8] sm:$0xff]
        %v668 = vld [vmem:[%s652 + $0xb0] sm:$0xff]
        %v669 = vlaneseq
        %v670 = vshrl.u32 %v669, 7
        %v671 = vsub.s32 0, %v670
        %v672 = vrot.slane %v258, %v671
        %v673 = vmul.f32 %v653, %v672
        %v674 = vmul.f32 %v654, %v672
        %v675 = vmul.f32 %v655, %v672
        %v676 = vmul.f32 %v656, %v672
        %v677 = vmul.f32 %v657, %v672
        %v678 = vmul.f32 %v658, %v672
        %v679 = vmul.f32 %v659, %v672
        %v680 = vmul.f32 %v660, %v672
        %v681 = vmul.f32 %v661, %v672
        %v682 = vmul.f32 %v662, %v672
        %v683 = vmul.f32 %v663, %v672
        %v684 = vmul.f32 %v664, %v672
        %v685 = vmul.f32 %v665, %v672
        %v686 = vmul.f32 %v666, %v672
        %v687 = vmul.f32 %v667, %v672
        %v688 = vmul.f32 %v668, %v672
        %v689 = vadd.f32 %v635, %v673
        %v690 = vadd.f32 %v636, %v674
        %v691 = vadd.f32 %v637, %v675
        %v692 = vadd.f32 %v638, %v676
        %v693 = vadd.f32 %v639, %v677
        %v694 = vadd.f32 %v640, %v678
        %v695 = vadd.f32 %v641, %v679
        %v696 = vadd.f32 %v642, %v680
        %v697 = vadd.f32 %v643, %v681
        %v698 = vadd.f32 %v644, %v682
        %v699 = vadd.f32 %v645, %v683
        %v700 = vadd.f32 %v646, %v684
        %v701 = vadd.f32 %v647, %v685
        %v702 = vadd.f32 %v648, %v686
        %v703 = vadd.f32 %v649, %v687
        %v704 = vadd.f32 %v650, %v688
        %v705 = vld [vmem:[%s652 + $0x1] sm:$0xff]
        %v706 = vld [vmem:[%s652 + $0x9] sm:$0xff]
        %v707 = vld [vmem:[%s652 + $0x19] sm:$0xff]
        %v708 = vld [vmem:[%s652 + $0x21] sm:$0xff]
        %v709 = vld [vmem:[%s652 + $0x31] sm:$0xff]
        %v710 = vld [vmem:[%s652 + $0x39] sm:$0xff]
        %v711 = vld [vmem:[%s652 + $0x49] sm:$0xff]
        %v712 = vld [vmem:[%s652 + $0x51] sm:$0xff]
        %v713 = vld [vmem:[%s652 + $0x61] sm:$0xff]
        %v714 = vld [vmem:[%s652 + $0x69] sm:$0xff]
        %v715 = vld [vmem:[%s652 + $0x79] sm:$0xff]
        %v716 = vld [vmem:[%s652 + $0x81] sm:$0xff]
        %v717 = vld [vmem:[%s652 + $0x91] sm:$0xff]
        %v718 = vld [vmem:[%s652 + $0x99] sm:$0xff]
        %v719 = vld [vmem:[%s652 + $0xa9] sm:$0xff]
        %v720 = vld [vmem:[%s652 + $0xb1] sm:$0xff]
        %v721 = vlaneseq
        %v722 = vshrl.u32 %v721, 7
        %v723 = vsub.s32 0, %v722
        %v724 = vrot.slane %v259, %v723
        %v725 = vmul.f32 %v705, %v724
        %v726 = vmul.f32 %v706, %v724
        %v727 = vmul.f32 %v707, %v724
        %v728 = vmul.f32 %v708, %v724
        %v729 = vmul.f32 %v709, %v724
        %v730 = vmul.f32 %v710, %v724
        %v731 = vmul.f32 %v711, %v724
        %v732 = vmul.f32 %v712, %v724
        %v733 = vmul.f32 %v713, %v724
        %v734 = vmul.f32 %v714, %v724
        %v735 = vmul.f32 %v715, %v724
        %v736 = vmul.f32 %v716, %v724
        %v737 = vmul.f32 %v717, %v724
        %v738 = vmul.f32 %v718, %v724
        %v739 = vmul.f32 %v719, %v724
        %v740 = vmul.f32 %v720, %v724
        %v741 = vadd.f32 %v689, %v725
        %v742 = vadd.f32 %v690, %v726
        %v743 = vadd.f32 %v691, %v727
        %v744 = vadd.f32 %v692, %v728
        %v745 = vadd.f32 %v693, %v729
        %v746 = vadd.f32 %v694, %v730
        %v747 = vadd.f32 %v695, %v731
        %v748 = vadd.f32 %v696, %v732
        %v749 = vadd.f32 %v697, %v733
        %v750 = vadd.f32 %v698, %v734
        %v751 = vadd.f32 %v699, %v735
        %v752 = vadd.f32 %v700, %v736
        %v753 = vadd.f32 %v701, %v737
        %v754 = vadd.f32 %v702, %v738
        %v755 = vadd.f32 %v703, %v739
        %v756 = vadd.f32 %v704, %v740
        %v757 = vld [vmem:[%s652 + $0x2] sm:$0xff]
        %v758 = vld [vmem:[%s652 + $0xa] sm:$0xff]
        %v759 = vld [vmem:[%s652 + $0x1a] sm:$0xff]
        %v760 = vld [vmem:[%s652 + $0x22] sm:$0xff]
        %v761 = vld [vmem:[%s652 + $0x32] sm:$0xff]
        %v762 = vld [vmem:[%s652 + $0x3a] sm:$0xff]
        %v763 = vld [vmem:[%s652 + $0x4a] sm:$0xff]
        %v764 = vld [vmem:[%s652 + $0x52] sm:$0xff]
        %v765 = vld [vmem:[%s652 + $0x62] sm:$0xff]
        %v766 = vld [vmem:[%s652 + $0x6a] sm:$0xff]
        %v767 = vld [vmem:[%s652 + $0x7a] sm:$0xff]
        %v768 = vld [vmem:[%s652 + $0x82] sm:$0xff]
        %v769 = vld [vmem:[%s652 + $0x92] sm:$0xff]
        %v770 = vld [vmem:[%s652 + $0x9a] sm:$0xff]
        %v771 = vld [vmem:[%s652 + $0xaa] sm:$0xff]
        %v772 = vld [vmem:[%s652 + $0xb2] sm:$0xff]
        %v773 = vlaneseq
        %v774 = vshrl.u32 %v773, 7
        %v775 = vsub.s32 0, %v774
        %v776 = vrot.slane %v260, %v775
        %v777 = vmul.f32 %v757, %v776
        %v778 = vmul.f32 %v758, %v776
        %v779 = vmul.f32 %v759, %v776
        %v780 = vmul.f32 %v760, %v776
        %v781 = vmul.f32 %v761, %v776
        %v782 = vmul.f32 %v762, %v776
        %v783 = vmul.f32 %v763, %v776
        %v784 = vmul.f32 %v764, %v776
        %v785 = vmul.f32 %v765, %v776
        %v786 = vmul.f32 %v766, %v776
        %v787 = vmul.f32 %v767, %v776
        %v788 = vmul.f32 %v768, %v776
        %v789 = vmul.f32 %v769, %v776
        %v790 = vmul.f32 %v770, %v776
        %v791 = vmul.f32 %v771, %v776
        %v792 = vmul.f32 %v772, %v776
        %v793 = vadd.f32 %v741, %v777
        %v794 = vadd.f32 %v742, %v778
        %v795 = vadd.f32 %v743, %v779
        %v796 = vadd.f32 %v744, %v780
        %v797 = vadd.f32 %v745, %v781
        %v798 = vadd.f32 %v746, %v782
        %v799 = vadd.f32 %v747, %v783
        %v800 = vadd.f32 %v748, %v784
        %v801 = vadd.f32 %v749, %v785
        %v802 = vadd.f32 %v750, %v786
        %v803 = vadd.f32 %v751, %v787
        %v804 = vadd.f32 %v752, %v788
        %v805 = vadd.f32 %v753, %v789
        %v806 = vadd.f32 %v754, %v790
        %v807 = vadd.f32 %v755, %v791
        %v808 = vadd.f32 %v756, %v792
        %v809 = vld [vmem:[%s652 + $0x3] sm:$0xff]
        %v810 = vld [vmem:[%s652 + $0xb] sm:$0xff]
        %v811 = vld [vmem:[%s652 + $0x1b] sm:$0xff]
        %v812 = vld [vmem:[%s652 + $0x23] sm:$0xff]
        %v813 = vld [vmem:[%s652 + $0x33] sm:$0xff]
        %v814 = vld [vmem:[%s652 + $0x3b] sm:$0xff]
        %v815 = vld [vmem:[%s652 + $0x4b] sm:$0xff]
        %v816 = vld [vmem:[%s652 + $0x53] sm:$0xff]
        %v817 = vld [vmem:[%s652 + $0x63] sm:$0xff]
        %v818 = vld [vmem:[%s652 + $0x6b] sm:$0xff]
        %v819 = vld [vmem:[%s652 + $0x7b] sm:$0xff]
        %v820 = vld [vmem:[%s652 + $0x83] sm:$0xff]
        %v821 = vld [vmem:[%s652 + $0x93] sm:$0xff]
        %v822 = vld [vmem:[%s652 + $0x9b] sm:$0xff]
        %v823 = vld [vmem:[%s652 + $0xab] sm:$0xff]
        %v824 = vld [vmem:[%s652 + $0xb3] sm:$0xff]
        %v825 = vlaneseq
        %v826 = vshrl.u32 %v825, 7
        %v827 = vsub.s32 0, %v826
        %v828 = vrot.slane %v261, %v827
        %v829 = vmul.f32 %v809, %v828
        %v830 = vmul.f32 %v810, %v828
        %v831 = vmul.f32 %v811, %v828
        %v832 = vmul.f32 %v812, %v828
        %v833 = vmul.f32 %v813, %v828
        %v834 = vmul.f32 %v814, %v828
        %v835 = vmul.f32 %v815, %v828
        %v836 = vmul.f32 %v816, %v828
        %v837 = vmul.f32 %v817, %v828
        %v838 = vmul.f32 %v818, %v828
        %v839 = vmul.f32 %v819, %v828
        %v840 = vmul.f32 %v820, %v828
        %v841 = vmul.f32 %v821, %v828
        %v842 = vmul.f32 %v822, %v828
        %v843 = vmul.f32 %v823, %v828
        %v844 = vmul.f32 %v824, %v828
        %v845 = vadd.f32 %v793, %v829
        %v846 = vadd.f32 %v794, %v830
        %v847 = vadd.f32 %v795, %v831
        %v848 = vadd.f32 %v796, %v832
        %v849 = vadd.f32 %v797, %v833
        %v850 = vadd.f32 %v798, %v834
        %v851 = vadd.f32 %v799, %v835
        %v852 = vadd.f32 %v800, %v836
        %v853 = vadd.f32 %v801, %v837
        %v854 = vadd.f32 %v802, %v838
        %v855 = vadd.f32 %v803, %v839
        %v856 = vadd.f32 %v804, %v840
        %v857 = vadd.f32 %v805, %v841
        %v858 = vadd.f32 %v806, %v842
        %v859 = vadd.f32 %v807, %v843
        %v860 = vadd.f32 %v808, %v844
        %v861 = vld [vmem:[%s652 + $0x4] sm:$0xff]
        %v862 = vld [vmem:[%s652 + $0xc] sm:$0xff]
        %v863 = vld [vmem:[%s652 + $0x1c] sm:$0xff]
        %v864 = vld [vmem:[%s652 + $0x24] sm:$0xff]
        %v865 = vld [vmem:[%s652 + $0x34] sm:$0xff]
        %v866 = vld [vmem:[%s652 + $0x3c] sm:$0xff]
        %v867 = vld [vmem:[%s652 + $0x4c] sm:$0xff]
        %v868 = vld [vmem:[%s652 + $0x54] sm:$0xff]
        %v869 = vld [vmem:[%s652 + $0x64] sm:$0xff]
        %v870 = vld [vmem:[%s652 + $0x6c] sm:$0xff]
        %v871 = vld [vmem:[%s652 + $0x7c] sm:$0xff]
        %v872 = vld [vmem:[%s652 + $0x84] sm:$0xff]
        %v873 = vld [vmem:[%s652 + $0x94] sm:$0xff]
        %v874 = vld [vmem:[%s652 + $0x9c] sm:$0xff]
        %v875 = vld [vmem:[%s652 + $0xac] sm:$0xff]
        %v876 = vld [vmem:[%s652 + $0xb4] sm:$0xff]
        %v877 = vlaneseq
        %v878 = vshrl.u32 %v877, 7
        %v879 = vsub.s32 0, %v878
        %v880 = vrot.slane %v262, %v879
        %v881 = vmul.f32 %v861, %v880
        %v882 = vmul.f32 %v862, %v880
        %v883 = vmul.f32 %v863, %v880
        %v884 = vmul.f32 %v864, %v880
        %v885 = vmul.f32 %v865, %v880
        %v886 = vmul.f32 %v866, %v880
        %v887 = vmul.f32 %v867, %v880
        %v888 = vmul.f32 %v868, %v880
        %v889 = vmul.f32 %v869, %v880
        %v890 = vmul.f32 %v870, %v880
        %v891 = vmul.f32 %v871, %v880
        %v892 = vmul.f32 %v872, %v880
        %v893 = vmul.f32 %v873, %v880
        %v894 = vmul.f32 %v874, %v880
        %v895 = vmul.f32 %v875, %v880
        %v896 = vmul.f32 %v876, %v880
        %v897 = vadd.f32 %v845, %v881
        %v898 = vadd.f32 %v846, %v882
        %v899 = vadd.f32 %v847, %v883
        %v900 = vadd.f32 %v848, %v884
        %v901 = vadd.f32 %v849, %v885
        %v902 = vadd.f32 %v850, %v886
        %v903 = vadd.f32 %v851, %v887
        %v904 = vadd.f32 %v852, %v888
        %v905 = vadd.f32 %v853, %v889
        %v906 = vadd.f32 %v854, %v890
        %v907 = vadd.f32 %v855, %v891
        %v908 = vadd.f32 %v856, %v892
        %v909 = vadd.f32 %v857, %v893
        %v910 = vadd.f32 %v858, %v894
        %v911 = vadd.f32 %v859, %v895
        %v912 = vadd.f32 %v860, %v896
        %v913 = vld [vmem:[%s652 + $0x5] sm:$0xff]
        %v914 = vld [vmem:[%s652 + $0xd] sm:$0xff]
        %v915 = vld [vmem:[%s652 + $0x1d] sm:$0xff]
        %v916 = vld [vmem:[%s652 + $0x25] sm:$0xff]
        %v917 = vld [vmem:[%s652 + $0x35] sm:$0xff]
        %v918 = vld [vmem:[%s652 + $0x3d] sm:$0xff]
        %v919 = vld [vmem:[%s652 + $0x4d] sm:$0xff]
        %v920 = vld [vmem:[%s652 + $0x55] sm:$0xff]
        %v921 = vld [vmem:[%s652 + $0x65] sm:$0xff]
        %v922 = vld [vmem:[%s652 + $0x6d] sm:$0xff]
        %v923 = vld [vmem:[%s652 + $0x7d] sm:$0xff]
        %v924 = vld [vmem:[%s652 + $0x85] sm:$0xff]
        %v925 = vld [vmem:[%s652 + $0x95] sm:$0xff]
        %v926 = vld [vmem:[%s652 + $0x9d] sm:$0xff]
        %v927 = vld [vmem:[%s652 + $0xad] sm:$0xff]
        %v928 = vld [vmem:[%s652 + $0xb5] sm:$0xff]
        %v929 = vlaneseq
        %v930 = vshrl.u32 %v929, 7
        %v931 = vsub.s32 0, %v930
        %v932 = vrot.slane %v263, %v931
        %v933 = vmul.f32 %v913, %v932
        %v934 = vmul.f32 %v914, %v932
        %v935 = vmul.f32 %v915, %v932
        %v936 = vmul.f32 %v916, %v932
        %v937 = vmul.f32 %v917, %v932
        %v938 = vmul.f32 %v918, %v932
        %v939 = vmul.f32 %v919, %v932
        %v940 = vmul.f32 %v920, %v932
        %v941 = vmul.f32 %v921, %v932
        %v942 = vmul.f32 %v922, %v932
        %v943 = vmul.f32 %v923, %v932
        %v944 = vmul.f32 %v924, %v932
        %v945 = vmul.f32 %v925, %v932
        %v946 = vmul.f32 %v926, %v932
        %v947 = vmul.f32 %v927, %v932
        %v948 = vmul.f32 %v928, %v932
        %v949 = vadd.f32 %v897, %v933
        %v950 = vadd.f32 %v898, %v934
        %v951 = vadd.f32 %v899, %v935
        %v952 = vadd.f32 %v900, %v936
        %v953 = vadd.f32 %v901, %v937
        %v954 = vadd.f32 %v902, %v938
        %v955 = vadd.f32 %v903, %v939
        %v956 = vadd.f32 %v904, %v940
        %v957 = vadd.f32 %v905, %v941
        %v958 = vadd.f32 %v906, %v942
        %v959 = vadd.f32 %v907, %v943
        %v960 = vadd.f32 %v908, %v944
        %v961 = vadd.f32 %v909, %v945
        %v962 = vadd.f32 %v910, %v946
        %v963 = vadd.f32 %v911, %v947
        %v964 = vadd.f32 %v912, %v948
        %v965 = vld [vmem:[%s652 + $0x6] sm:$0xff]
        %v966 = vld [vmem:[%s652 + $0xe] sm:$0xff]
        %v967 = vld [vmem:[%s652 + $0x1e] sm:$0xff]
        %v968 = vld [vmem:[%s652 + $0x26] sm:$0xff]
        %v969 = vld [vmem:[%s652 + $0x36] sm:$0xff]
        %v970 = vld [vmem:[%s652 + $0x3e] sm:$0xff]
        %v971 = vld [vmem:[%s652 + $0x4e] sm:$0xff]
        %v972 = vld [vmem:[%s652 + $0x56] sm:$0xff]
        %v973 = vld [vmem:[%s652 + $0x66] sm:$0xff]
        %v974 = vld [vmem:[%s652 + $0x6e] sm:$0xff]
        %v975 = vld [vmem:[%s652 + $0x7e] sm:$0xff]
        %v976 = vld [vmem:[%s652 + $0x86] sm:$0xff]
        %v977 = vld [vmem:[%s652 + $0x96] sm:$0xff]
        %v978 = vld [vmem:[%s652 + $0x9e] sm:$0xff]
        %v979 = vld [vmem:[%s652 + $0xae] sm:$0xff]
        %v980 = vld [vmem:[%s652 + $0xb6] sm:$0xff]
        %v981 = vlaneseq
        %v982 = vshrl.u32 %v981, 7
        %v983 = vsub.s32 0, %v982
        %v984 = vrot.slane %v264, %v983
        %v985 = vmul.f32 %v965, %v984
        %v986 = vmul.f32 %v966, %v984
        %v987 = vmul.f32 %v967, %v984
        %v988 = vmul.f32 %v968, %v984
        %v989 = vmul.f32 %v969, %v984
        %v990 = vmul.f32 %v970, %v984
        %v991 = vmul.f32 %v971, %v984
        %v992 = vmul.f32 %v972, %v984
        %v993 = vmul.f32 %v973, %v984
        %v994 = vmul.f32 %v974, %v984
        %v995 = vmul.f32 %v975, %v984
        %v996 = vmul.f32 %v976, %v984
        %v997 = vmul.f32 %v977, %v984
        %v998 = vmul.f32 %v978, %v984
        %v999 = vmul.f32 %v979, %v984
        %v1000 = vmul.f32 %v980, %v984
        %v1001 = vadd.f32 %v949, %v985
        %v1002 = vadd.f32 %v950, %v986
        %v1003 = vadd.f32 %v951, %v987
        %v1004 = vadd.f32 %v952, %v988
        %v1005 = vadd.f32 %v953, %v989
        %v1006 = vadd.f32 %v954, %v990
        %v1007 = vadd.f32 %v955, %v991
        %v1008 = vadd.f32 %v956, %v992
        %v1009 = vadd.f32 %v957, %v993
        %v1010 = vadd.f32 %v958, %v994
        %v1011 = vadd.f32 %v959, %v995
        %v1012 = vadd.f32 %v960, %v996
        %v1013 = vadd.f32 %v961, %v997
        %v1014 = vadd.f32 %v962, %v998
        %v1015 = vadd.f32 %v963, %v999
        %v1016 = vadd.f32 %v964, %v1000
        %s1017 = sadd.s32 48, %s301
        %s1018 = scalar_lea.vmem [#allocation2], %s1017
        %v1019 = vld [vmem:[%s1018] sm:$0xff]
        %v1020 = vld [vmem:[%s1018 + $0x8] sm:$0xff]
        %v1021 = vld [vmem:[%s1018 + $0x18] sm:$0xff]
        %v1022 = vld [vmem:[%s1018 + $0x20] sm:$0xff]
        %v1023 = vld [vmem:[%s1018 + $0x30] sm:$0xff]
        %v1024 = vld [vmem:[%s1018 + $0x38] sm:$0xff]
        %v1025 = vld [vmem:[%s1018 + $0x48] sm:$0xff]
        %v1026 = vld [vmem:[%s1018 + $0x50] sm:$0xff]
        %v1027 = vld [vmem:[%s1018 + $0x60] sm:$0xff]
        %v1028 = vld [vmem:[%s1018 + $0x68] sm:$0xff]
        %v1029 = vld [vmem:[%s1018 + $0x78] sm:$0xff]
        %v1030 = vld [vmem:[%s1018 + $0x80] sm:$0xff]
        %v1031 = vld [vmem:[%s1018 + $0x90] sm:$0xff]
        %v1032 = vld [vmem:[%s1018 + $0x98] sm:$0xff]
        %v1033 = vld [vmem:[%s1018 + $0xa8] sm:$0xff]
        %v1034 = vld [vmem:[%s1018 + $0xb0] sm:$0xff]
        %v1035 = vlaneseq
        %v1036 = vshrl.u32 %v1035, 7
        %v1037 = vsub.s32 0, %v1036
        %v1038 = vrot.slane %v265, %v1037
        %v1039 = vmul.f32 %v1019, %v1038
        %v1040 = vmul.f32 %v1020, %v1038
        %v1041 = vmul.f32 %v1021, %v1038
        %v1042 = vmul.f32 %v1022, %v1038
        %v1043 = vmul.f32 %v1023, %v1038
        %v1044 = vmul.f32 %v1024, %v1038
        %v1045 = vmul.f32 %v1025, %v1038
        %v1046 = vmul.f32 %v1026, %v1038
        %v1047 = vmul.f32 %v1027, %v1038
        %v1048 = vmul.f32 %v1028, %v1038
        %v1049 = vmul.f32 %v1029, %v1038
        %v1050 = vmul.f32 %v1030, %v1038
        %v1051 = vmul.f32 %v1031, %v1038
        %v1052 = vmul.f32 %v1032, %v1038
        %v1053 = vmul.f32 %v1033, %v1038
        %v1054 = vmul.f32 %v1034, %v1038
        %v1055 = vadd.f32 %v1001, %v1039
        %v1056 = vadd.f32 %v1002, %v1040
        %v1057 = vadd.f32 %v1003, %v1041
        %v1058 = vadd.f32 %v1004, %v1042
        %v1059 = vadd.f32 %v1005, %v1043
        %v1060 = vadd.f32 %v1006, %v1044
        %v1061 = vadd.f32 %v1007, %v1045
        %v1062 = vadd.f32 %v1008, %v1046
        %v1063 = vadd.f32 %v1009, %v1047
        %v1064 = vadd.f32 %v1010, %v1048
        %v1065 = vadd.f32 %v1011, %v1049
        %v1066 = vadd.f32 %v1012, %v1050
        %v1067 = vadd.f32 %v1013, %v1051
        %v1068 = vadd.f32 %v1014, %v1052
        %v1069 = vadd.f32 %v1015, %v1053
        %v1070 = vadd.f32 %v1016, %v1054
        %v1071 = vld [vmem:[%s1018 + $0x1] sm:$0xff]
        %v1072 = vld [vmem:[%s1018 + $0x9] sm:$0xff]
        %v1073 = vld [vmem:[%s1018 + $0x19] sm:$0xff]
        %v1074 = vld [vmem:[%s1018 + $0x21] sm:$0xff]
        %v1075 = vld [vmem:[%s1018 + $0x31] sm:$0xff]
        %v1076 = vld [vmem:[%s1018 + $0x39] sm:$0xff]
        %v1077 = vld [vmem:[%s1018 + $0x49] sm:$0xff]
        %v1078 = vld [vmem:[%s1018 + $0x51] sm:$0xff]
        %v1079 = vld [vmem:[%s1018 + $0x61] sm:$0xff]
        %v1080 = vld [vmem:[%s1018 + $0x69] sm:$0xff]
        %v1081 = vld [vmem:[%s1018 + $0x79] sm:$0xff]
        %v1082 = vld [vmem:[%s1018 + $0x81] sm:$0xff]
        %v1083 = vld [vmem:[%s1018 + $0x91] sm:$0xff]
        %v1084 = vld [vmem:[%s1018 + $0x99] sm:$0xff]
        %v1085 = vld [vmem:[%s1018 + $0xa9] sm:$0xff]
        %v1086 = vld [vmem:[%s1018 + $0xb1] sm:$0xff]
        %v1087 = vlaneseq
        %v1088 = vshrl.u32 %v1087, 7
        %v1089 = vsub.s32 0, %v1088
        %v1090 = vrot.slane %v266, %v1089
        %v1091 = vmul.f32 %v1071, %v1090
        %v1092 = vmul.f32 %v1072, %v1090
        %v1093 = vmul.f32 %v1073, %v1090
        %v1094 = vmul.f32 %v1074, %v1090
        %v1095 = vmul.f32 %v1075, %v1090
        %v1096 = vmul.f32 %v1076, %v1090
        %v1097 = vmul.f32 %v1077, %v1090
        %v1098 = vmul.f32 %v1078, %v1090
        %v1099 = vmul.f32 %v1079, %v1090
        %v1100 = vmul.f32 %v1080, %v1090
        %v1101 = vmul.f32 %v1081, %v1090
        %v1102 = vmul.f32 %v1082, %v1090
        %v1103 = vmul.f32 %v1083, %v1090
        %v1104 = vmul.f32 %v1084, %v1090
        %v1105 = vmul.f32 %v1085, %v1090
        %v1106 = vmul.f32 %v1086, %v1090
        %v1107 = vadd.f32 %v1055, %v1091
        %v1108 = vadd.f32 %v1056, %v1092
        %v1109 = vadd.f32 %v1057, %v1093
        %v1110 = vadd.f32 %v1058, %v1094
        %v1111 = vadd.f32 %v1059, %v1095
        %v1112 = vadd.f32 %v1060, %v1096
        %v1113 = vadd.f32 %v1061, %v1097
        %v1114 = vadd.f32 %v1062, %v1098
        %v1115 = vadd.f32 %v1063, %v1099
        %v1116 = vadd.f32 %v1064, %v1100
        %v1117 = vadd.f32 %v1065, %v1101
        %v1118 = vadd.f32 %v1066, %v1102
        %v1119 = vadd.f32 %v1067, %v1103
        %v1120 = vadd.f32 %v1068, %v1104
        %v1121 = vadd.f32 %v1069, %v1105
        %v1122 = vadd.f32 %v1070, %v1106
        %v1123 = vld [vmem:[%s1018 + $0x2] sm:$0xff]
        %v1124 = vld [vmem:[%s1018 + $0xa] sm:$0xff]
        %v1125 = vld [vmem:[%s1018 + $0x1a] sm:$0xff]
        %v1126 = vld [vmem:[%s1018 + $0x22] sm:$0xff]
        %v1127 = vld [vmem:[%s1018 + $0x32] sm:$0xff]
        %v1128 = vld [vmem:[%s1018 + $0x3a] sm:$0xff]
        %v1129 = vld [vmem:[%s1018 + $0x4a] sm:$0xff]
        %v1130 = vld [vmem:[%s1018 + $0x52] sm:$0xff]
        %v1131 = vld [vmem:[%s1018 + $0x62] sm:$0xff]
        %v1132 = vld [vmem:[%s1018 + $0x6a] sm:$0xff]
        %v1133 = vld [vmem:[%s1018 + $0x7a] sm:$0xff]
        %v1134 = vld [vmem:[%s1018 + $0x82] sm:$0xff]
        %v1135 = vld [vmem:[%s1018 + $0x92] sm:$0xff]
        %v1136 = vld [vmem:[%s1018 + $0x9a] sm:$0xff]
        %v1137 = vld [vmem:[%s1018 + $0xaa] sm:$0xff]
        %v1138 = vld [vmem:[%s1018 + $0xb2] sm:$0xff]
        %v1139 = vlaneseq
        %v1140 = vshrl.u32 %v1139, 7
        %v1141 = vsub.s32 0, %v1140
        %v1142 = vrot.slane %v267, %v1141
        %v1143 = vmul.f32 %v1123, %v1142
        %v1144 = vmul.f32 %v1124, %v1142
        %v1145 = vmul.f32 %v1125, %v1142
        %v1146 = vmul.f32 %v1126, %v1142
        %v1147 = vmul.f32 %v1127, %v1142
        %v1148 = vmul.f32 %v1128, %v1142
        %v1149 = vmul.f32 %v1129, %v1142
        %v1150 = vmul.f32 %v1130, %v1142
        %v1151 = vmul.f32 %v1131, %v1142
        %v1152 = vmul.f32 %v1132, %v1142
        %v1153 = vmul.f32 %v1133, %v1142
        %v1154 = vmul.f32 %v1134, %v1142
        %v1155 = vmul.f32 %v1135, %v1142
        %v1156 = vmul.f32 %v1136, %v1142
        %v1157 = vmul.f32 %v1137, %v1142
        %v1158 = vmul.f32 %v1138, %v1142
        %v1159 = vadd.f32 %v1107, %v1143
        %v1160 = vadd.f32 %v1108, %v1144
        %v1161 = vadd.f32 %v1109, %v1145
        %v1162 = vadd.f32 %v1110, %v1146
        %v1163 = vadd.f32 %v1111, %v1147
        %v1164 = vadd.f32 %v1112, %v1148
        %v1165 = vadd.f32 %v1113, %v1149
        %v1166 = vadd.f32 %v1114, %v1150
        %v1167 = vadd.f32 %v1115, %v1151
        %v1168 = vadd.f32 %v1116, %v1152
        %v1169 = vadd.f32 %v1117, %v1153
        %v1170 = vadd.f32 %v1118, %v1154
        %v1171 = vadd.f32 %v1119, %v1155
        %v1172 = vadd.f32 %v1120, %v1156
        %v1173 = vadd.f32 %v1121, %v1157
        %v1174 = vadd.f32 %v1122, %v1158
        %v1175 = vld [vmem:[%s1018 + $0x3] sm:$0xff]
        %v1176 = vld [vmem:[%s1018 + $0xb] sm:$0xff]
        %v1177 = vld [vmem:[%s1018 + $0x1b] sm:$0xff]
        %v1178 = vld [vmem:[%s1018 + $0x23] sm:$0xff]
        %v1179 = vld [vmem:[%s1018 + $0x33] sm:$0xff]
        %v1180 = vld [vmem:[%s1018 + $0x3b] sm:$0xff]
        %v1181 = vld [vmem:[%s1018 + $0x4b] sm:$0xff]
        %v1182 = vld [vmem:[%s1018 + $0x53] sm:$0xff]
        %v1183 = vld [vmem:[%s1018 + $0x63] sm:$0xff]
        %v1184 = vld [vmem:[%s1018 + $0x6b] sm:$0xff]
        %v1185 = vld [vmem:[%s1018 + $0x7b] sm:$0xff]
        %v1186 = vld [vmem:[%s1018 + $0x83] sm:$0xff]
        %v1187 = vld [vmem:[%s1018 + $0x93] sm:$0xff]
        %v1188 = vld [vmem:[%s1018 + $0x9b] sm:$0xff]
        %v1189 = vld [vmem:[%s1018 + $0xab] sm:$0xff]
        %v1190 = vld [vmem:[%s1018 + $0xb3] sm:$0xff]
        %v1191 = vlaneseq
        %v1192 = vshrl.u32 %v1191, 7
        %v1193 = vsub.s32 0, %v1192
        %v1194 = vrot.slane %v268, %v1193
        %v1195 = vmul.f32 %v1175, %v1194
        %v1196 = vmul.f32 %v1176, %v1194
        %v1197 = vmul.f32 %v1177, %v1194
        %v1198 = vmul.f32 %v1178, %v1194
        %v1199 = vmul.f32 %v1179, %v1194
        %v1200 = vmul.f32 %v1180, %v1194
        %v1201 = vmul.f32 %v1181, %v1194
        %v1202 = vmul.f32 %v1182, %v1194
        %v1203 = vmul.f32 %v1183, %v1194
        %v1204 = vmul.f32 %v1184, %v1194
        %v1205 = vmul.f32 %v1185, %v1194
        %v1206 = vmul.f32 %v1186, %v1194
        %v1207 = vmul.f32 %v1187, %v1194
        %v1208 = vmul.f32 %v1188, %v1194
        %v1209 = vmul.f32 %v1189, %v1194
        %v1210 = vmul.f32 %v1190, %v1194
        %v1211 = vadd.f32 %v1159, %v1195
        %v1212 = vadd.f32 %v1160, %v1196
        %v1213 = vadd.f32 %v1161, %v1197
        %v1214 = vadd.f32 %v1162, %v1198
        %v1215 = vadd.f32 %v1163, %v1199
        %v1216 = vadd.f32 %v1164, %v1200
        %v1217 = vadd.f32 %v1165, %v1201
        %v1218 = vadd.f32 %v1166, %v1202
        %v1219 = vadd.f32 %v1167, %v1203
        %v1220 = vadd.f32 %v1168, %v1204
        %v1221 = vadd.f32 %v1169, %v1205
        %v1222 = vadd.f32 %v1170, %v1206
        %v1223 = vadd.f32 %v1171, %v1207
        %v1224 = vadd.f32 %v1172, %v1208
        %v1225 = vadd.f32 %v1173, %v1209
        %v1226 = vadd.f32 %v1174, %v1210
        %v1227 = vld [vmem:[%s1018 + $0x4] sm:$0xff]
        %v1228 = vld [vmem:[%s1018 + $0xc] sm:$0xff]
        %v1229 = vld [vmem:[%s1018 + $0x1c] sm:$0xff]
        %v1230 = vld [vmem:[%s1018 + $0x24] sm:$0xff]
        %v1231 = vld [vmem:[%s1018 + $0x34] sm:$0xff]
        %v1232 = vld [vmem:[%s1018 + $0x3c] sm:$0xff]
        %v1233 = vld [vmem:[%s1018 + $0x4c] sm:$0xff]
        %v1234 = vld [vmem:[%s1018 + $0x54] sm:$0xff]
        %v1235 = vld [vmem:[%s1018 + $0x64] sm:$0xff]
        %v1236 = vld [vmem:[%s1018 + $0x6c] sm:$0xff]
        %v1237 = vld [vmem:[%s1018 + $0x7c] sm:$0xff]
        %v1238 = vld [vmem:[%s1018 + $0x84] sm:$0xff]
        %v1239 = vld [vmem:[%s1018 + $0x94] sm:$0xff]
        %v1240 = vld [vmem:[%s1018 + $0x9c] sm:$0xff]
        %v1241 = vld [vmem:[%s1018 + $0xac] sm:$0xff]
        %v1242 = vld [vmem:[%s1018 + $0xb4] sm:$0xff]
        %v1243 = vlaneseq
        %v1244 = vshrl.u32 %v1243, 7
        %v1245 = vsub.s32 0, %v1244
        %v1246 = vrot.slane %v269, %v1245
        %v1247 = vmul.f32 %v1227, %v1246
        %v1248 = vmul.f32 %v1228, %v1246
        %v1249 = vmul.f32 %v1229, %v1246
        %v1250 = vmul.f32 %v1230, %v1246
        %v1251 = vmul.f32 %v1231, %v1246
        %v1252 = vmul.f32 %v1232, %v1246
        %v1253 = vmul.f32 %v1233, %v1246
        %v1254 = vmul.f32 %v1234, %v1246
        %v1255 = vmul.f32 %v1235, %v1246
        %v1256 = vmul.f32 %v1236, %v1246
        %v1257 = vmul.f32 %v1237, %v1246
        %v1258 = vmul.f32 %v1238, %v1246
        %v1259 = vmul.f32 %v1239, %v1246
        %v1260 = vmul.f32 %v1240, %v1246
        %v1261 = vmul.f32 %v1241, %v1246
        %v1262 = vmul.f32 %v1242, %v1246
        %v1263 = vadd.f32 %v1211, %v1247
        %v1264 = vadd.f32 %v1212, %v1248
        %v1265 = vadd.f32 %v1213, %v1249
        %v1266 = vadd.f32 %v1214, %v1250
        %v1267 = vadd.f32 %v1215, %v1251
        %v1268 = vadd.f32 %v1216, %v1252
        %v1269 = vadd.f32 %v1217, %v1253
        %v1270 = vadd.f32 %v1218, %v1254
        %v1271 = vadd.f32 %v1219, %v1255
        %v1272 = vadd.f32 %v1220, %v1256
        %v1273 = vadd.f32 %v1221, %v1257
        %v1274 = vadd.f32 %v1222, %v1258
        %v1275 = vadd.f32 %v1223, %v1259
        %v1276 = vadd.f32 %v1224, %v1260
        %v1277 = vadd.f32 %v1225, %v1261
        %v1278 = vadd.f32 %v1226, %v1262
        %v1279 = vld [vmem:[%s1018 + $0x5] sm:$0xff]
        %v1280 = vld [vmem:[%s1018 + $0xd] sm:$0xff]
        %v1281 = vld [vmem:[%s1018 + $0x1d] sm:$0xff]
        %v1282 = vld [vmem:[%s1018 + $0x25] sm:$0xff]
        %v1283 = vld [vmem:[%s1018 + $0x35] sm:$0xff]
        %v1284 = vld [vmem:[%s1018 + $0x3d] sm:$0xff]
        %v1285 = vld [vmem:[%s1018 + $0x4d] sm:$0xff]
        %v1286 = vld [vmem:[%s1018 + $0x55] sm:$0xff]
        %v1287 = vld [vmem:[%s1018 + $0x65] sm:$0xff]
        %v1288 = vld [vmem:[%s1018 + $0x6d] sm:$0xff]
        %v1289 = vld [vmem:[%s1018 + $0x7d] sm:$0xff]
        %v1290 = vld [vmem:[%s1018 + $0x85] sm:$0xff]
        %v1291 = vld [vmem:[%s1018 + $0x95] sm:$0xff]
        %v1292 = vld [vmem:[%s1018 + $0x9d] sm:$0xff]
        %v1293 = vld [vmem:[%s1018 + $0xad] sm:$0xff]
        %v1294 = vld [vmem:[%s1018 + $0xb5] sm:$0xff]
        %v1295 = vlaneseq
        %v1296 = vshrl.u32 %v1295, 7
        %v1297 = vsub.s32 0, %v1296
        %v1298 = vrot.slane %v270, %v1297
        %v1299 = vmul.f32 %v1279, %v1298
        %v1300 = vmul.f32 %v1280, %v1298
        %v1301 = vmul.f32 %v1281, %v1298
        %v1302 = vmul.f32 %v1282, %v1298
        %v1303 = vmul.f32 %v1283, %v1298
        %v1304 = vmul.f32 %v1284, %v1298
        %v1305 = vmul.f32 %v1285, %v1298
        %v1306 = vmul.f32 %v1286, %v1298
        %v1307 = vmul.f32 %v1287, %v1298
        %v1308 = vmul.f32 %v1288, %v1298
        %v1309 = vmul.f32 %v1289, %v1298
        %v1310 = vmul.f32 %v1290, %v1298
        %v1311 = vmul.f32 %v1291, %v1298
        %v1312 = vmul.f32 %v1292, %v1298
        %v1313 = vmul.f32 %v1293, %v1298
        %v1314 = vmul.f32 %v1294, %v1298
        %v1315 = vadd.f32 %v1263, %v1299
        %v1316 = vadd.f32 %v1264, %v1300
        %v1317 = vadd.f32 %v1265, %v1301
        %v1318 = vadd.f32 %v1266, %v1302
        %v1319 = vadd.f32 %v1267, %v1303
        %v1320 = vadd.f32 %v1268, %v1304
        %v1321 = vadd.f32 %v1269, %v1305
        %v1322 = vadd.f32 %v1270, %v1306
        %v1323 = vadd.f32 %v1271, %v1307
        %v1324 = vadd.f32 %v1272, %v1308
        %v1325 = vadd.f32 %v1273, %v1309
        %v1326 = vadd.f32 %v1274, %v1310
        %v1327 = vadd.f32 %v1275, %v1311
        %v1328 = vadd.f32 %v1276, %v1312
        %v1329 = vadd.f32 %v1277, %v1313
        %v1330 = vadd.f32 %v1278, %v1314
        %v1331 = vld [vmem:[%s1018 + $0x6] sm:$0xff]
        %v1332 = vld [vmem:[%s1018 + $0xe] sm:$0xff]
        %v1333 = vld [vmem:[%s1018 + $0x1e] sm:$0xff]
        %v1334 = vld [vmem:[%s1018 + $0x26] sm:$0xff]
        %v1335 = vld [vmem:[%s1018 + $0x36] sm:$0xff]
        %v1336 = vld [vmem:[%s1018 + $0x3e] sm:$0xff]
        %v1337 = vld [vmem:[%s1018 + $0x4e] sm:$0xff]
        %v1338 = vld [vmem:[%s1018 + $0x56] sm:$0xff]
        %v1339 = vld [vmem:[%s1018 + $0x66] sm:$0xff]
        %v1340 = vld [vmem:[%s1018 + $0x6e] sm:$0xff]
        %v1341 = vld [vmem:[%s1018 + $0x7e] sm:$0xff]
        %v1342 = vld [vmem:[%s1018 + $0x86] sm:$0xff]
        %v1343 = vld [vmem:[%s1018 + $0x96] sm:$0xff]
        %v1344 = vld [vmem:[%s1018 + $0x9e] sm:$0xff]
        %v1345 = vld [vmem:[%s1018 + $0xae] sm:$0xff]
        %v1346 = vld [vmem:[%s1018 + $0xb6] sm:$0xff]
        %v1347 = vlaneseq
        %v1348 = vshrl.u32 %v1347, 7
        %v1349 = vsub.s32 0, %v1348
        %v1350 = vrot.slane %v271, %v1349
        %v1351 = vmul.f32 %v1331, %v1350
        %v1352 = vmul.f32 %v1332, %v1350
        %v1353 = vmul.f32 %v1333, %v1350
        %v1354 = vmul.f32 %v1334, %v1350
        %v1355 = vmul.f32 %v1335, %v1350
        %v1356 = vmul.f32 %v1336, %v1350
        %v1357 = vmul.f32 %v1337, %v1350
        %v1358 = vmul.f32 %v1338, %v1350
        %v1359 = vmul.f32 %v1339, %v1350
        %v1360 = vmul.f32 %v1340, %v1350
        %v1361 = vmul.f32 %v1341, %v1350
        %v1362 = vmul.f32 %v1342, %v1350
        %v1363 = vmul.f32 %v1343, %v1350
        %v1364 = vmul.f32 %v1344, %v1350
        %v1365 = vmul.f32 %v1345, %v1350
        %v1366 = vmul.f32 %v1346, %v1350
        %v1367 = vadd.f32 %v1315, %v1351
        %v1368 = vadd.f32 %v1316, %v1352
        %v1369 = vadd.f32 %v1317, %v1353
        %v1370 = vadd.f32 %v1318, %v1354
        %v1371 = vadd.f32 %v1319, %v1355
        %v1372 = vadd.f32 %v1320, %v1356
        %v1373 = vadd.f32 %v1321, %v1357
        %v1374 = vadd.f32 %v1322, %v1358
        %v1375 = vadd.f32 %v1323, %v1359
        %v1376 = vadd.f32 %v1324, %v1360
        %v1377 = vadd.f32 %v1325, %v1361
        %v1378 = vadd.f32 %v1326, %v1362
        %v1379 = vadd.f32 %v1327, %v1363
        %v1380 = vadd.f32 %v1328, %v1364
        %v1381 = vadd.f32 %v1329, %v1365
        %v1382 = vadd.f32 %v1330, %v1366
        %s1383 = sadd.s32 72, %s301
        %s1384 = scalar_lea.vmem [#allocation2], %s1383
        %v1385 = vld [vmem:[%s1384] sm:$0xff]
        %v1386 = vld [vmem:[%s1384 + $0x8] sm:$0xff]
        %v1387 = vld [vmem:[%s1384 + $0x18] sm:$0xff]
        %v1388 = vld [vmem:[%s1384 + $0x20] sm:$0xff]
        %v1389 = vld [vmem:[%s1384 + $0x30] sm:$0xff]
        %v1390 = vld [vmem:[%s1384 + $0x38] sm:$0xff]
        %v1391 = vld [vmem:[%s1384 + $0x48] sm:$0xff]
        %v1392 = vld [vmem:[%s1384 + $0x50] sm:$0xff]
        %v1393 = vld [vmem:[%s1384 + $0x60] sm:$0xff]
        %v1394 = vld [vmem:[%s1384 + $0x68] sm:$0xff]
        %v1395 = vld [vmem:[%s1384 + $0x78] sm:$0xff]
        %v1396 = vld [vmem:[%s1384 + $0x80] sm:$0xff]
        %v1397 = vld [vmem:[%s1384 + $0x90] sm:$0xff]
        %v1398 = vld [vmem:[%s1384 + $0x98] sm:$0xff]
        %v1399 = vld [vmem:[%s1384 + $0xa8] sm:$0xff]
        %v1400 = vld [vmem:[%s1384 + $0xb0] sm:$0xff]
        %v1401 = vlaneseq
        %v1402 = vshrl.u32 %v1401, 7
        %v1403 = vsub.s32 0, %v1402
        %v1404 = vrot.slane %v272, %v1403
        %v1405 = vmul.f32 %v1385, %v1404
        %v1406 = vmul.f32 %v1386, %v1404
        %v1407 = vmul.f32 %v1387, %v1404
        %v1408 = vmul.f32 %v1388, %v1404
        %v1409 = vmul.f32 %v1389, %v1404
        %v1410 = vmul.f32 %v1390, %v1404
        %v1411 = vmul.f32 %v1391, %v1404
        %v1412 = vmul.f32 %v1392, %v1404
        %v1413 = vmul.f32 %v1393, %v1404
        %v1414 = vmul.f32 %v1394, %v1404
        %v1415 = vmul.f32 %v1395, %v1404
        %v1416 = vmul.f32 %v1396, %v1404
        %v1417 = vmul.f32 %v1397, %v1404
        %v1418 = vmul.f32 %v1398, %v1404
        %v1419 = vmul.f32 %v1399, %v1404
        %v1420 = vmul.f32 %v1400, %v1404
        %v1421 = vadd.f32 %v1367, %v1405
        %v1422 = vadd.f32 %v1368, %v1406
        %v1423 = vadd.f32 %v1369, %v1407
        %v1424 = vadd.f32 %v1370, %v1408
        %v1425 = vadd.f32 %v1371, %v1409
        %v1426 = vadd.f32 %v1372, %v1410
        %v1427 = vadd.f32 %v1373, %v1411
        %v1428 = vadd.f32 %v1374, %v1412
        %v1429 = vadd.f32 %v1375, %v1413
        %v1430 = vadd.f32 %v1376, %v1414
        %v1431 = vadd.f32 %v1377, %v1415
        %v1432 = vadd.f32 %v1378, %v1416
        %v1433 = vadd.f32 %v1379, %v1417
        %v1434 = vadd.f32 %v1380, %v1418
        %v1435 = vadd.f32 %v1381, %v1419
        %v1436 = vadd.f32 %v1382, %v1420
        %v1437 = vld [vmem:[%s1384 + $0x1] sm:$0xff]
        %v1438 = vld [vmem:[%s1384 + $0x9] sm:$0xff]
        %v1439 = vld [vmem:[%s1384 + $0x19] sm:$0xff]
        %v1440 = vld [vmem:[%s1384 + $0x21] sm:$0xff]
        %v1441 = vld [vmem:[%s1384 + $0x31] sm:$0xff]
        %v1442 = vld [vmem:[%s1384 + $0x39] sm:$0xff]
        %v1443 = vld [vmem:[%s1384 + $0x49] sm:$0xff]
        %v1444 = vld [vmem:[%s1384 + $0x51] sm:$0xff]
        %v1445 = vld [vmem:[%s1384 + $0x61] sm:$0xff]
        %v1446 = vld [vmem:[%s1384 + $0x69] sm:$0xff]
        %v1447 = vld [vmem:[%s1384 + $0x79] sm:$0xff]
        %v1448 = vld [vmem:[%s1384 + $0x81] sm:$0xff]
        %v1449 = vld [vmem:[%s1384 + $0x91] sm:$0xff]
        %v1450 = vld [vmem:[%s1384 + $0x99] sm:$0xff]
        %v1451 = vld [vmem:[%s1384 + $0xa9] sm:$0xff]
        %v1452 = vld [vmem:[%s1384 + $0xb1] sm:$0xff]
        %v1453 = vlaneseq
        %v1454 = vshrl.u32 %v1453, 7
        %v1455 = vsub.s32 0, %v1454
        %v1456 = vrot.slane %v273, %v1455
        %v1457 = vmul.f32 %v1437, %v1456
        %v1458 = vmul.f32 %v1438, %v1456
        %v1459 = vmul.f32 %v1439, %v1456
        %v1460 = vmul.f32 %v1440, %v1456
        %v1461 = vmul.f32 %v1441, %v1456
        %v1462 = vmul.f32 %v1442, %v1456
        %v1463 = vmul.f32 %v1443, %v1456
        %v1464 = vmul.f32 %v1444, %v1456
        %v1465 = vmul.f32 %v1445, %v1456
        %v1466 = vmul.f32 %v1446, %v1456
        %v1467 = vmul.f32 %v1447, %v1456
        %v1468 = vmul.f32 %v1448, %v1456
        %v1469 = vmul.f32 %v1449, %v1456
        %v1470 = vmul.f32 %v1450, %v1456
        %v1471 = vmul.f32 %v1451, %v1456
        %v1472 = vmul.f32 %v1452, %v1456
        %v1473 = vadd.f32 %v1421, %v1457
        %v1474 = vadd.f32 %v1422, %v1458
        %v1475 = vadd.f32 %v1423, %v1459
        %v1476 = vadd.f32 %v1424, %v1460
        %v1477 = vadd.f32 %v1425, %v1461
        %v1478 = vadd.f32 %v1426, %v1462
        %v1479 = vadd.f32 %v1427, %v1463
        %v1480 = vadd.f32 %v1428, %v1464
        %v1481 = vadd.f32 %v1429, %v1465
        %v1482 = vadd.f32 %v1430, %v1466
        %v1483 = vadd.f32 %v1431, %v1467
        %v1484 = vadd.f32 %v1432, %v1468
        %v1485 = vadd.f32 %v1433, %v1469
        %v1486 = vadd.f32 %v1434, %v1470
        %v1487 = vadd.f32 %v1435, %v1471
        %v1488 = vadd.f32 %v1436, %v1472
        %v1489 = vld [vmem:[%s1384 + $0x2] sm:$0xff]
        %v1490 = vld [vmem:[%s1384 + $0xa] sm:$0xff]
        %v1491 = vld [vmem:[%s1384 + $0x1a] sm:$0xff]
        %v1492 = vld [vmem:[%s1384 + $0x22] sm:$0xff]
        %v1493 = vld [vmem:[%s1384 + $0x32] sm:$0xff]
        %v1494 = vld [vmem:[%s1384 + $0x3a] sm:$0xff]
        %v1495 = vld [vmem:[%s1384 + $0x4a] sm:$0xff]
        %v1496 = vld [vmem:[%s1384 + $0x52] sm:$0xff]
        %v1497 = vld [vmem:[%s1384 + $0x62] sm:$0xff]
        %v1498 = vld [vmem:[%s1384 + $0x6a] sm:$0xff]
        %v1499 = vld [vmem:[%s1384 + $0x7a] sm:$0xff]
        %v1500 = vld [vmem:[%s1384 + $0x82] sm:$0xff]
        %v1501 = vld [vmem:[%s1384 + $0x92] sm:$0xff]
        %v1502 = vld [vmem:[%s1384 + $0x9a] sm:$0xff]
        %v1503 = vld [vmem:[%s1384 + $0xaa] sm:$0xff]
        %v1504 = vld [vmem:[%s1384 + $0xb2] sm:$0xff]
        %v1505 = vlaneseq
        %v1506 = vshrl.u32 %v1505, 7
        %v1507 = vsub.s32 0, %v1506
        %v1508 = vrot.slane %v274, %v1507
        %v1509 = vmul.f32 %v1489, %v1508
        %v1510 = vmul.f32 %v1490, %v1508
        %v1511 = vmul.f32 %v1491, %v1508
        %v1512 = vmul.f32 %v1492, %v1508
        %v1513 = vmul.f32 %v1493, %v1508
        %v1514 = vmul.f32 %v1494, %v1508
        %v1515 = vmul.f32 %v1495, %v1508
        %v1516 = vmul.f32 %v1496, %v1508
        %v1517 = vmul.f32 %v1497, %v1508
        %v1518 = vmul.f32 %v1498, %v1508
        %v1519 = vmul.f32 %v1499, %v1508
        %v1520 = vmul.f32 %v1500, %v1508
        %v1521 = vmul.f32 %v1501, %v1508
        %v1522 = vmul.f32 %v1502, %v1508
        %v1523 = vmul.f32 %v1503, %v1508
        %v1524 = vmul.f32 %v1504, %v1508
        %v1525 = vadd.f32 %v1473, %v1509
        %v1526 = vadd.f32 %v1474, %v1510
        %v1527 = vadd.f32 %v1475, %v1511
        %v1528 = vadd.f32 %v1476, %v1512
        %v1529 = vadd.f32 %v1477, %v1513
        %v1530 = vadd.f32 %v1478, %v1514
        %v1531 = vadd.f32 %v1479, %v1515
        %v1532 = vadd.f32 %v1480, %v1516
        %v1533 = vadd.f32 %v1481, %v1517
        %v1534 = vadd.f32 %v1482, %v1518
        %v1535 = vadd.f32 %v1483, %v1519
        %v1536 = vadd.f32 %v1484, %v1520
        %v1537 = vadd.f32 %v1485, %v1521
        %v1538 = vadd.f32 %v1486, %v1522
        %v1539 = vadd.f32 %v1487, %v1523
        %v1540 = vadd.f32 %v1488, %v1524
        %v1541 = vld [vmem:[%s1384 + $0x3] sm:$0xff]
        %v1542 = vld [vmem:[%s1384 + $0xb] sm:$0xff]
        %v1543 = vld [vmem:[%s1384 + $0x1b] sm:$0xff]
        %v1544 = vld [vmem:[%s1384 + $0x23] sm:$0xff]
        %v1545 = vld [vmem:[%s1384 + $0x33] sm:$0xff]
        %v1546 = vld [vmem:[%s1384 + $0x3b] sm:$0xff]
        %v1547 = vld [vmem:[%s1384 + $0x4b] sm:$0xff]
        %v1548 = vld [vmem:[%s1384 + $0x53] sm:$0xff]
        %v1549 = vld [vmem:[%s1384 + $0x63] sm:$0xff]
        %v1550 = vld [vmem:[%s1384 + $0x6b] sm:$0xff]
        %v1551 = vld [vmem:[%s1384 + $0x7b] sm:$0xff]
        %v1552 = vld [vmem:[%s1384 + $0x83] sm:$0xff]
        %v1553 = vld [vmem:[%s1384 + $0x93] sm:$0xff]
        %v1554 = vld [vmem:[%s1384 + $0x9b] sm:$0xff]
        %v1555 = vld [vmem:[%s1384 + $0xab] sm:$0xff]
        %v1556 = vld [vmem:[%s1384 + $0xb3] sm:$0xff]
        %v1557 = vlaneseq
        %v1558 = vshrl.u32 %v1557, 7
        %v1559 = vsub.s32 0, %v1558
        %v1560 = vrot.slane %v275, %v1559
        %v1561 = vmul.f32 %v1541, %v1560
        %v1562 = vmul.f32 %v1542, %v1560
        %v1563 = vmul.f32 %v1543, %v1560
        %v1564 = vmul.f32 %v1544, %v1560
        %v1565 = vmul.f32 %v1545, %v1560
        %v1566 = vmul.f32 %v1546, %v1560
        %v1567 = vmul.f32 %v1547, %v1560
        %v1568 = vmul.f32 %v1548, %v1560
        %v1569 = vmul.f32 %v1549, %v1560
        %v1570 = vmul.f32 %v1550, %v1560
        %v1571 = vmul.f32 %v1551, %v1560
        %v1572 = vmul.f32 %v1552, %v1560
        %v1573 = vmul.f32 %v1553, %v1560
        %v1574 = vmul.f32 %v1554, %v1560
        %v1575 = vmul.f32 %v1555, %v1560
        %v1576 = vmul.f32 %v1556, %v1560
        %v1577 = vadd.f32 %v1525, %v1561
        %v1578 = vadd.f32 %v1526, %v1562
        %v1579 = vadd.f32 %v1527, %v1563
        %v1580 = vadd.f32 %v1528, %v1564
        %v1581 = vadd.f32 %v1529, %v1565
        %v1582 = vadd.f32 %v1530, %v1566
        %v1583 = vadd.f32 %v1531, %v1567
        %v1584 = vadd.f32 %v1532, %v1568
        %v1585 = vadd.f32 %v1533, %v1569
        %v1586 = vadd.f32 %v1534, %v1570
        %v1587 = vadd.f32 %v1535, %v1571
        %v1588 = vadd.f32 %v1536, %v1572
        %v1589 = vadd.f32 %v1537, %v1573
        %v1590 = vadd.f32 %v1538, %v1574
        %v1591 = vadd.f32 %v1539, %v1575
        %v1592 = vadd.f32 %v1540, %v1576
        %v1593 = vld [vmem:[%s1384 + $0x4] sm:$0xff]
        %v1594 = vld [vmem:[%s1384 + $0xc] sm:$0xff]
        %v1595 = vld [vmem:[%s1384 + $0x1c] sm:$0xff]
        %v1596 = vld [vmem:[%s1384 + $0x24] sm:$0xff]
        %v1597 = vld [vmem:[%s1384 + $0x34] sm:$0xff]
        %v1598 = vld [vmem:[%s1384 + $0x3c] sm:$0xff]
        %v1599 = vld [vmem:[%s1384 + $0x4c] sm:$0xff]
        %v1600 = vld [vmem:[%s1384 + $0x54] sm:$0xff]
        %v1601 = vld [vmem:[%s1384 + $0x64] sm:$0xff]
        %v1602 = vld [vmem:[%s1384 + $0x6c] sm:$0xff]
        %v1603 = vld [vmem:[%s1384 + $0x7c] sm:$0xff]
        %v1604 = vld [vmem:[%s1384 + $0x84] sm:$0xff]
        %v1605 = vld [vmem:[%s1384 + $0x94] sm:$0xff]
        %v1606 = vld [vmem:[%s1384 + $0x9c] sm:$0xff]
        %v1607 = vld [vmem:[%s1384 + $0xac] sm:$0xff]
        %v1608 = vld [vmem:[%s1384 + $0xb4] sm:$0xff]
        %v1609 = vlaneseq
        %v1610 = vshrl.u32 %v1609, 7
        %v1611 = vsub.s32 0, %v1610
        %v1612 = vrot.slane %v276, %v1611
        %v1613 = vmul.f32 %v1593, %v1612
        %v1614 = vmul.f32 %v1594, %v1612
        %v1615 = vmul.f32 %v1595, %v1612
        %v1616 = vmul.f32 %v1596, %v1612
        %v1617 = vmul.f32 %v1597, %v1612
        %v1618 = vmul.f32 %v1598, %v1612
        %v1619 = vmul.f32 %v1599, %v1612
        %v1620 = vmul.f32 %v1600, %v1612
        %v1621 = vmul.f32 %v1601, %v1612
        %v1622 = vmul.f32 %v1602, %v1612
        %v1623 = vmul.f32 %v1603, %v1612
        %v1624 = vmul.f32 %v1604, %v1612
        %v1625 = vmul.f32 %v1605, %v1612
        %v1626 = vmul.f32 %v1606, %v1612
        %v1627 = vmul.f32 %v1607, %v1612
        %v1628 = vmul.f32 %v1608, %v1612
        %v1629 = vadd.f32 %v1577, %v1613
        %v1630 = vadd.f32 %v1578, %v1614
        %v1631 = vadd.f32 %v1579, %v1615
        %v1632 = vadd.f32 %v1580, %v1616
        %v1633 = vadd.f32 %v1581, %v1617
        %v1634 = vadd.f32 %v1582, %v1618
        %v1635 = vadd.f32 %v1583, %v1619
        %v1636 = vadd.f32 %v1584, %v1620
        %v1637 = vadd.f32 %v1585, %v1621
        %v1638 = vadd.f32 %v1586, %v1622
        %v1639 = vadd.f32 %v1587, %v1623
        %v1640 = vadd.f32 %v1588, %v1624
        %v1641 = vadd.f32 %v1589, %v1625
        %v1642 = vadd.f32 %v1590, %v1626
        %v1643 = vadd.f32 %v1591, %v1627
        %v1644 = vadd.f32 %v1592, %v1628
        %v1645 = vld [vmem:[%s1384 + $0x5] sm:$0xff]
        %v1646 = vld [vmem:[%s1384 + $0xd] sm:$0xff]
        %v1647 = vld [vmem:[%s1384 + $0x1d] sm:$0xff]
        %v1648 = vld [vmem:[%s1384 + $0x25] sm:$0xff]
        %v1649 = vld [vmem:[%s1384 + $0x35] sm:$0xff]
        %v1650 = vld [vmem:[%s1384 + $0x3d] sm:$0xff]
        %v1651 = vld [vmem:[%s1384 + $0x4d] sm:$0xff]
        %v1652 = vld [vmem:[%s1384 + $0x55] sm:$0xff]
        %v1653 = vld [vmem:[%s1384 + $0x65] sm:$0xff]
        %v1654 = vld [vmem:[%s1384 + $0x6d] sm:$0xff]
        %v1655 = vld [vmem:[%s1384 + $0x7d] sm:$0xff]
        %v1656 = vld [vmem:[%s1384 + $0x85] sm:$0xff]
        %v1657 = vld [vmem:[%s1384 + $0x95] sm:$0xff]
        %v1658 = vld [vmem:[%s1384 + $0x9d] sm:$0xff]
        %v1659 = vld [vmem:[%s1384 + $0xad] sm:$0xff]
        %v1660 = vld [vmem:[%s1384 + $0xb5] sm:$0xff]
        %v1661 = vlaneseq
        %v1662 = vshrl.u32 %v1661, 7
        %v1663 = vsub.s32 0, %v1662
        %v1664 = vrot.slane %v277, %v1663
        %v1665 = vmul.f32 %v1645, %v1664
        %v1666 = vmul.f32 %v1646, %v1664
        %v1667 = vmul.f32 %v1647, %v1664
        %v1668 = vmul.f32 %v1648, %v1664
        %v1669 = vmul.f32 %v1649, %v1664
        %v1670 = vmul.f32 %v1650, %v1664
        %v1671 = vmul.f32 %v1651, %v1664
        %v1672 = vmul.f32 %v1652, %v1664
        %v1673 = vmul.f32 %v1653, %v1664
        %v1674 = vmul.f32 %v1654, %v1664
        %v1675 = vmul.f32 %v1655, %v1664
        %v1676 = vmul.f32 %v1656, %v1664
        %v1677 = vmul.f32 %v1657, %v1664
        %v1678 = vmul.f32 %v1658, %v1664
        %v1679 = vmul.f32 %v1659, %v1664
        %v1680 = vmul.f32 %v1660, %v1664
        %v1681 = vadd.f32 %v1629, %v1665
        %v1682 = vadd.f32 %v1630, %v1666
        %v1683 = vadd.f32 %v1631, %v1667
        %v1684 = vadd.f32 %v1632, %v1668
        %v1685 = vadd.f32 %v1633, %v1669
        %v1686 = vadd.f32 %v1634, %v1670
        %v1687 = vadd.f32 %v1635, %v1671
        %v1688 = vadd.f32 %v1636, %v1672
        %v1689 = vadd.f32 %v1637, %v1673
        %v1690 = vadd.f32 %v1638, %v1674
        %v1691 = vadd.f32 %v1639, %v1675
        %v1692 = vadd.f32 %v1640, %v1676
        %v1693 = vadd.f32 %v1641, %v1677
        %v1694 = vadd.f32 %v1642, %v1678
        %v1695 = vadd.f32 %v1643, %v1679
        %v1696 = vadd.f32 %v1644, %v1680
        %v1697 = vld [vmem:[%s1384 + $0x6] sm:$0xff]
        %v1698 = vld [vmem:[%s1384 + $0xe] sm:$0xff]
        %v1699 = vld [vmem:[%s1384 + $0x1e] sm:$0xff]
        %v1700 = vld [vmem:[%s1384 + $0x26] sm:$0xff]
        %v1701 = vld [vmem:[%s1384 + $0x36] sm:$0xff]
        %v1702 = vld [vmem:[%s1384 + $0x3e] sm:$0xff]
        %v1703 = vld [vmem:[%s1384 + $0x4e] sm:$0xff]
        %v1704 = vld [vmem:[%s1384 + $0x56] sm:$0xff]
        %v1705 = vld [vmem:[%s1384 + $0x66] sm:$0xff]
        %v1706 = vld [vmem:[%s1384 + $0x6e] sm:$0xff]
        %v1707 = vld [vmem:[%s1384 + $0x7e] sm:$0xff]
        %v1708 = vld [vmem:[%s1384 + $0x86] sm:$0xff]
        %v1709 = vld [vmem:[%s1384 + $0x96] sm:$0xff]
        %v1710 = vld [vmem:[%s1384 + $0x9e] sm:$0xff]
        %v1711 = vld [vmem:[%s1384 + $0xae] sm:$0xff]
        %v1712 = vld [vmem:[%s1384 + $0xb6] sm:$0xff]
        %v1713 = vlaneseq
        %v1714 = vshrl.u32 %v1713, 7
        %v1715 = vsub.s32 0, %v1714
        %v1716 = vrot.slane %v278, %v1715
        %v1717 = vmul.f32 %v1697, %v1716
        %v1718 = vmul.f32 %v1698, %v1716
        %v1719 = vmul.f32 %v1699, %v1716
        %v1720 = vmul.f32 %v1700, %v1716
        %v1721 = vmul.f32 %v1701, %v1716
        %v1722 = vmul.f32 %v1702, %v1716
        %v1723 = vmul.f32 %v1703, %v1716
        %v1724 = vmul.f32 %v1704, %v1716
        %v1725 = vmul.f32 %v1705, %v1716
        %v1726 = vmul.f32 %v1706, %v1716
        %v1727 = vmul.f32 %v1707, %v1716
        %v1728 = vmul.f32 %v1708, %v1716
        %v1729 = vmul.f32 %v1709, %v1716
        %v1730 = vmul.f32 %v1710, %v1716
        %v1731 = vmul.f32 %v1711, %v1716
        %v1732 = vmul.f32 %v1712, %v1716
        %v1733 = vadd.f32 %v1681, %v1717
        %v1734 = vadd.f32 %v1682, %v1718
        %v1735 = vadd.f32 %v1683, %v1719
        %v1736 = vadd.f32 %v1684, %v1720
        %v1737 = vadd.f32 %v1685, %v1721
        %v1738 = vadd.f32 %v1686, %v1722
        %v1739 = vadd.f32 %v1687, %v1723
        %v1740 = vadd.f32 %v1688, %v1724
        %v1741 = vadd.f32 %v1689, %v1725
        %v1742 = vadd.f32 %v1690, %v1726
        %v1743 = vadd.f32 %v1691, %v1727
        %v1744 = vadd.f32 %v1692, %v1728
        %v1745 = vadd.f32 %v1693, %v1729
        %v1746 = vadd.f32 %v1694, %v1730
        %v1747 = vadd.f32 %v1695, %v1731
        %v1748 = vadd.f32 %v1696, %v1732
        %s1749 = sadd.s32 96, %s301
        %s1750 = scalar_lea.vmem [#allocation2], %s1749
        %v1751 = vld [vmem:[%s1750] sm:$0xff]
        %v1752 = vld [vmem:[%s1750 + $0x8] sm:$0xff]
        %v1753 = vld [vmem:[%s1750 + $0x18] sm:$0xff]
        %v1754 = vld [vmem:[%s1750 + $0x20] sm:$0xff]
        %v1755 = vld [vmem:[%s1750 + $0x30] sm:$0xff]
        %v1756 = vld [vmem:[%s1750 + $0x38] sm:$0xff]
        %v1757 = vld [vmem:[%s1750 + $0x48] sm:$0xff]
        %v1758 = vld [vmem:[%s1750 + $0x50] sm:$0xff]
        %v1759 = vld [vmem:[%s1750 + $0x60] sm:$0xff]
        %v1760 = vld [vmem:[%s1750 + $0x68] sm:$0xff]
        %v1761 = vld [vmem:[%s1750 + $0x78] sm:$0xff]
        %v1762 = vld [vmem:[%s1750 + $0x80] sm:$0xff]
        %v1763 = vld [vmem:[%s1750 + $0x90] sm:$0xff]
        %v1764 = vld [vmem:[%s1750 + $0x98] sm:$0xff]
        %v1765 = vld [vmem:[%s1750 + $0xa8] sm:$0xff]
        %v1766 = vld [vmem:[%s1750 + $0xb0] sm:$0xff]
        %v1767 = vlaneseq
        %v1768 = vshrl.u32 %v1767, 7
        %v1769 = vsub.s32 0, %v1768
        %v1770 = vrot.slane %v279, %v1769
        %v1771 = vmul.f32 %v1751, %v1770
        %v1772 = vmul.f32 %v1752, %v1770
        %v1773 = vmul.f32 %v1753, %v1770
        %v1774 = vmul.f32 %v1754, %v1770
        %v1775 = vmul.f32 %v1755, %v1770
        %v1776 = vmul.f32 %v1756, %v1770
        %v1777 = vmul.f32 %v1757, %v1770
        %v1778 = vmul.f32 %v1758, %v1770
        %v1779 = vmul.f32 %v1759, %v1770
        %v1780 = vmul.f32 %v1760, %v1770
        %v1781 = vmul.f32 %v1761, %v1770
        %v1782 = vmul.f32 %v1762, %v1770
        %v1783 = vmul.f32 %v1763, %v1770
        %v1784 = vmul.f32 %v1764, %v1770
        %v1785 = vmul.f32 %v1765, %v1770
        %v1786 = vmul.f32 %v1766, %v1770
        %v1787 = vadd.f32 %v1733, %v1771
        %v1788 = vadd.f32 %v1734, %v1772
        %v1789 = vadd.f32 %v1735, %v1773
        %v1790 = vadd.f32 %v1736, %v1774
        %v1791 = vadd.f32 %v1737, %v1775
        %v1792 = vadd.f32 %v1738, %v1776
        %v1793 = vadd.f32 %v1739, %v1777
        %v1794 = vadd.f32 %v1740, %v1778
        %v1795 = vadd.f32 %v1741, %v1779
        %v1796 = vadd.f32 %v1742, %v1780
        %v1797 = vadd.f32 %v1743, %v1781
        %v1798 = vadd.f32 %v1744, %v1782
        %v1799 = vadd.f32 %v1745, %v1783
        %v1800 = vadd.f32 %v1746, %v1784
        %v1801 = vadd.f32 %v1747, %v1785
        %v1802 = vadd.f32 %v1748, %v1786
        %v1803 = vld [vmem:[%s1750 + $0x1] sm:$0xff]
        %v1804 = vld [vmem:[%s1750 + $0x9] sm:$0xff]
        %v1805 = vld [vmem:[%s1750 + $0x19] sm:$0xff]
        %v1806 = vld [vmem:[%s1750 + $0x21] sm:$0xff]
        %v1807 = vld [vmem:[%s1750 + $0x31] sm:$0xff]
        %v1808 = vld [vmem:[%s1750 + $0x39] sm:$0xff]
        %v1809 = vld [vmem:[%s1750 + $0x49] sm:$0xff]
        %v1810 = vld [vmem:[%s1750 + $0x51] sm:$0xff]
        %v1811 = vld [vmem:[%s1750 + $0x61] sm:$0xff]
        %v1812 = vld [vmem:[%s1750 + $0x69] sm:$0xff]
        %v1813 = vld [vmem:[%s1750 + $0x79] sm:$0xff]
        %v1814 = vld [vmem:[%s1750 + $0x81] sm:$0xff]
        %v1815 = vld [vmem:[%s1750 + $0x91] sm:$0xff]
        %v1816 = vld [vmem:[%s1750 + $0x99] sm:$0xff]
        %v1817 = vld [vmem:[%s1750 + $0xa9] sm:$0xff]
        %v1818 = vld [vmem:[%s1750 + $0xb1] sm:$0xff]
        %v1819 = vlaneseq
        %v1820 = vshrl.u32 %v1819, 7
        %v1821 = vsub.s32 0, %v1820
        %v1822 = vrot.slane %v280, %v1821
        %v1823 = vmul.f32 %v1803, %v1822
        %v1824 = vmul.f32 %v1804, %v1822
        %v1825 = vmul.f32 %v1805, %v1822
        %v1826 = vmul.f32 %v1806, %v1822
        %v1827 = vmul.f32 %v1807, %v1822
        %v1828 = vmul.f32 %v1808, %v1822
        %v1829 = vmul.f32 %v1809, %v1822
        %v1830 = vmul.f32 %v1810, %v1822
        %v1831 = vmul.f32 %v1811, %v1822
        %v1832 = vmul.f32 %v1812, %v1822
        %v1833 = vmul.f32 %v1813, %v1822
        %v1834 = vmul.f32 %v1814, %v1822
        %v1835 = vmul.f32 %v1815, %v1822
        %v1836 = vmul.f32 %v1816, %v1822
        %v1837 = vmul.f32 %v1817, %v1822
        %v1838 = vmul.f32 %v1818, %v1822
        %v1839 = vadd.f32 %v1787, %v1823
        %v1840 = vadd.f32 %v1788, %v1824
        %v1841 = vadd.f32 %v1789, %v1825
        %v1842 = vadd.f32 %v1790, %v1826
        %v1843 = vadd.f32 %v1791, %v1827
        %v1844 = vadd.f32 %v1792, %v1828
        %v1845 = vadd.f32 %v1793, %v1829
        %v1846 = vadd.f32 %v1794, %v1830
        %v1847 = vadd.f32 %v1795, %v1831
        %v1848 = vadd.f32 %v1796, %v1832
        %v1849 = vadd.f32 %v1797, %v1833
        %v1850 = vadd.f32 %v1798, %v1834
        %v1851 = vadd.f32 %v1799, %v1835
        %v1852 = vadd.f32 %v1800, %v1836
        %v1853 = vadd.f32 %v1801, %v1837
        %v1854 = vadd.f32 %v1802, %v1838
        %v1855 = vld [vmem:[%s1750 + $0x2] sm:$0xff]
        %v1856 = vld [vmem:[%s1750 + $0xa] sm:$0xff]
        %v1857 = vld [vmem:[%s1750 + $0x1a] sm:$0xff]
        %v1858 = vld [vmem:[%s1750 + $0x22] sm:$0xff]
        %v1859 = vld [vmem:[%s1750 + $0x32] sm:$0xff]
        %v1860 = vld [vmem:[%s1750 + $0x3a] sm:$0xff]
        %v1861 = vld [vmem:[%s1750 + $0x4a] sm:$0xff]
        %v1862 = vld [vmem:[%s1750 + $0x52] sm:$0xff]
        %v1863 = vld [vmem:[%s1750 + $0x62] sm:$0xff]
        %v1864 = vld [vmem:[%s1750 + $0x6a] sm:$0xff]
        %v1865 = vld [vmem:[%s1750 + $0x7a] sm:$0xff]
        %v1866 = vld [vmem:[%s1750 + $0x82] sm:$0xff]
        %v1867 = vld [vmem:[%s1750 + $0x92] sm:$0xff]
        %v1868 = vld [vmem:[%s1750 + $0x9a] sm:$0xff]
        %v1869 = vld [vmem:[%s1750 + $0xaa] sm:$0xff]
        %v1870 = vld [vmem:[%s1750 + $0xb2] sm:$0xff]
        %v1871 = vlaneseq
        %v1872 = vshrl.u32 %v1871, 7
        %v1873 = vsub.s32 0, %v1872
        %v1874 = vrot.slane %v281, %v1873
        %v1875 = vmul.f32 %v1855, %v1874
        %v1876 = vmul.f32 %v1856, %v1874
        %v1877 = vmul.f32 %v1857, %v1874
        %v1878 = vmul.f32 %v1858, %v1874
        %v1879 = vmul.f32 %v1859, %v1874
        %v1880 = vmul.f32 %v1860, %v1874
        %v1881 = vmul.f32 %v1861, %v1874
        %v1882 = vmul.f32 %v1862, %v1874
        %v1883 = vmul.f32 %v1863, %v1874
        %v1884 = vmul.f32 %v1864, %v1874
        %v1885 = vmul.f32 %v1865, %v1874
        %v1886 = vmul.f32 %v1866, %v1874
        %v1887 = vmul.f32 %v1867, %v1874
        %v1888 = vmul.f32 %v1868, %v1874
        %v1889 = vmul.f32 %v1869, %v1874
        %v1890 = vmul.f32 %v1870, %v1874
        %v1891 = vadd.f32 %v1839, %v1875
        %v1892 = vadd.f32 %v1840, %v1876
        %v1893 = vadd.f32 %v1841, %v1877
        %v1894 = vadd.f32 %v1842, %v1878
        %v1895 = vadd.f32 %v1843, %v1879
        %v1896 = vadd.f32 %v1844, %v1880
        %v1897 = vadd.f32 %v1845, %v1881
        %v1898 = vadd.f32 %v1846, %v1882
        %v1899 = vadd.f32 %v1847, %v1883
        %v1900 = vadd.f32 %v1848, %v1884
        %v1901 = vadd.f32 %v1849, %v1885
        %v1902 = vadd.f32 %v1850, %v1886
        %v1903 = vadd.f32 %v1851, %v1887
        %v1904 = vadd.f32 %v1852, %v1888
        %v1905 = vadd.f32 %v1853, %v1889
        %v1906 = vadd.f32 %v1854, %v1890
        %v1907 = vld [vmem:[%s1750 + $0x3] sm:$0xff]
        %v1908 = vld [vmem:[%s1750 + $0xb] sm:$0xff]
        %v1909 = vld [vmem:[%s1750 + $0x1b] sm:$0xff]
        %v1910 = vld [vmem:[%s1750 + $0x23] sm:$0xff]
        %v1911 = vld [vmem:[%s1750 + $0x33] sm:$0xff]
        %v1912 = vld [vmem:[%s1750 + $0x3b] sm:$0xff]
        %v1913 = vld [vmem:[%s1750 + $0x4b] sm:$0xff]
        %v1914 = vld [vmem:[%s1750 + $0x53] sm:$0xff]
        %v1915 = vld [vmem:[%s1750 + $0x63] sm:$0xff]
        %v1916 = vld [vmem:[%s1750 + $0x6b] sm:$0xff]
        %v1917 = vld [vmem:[%s1750 + $0x7b] sm:$0xff]
        %v1918 = vld [vmem:[%s1750 + $0x83] sm:$0xff]
        %v1919 = vld [vmem:[%s1750 + $0x93] sm:$0xff]
        %v1920 = vld [vmem:[%s1750 + $0x9b] sm:$0xff]
        %v1921 = vld [vmem:[%s1750 + $0xab] sm:$0xff]
        %v1922 = vld [vmem:[%s1750 + $0xb3] sm:$0xff]
        %v1923 = vlaneseq
        %v1924 = vshrl.u32 %v1923, 7
        %v1925 = vsub.s32 0, %v1924
        %v1926 = vrot.slane %v282, %v1925
        %v1927 = vmul.f32 %v1907, %v1926
        %v1928 = vmul.f32 %v1908, %v1926
        %v1929 = vmul.f32 %v1909, %v1926
        %v1930 = vmul.f32 %v1910, %v1926
        %v1931 = vmul.f32 %v1911, %v1926
        %v1932 = vmul.f32 %v1912, %v1926
        %v1933 = vmul.f32 %v1913, %v1926
        %v1934 = vmul.f32 %v1914, %v1926
        %v1935 = vmul.f32 %v1915, %v1926
        %v1936 = vmul.f32 %v1916, %v1926
        %v1937 = vmul.f32 %v1917, %v1926
        %v1938 = vmul.f32 %v1918, %v1926
        %v1939 = vmul.f32 %v1919, %v1926
        %v1940 = vmul.f32 %v1920, %v1926
        %v1941 = vmul.f32 %v1921, %v1926
        %v1942 = vmul.f32 %v1922, %v1926
        %v1943 = vadd.f32 %v1891, %v1927
        %v1944 = vadd.f32 %v1892, %v1928
        %v1945 = vadd.f32 %v1893, %v1929
        %v1946 = vadd.f32 %v1894, %v1930
        %v1947 = vadd.f32 %v1895, %v1931
        %v1948 = vadd.f32 %v1896, %v1932
        %v1949 = vadd.f32 %v1897, %v1933
        %v1950 = vadd.f32 %v1898, %v1934
        %v1951 = vadd.f32 %v1899, %v1935
        %v1952 = vadd.f32 %v1900, %v1936
        %v1953 = vadd.f32 %v1901, %v1937
        %v1954 = vadd.f32 %v1902, %v1938
        %v1955 = vadd.f32 %v1903, %v1939
        %v1956 = vadd.f32 %v1904, %v1940
        %v1957 = vadd.f32 %v1905, %v1941
        %v1958 = vadd.f32 %v1906, %v1942
        %v1959 = vld [vmem:[%s1750 + $0x4] sm:$0xff]
        %v1960 = vld [vmem:[%s1750 + $0xc] sm:$0xff]
        %v1961 = vld [vmem:[%s1750 + $0x1c] sm:$0xff]
        %v1962 = vld [vmem:[%s1750 + $0x24] sm:$0xff]
        %v1963 = vld [vmem:[%s1750 + $0x34] sm:$0xff]
        %v1964 = vld [vmem:[%s1750 + $0x3c] sm:$0xff]
        %v1965 = vld [vmem:[%s1750 + $0x4c] sm:$0xff]
        %v1966 = vld [vmem:[%s1750 + $0x54] sm:$0xff]
        %v1967 = vld [vmem:[%s1750 + $0x64] sm:$0xff]
        %v1968 = vld [vmem:[%s1750 + $0x6c] sm:$0xff]
        %v1969 = vld [vmem:[%s1750 + $0x7c] sm:$0xff]
        %v1970 = vld [vmem:[%s1750 + $0x84] sm:$0xff]
        %v1971 = vld [vmem:[%s1750 + $0x94] sm:$0xff]
        %v1972 = vld [vmem:[%s1750 + $0x9c] sm:$0xff]
        %v1973 = vld [vmem:[%s1750 + $0xac] sm:$0xff]
        %v1974 = vld [vmem:[%s1750 + $0xb4] sm:$0xff]
        %v1975 = vlaneseq
        %v1976 = vshrl.u32 %v1975, 7
        %v1977 = vsub.s32 0, %v1976
        %v1978 = vrot.slane %v283, %v1977
        %v1979 = vmul.f32 %v1959, %v1978
        %v1980 = vmul.f32 %v1960, %v1978
        %v1981 = vmul.f32 %v1961, %v1978
        %v1982 = vmul.f32 %v1962, %v1978
        %v1983 = vmul.f32 %v1963, %v1978
        %v1984 = vmul.f32 %v1964, %v1978
        %v1985 = vmul.f32 %v1965, %v1978
        %v1986 = vmul.f32 %v1966, %v1978
        %v1987 = vmul.f32 %v1967, %v1978
        %v1988 = vmul.f32 %v1968, %v1978
        %v1989 = vmul.f32 %v1969, %v1978
        %v1990 = vmul.f32 %v1970, %v1978
        %v1991 = vmul.f32 %v1971, %v1978
        %v1992 = vmul.f32 %v1972, %v1978
        %v1993 = vmul.f32 %v1973, %v1978
        %v1994 = vmul.f32 %v1974, %v1978
        %v1995 = vadd.f32 %v1943, %v1979
        %v1996 = vadd.f32 %v1944, %v1980
        %v1997 = vadd.f32 %v1945, %v1981
        %v1998 = vadd.f32 %v1946, %v1982
        %v1999 = vadd.f32 %v1947, %v1983
        %v2000 = vadd.f32 %v1948, %v1984
        %v2001 = vadd.f32 %v1949, %v1985
        %v2002 = vadd.f32 %v1950, %v1986
        %v2003 = vadd.f32 %v1951, %v1987
        %v2004 = vadd.f32 %v1952, %v1988
        %v2005 = vadd.f32 %v1953, %v1989
        %v2006 = vadd.f32 %v1954, %v1990
        %v2007 = vadd.f32 %v1955, %v1991
        %v2008 = vadd.f32 %v1956, %v1992
        %v2009 = vadd.f32 %v1957, %v1993
        %v2010 = vadd.f32 %v1958, %v1994
        %v2011 = vld [vmem:[%s1750 + $0x5] sm:$0xff]
        %v2012 = vld [vmem:[%s1750 + $0xd] sm:$0xff]
        %v2013 = vld [vmem:[%s1750 + $0x1d] sm:$0xff]
        %v2014 = vld [vmem:[%s1750 + $0x25] sm:$0xff]
        %v2015 = vld [vmem:[%s1750 + $0x35] sm:$0xff]
        %v2016 = vld [vmem:[%s1750 + $0x3d] sm:$0xff]
        %v2017 = vld [vmem:[%s1750 + $0x4d] sm:$0xff]
        %v2018 = vld [vmem:[%s1750 + $0x55] sm:$0xff]
        %v2019 = vld [vmem:[%s1750 + $0x65] sm:$0xff]
        %v2020 = vld [vmem:[%s1750 + $0x6d] sm:$0xff]
        %v2021 = vld [vmem:[%s1750 + $0x7d] sm:$0xff]
        %v2022 = vld [vmem:[%s1750 + $0x85] sm:$0xff]
        %v2023 = vld [vmem:[%s1750 + $0x95] sm:$0xff]
        %v2024 = vld [vmem:[%s1750 + $0x9d] sm:$0xff]
        %v2025 = vld [vmem:[%s1750 + $0xad] sm:$0xff]
        %v2026 = vld [vmem:[%s1750 + $0xb5] sm:$0xff]
        %v2027 = vlaneseq
        %v2028 = vshrl.u32 %v2027, 7
        %v2029 = vsub.s32 0, %v2028
        %v2030 = vrot.slane %v284, %v2029
        %v2031 = vmul.f32 %v2011, %v2030
        %v2032 = vmul.f32 %v2012, %v2030
        %v2033 = vmul.f32 %v2013, %v2030
        %v2034 = vmul.f32 %v2014, %v2030
        %v2035 = vmul.f32 %v2015, %v2030
        %v2036 = vmul.f32 %v2016, %v2030
        %v2037 = vmul.f32 %v2017, %v2030
        %v2038 = vmul.f32 %v2018, %v2030
        %v2039 = vmul.f32 %v2019, %v2030
        %v2040 = vmul.f32 %v2020, %v2030
        %v2041 = vmul.f32 %v2021, %v2030
        %v2042 = vmul.f32 %v2022, %v2030
        %v2043 = vmul.f32 %v2023, %v2030
        %v2044 = vmul.f32 %v2024, %v2030
        %v2045 = vmul.f32 %v2025, %v2030
        %v2046 = vmul.f32 %v2026, %v2030
        %v2047 = vadd.f32 %v1995, %v2031
        %v2048 = vadd.f32 %v1996, %v2032
        %v2049 = vadd.f32 %v1997, %v2033
        %v2050 = vadd.f32 %v1998, %v2034
        %v2051 = vadd.f32 %v1999, %v2035
        %v2052 = vadd.f32 %v2000, %v2036
        %v2053 = vadd.f32 %v2001, %v2037
        %v2054 = vadd.f32 %v2002, %v2038
        %v2055 = vadd.f32 %v2003, %v2039
        %v2056 = vadd.f32 %v2004, %v2040
        %v2057 = vadd.f32 %v2005, %v2041
        %v2058 = vadd.f32 %v2006, %v2042
        %v2059 = vadd.f32 %v2007, %v2043
        %v2060 = vadd.f32 %v2008, %v2044
        %v2061 = vadd.f32 %v2009, %v2045
        %v2062 = vadd.f32 %v2010, %v2046
        %v2063 = vld [vmem:[%s1750 + $0x6] sm:$0xff]
        %v2064 = vld [vmem:[%s1750 + $0xe] sm:$0xff]
        %v2065 = vld [vmem:[%s1750 + $0x1e] sm:$0xff]
        %v2066 = vld [vmem:[%s1750 + $0x26] sm:$0xff]
        %v2067 = vld [vmem:[%s1750 + $0x36] sm:$0xff]
        %v2068 = vld [vmem:[%s1750 + $0x3e] sm:$0xff]
        %v2069 = vld [vmem:[%s1750 + $0x4e] sm:$0xff]
        %v2070 = vld [vmem:[%s1750 + $0x56] sm:$0xff]
        %v2071 = vld [vmem:[%s1750 + $0x66] sm:$0xff]
        %v2072 = vld [vmem:[%s1750 + $0x6e] sm:$0xff]
        %v2073 = vld [vmem:[%s1750 + $0x7e] sm:$0xff]
        %v2074 = vld [vmem:[%s1750 + $0x86] sm:$0xff]
        %v2075 = vld [vmem:[%s1750 + $0x96] sm:$0xff]
        %v2076 = vld [vmem:[%s1750 + $0x9e] sm:$0xff]
        %v2077 = vld [vmem:[%s1750 + $0xae] sm:$0xff]
        %v2078 = vld [vmem:[%s1750 + $0xb6] sm:$0xff]
        %v2079 = vlaneseq
        %v2080 = vshrl.u32 %v2079, 7
        %v2081 = vsub.s32 0, %v2080
        %v2082 = vrot.slane %v285, %v2081
        %v2083 = vmul.f32 %v2063, %v2082
        %v2084 = vmul.f32 %v2064, %v2082
        %v2085 = vmul.f32 %v2065, %v2082
        %v2086 = vmul.f32 %v2066, %v2082
        %v2087 = vmul.f32 %v2067, %v2082
        %v2088 = vmul.f32 %v2068, %v2082
        %v2089 = vmul.f32 %v2069, %v2082
        %v2090 = vmul.f32 %v2070, %v2082
        %v2091 = vmul.f32 %v2071, %v2082
        %v2092 = vmul.f32 %v2072, %v2082
        %v2093 = vmul.f32 %v2073, %v2082
        %v2094 = vmul.f32 %v2074, %v2082
        %v2095 = vmul.f32 %v2075, %v2082
        %v2096 = vmul.f32 %v2076, %v2082
        %v2097 = vmul.f32 %v2077, %v2082
        %v2098 = vmul.f32 %v2078, %v2082
        %v2099 = vadd.f32 %v2047, %v2083
        %v2100 = vadd.f32 %v2048, %v2084
        %v2101 = vadd.f32 %v2049, %v2085
        %v2102 = vadd.f32 %v2050, %v2086
        %v2103 = vadd.f32 %v2051, %v2087
        %v2104 = vadd.f32 %v2052, %v2088
        %v2105 = vadd.f32 %v2053, %v2089
        %v2106 = vadd.f32 %v2054, %v2090
        %v2107 = vadd.f32 %v2055, %v2091
        %v2108 = vadd.f32 %v2056, %v2092
        %v2109 = vadd.f32 %v2057, %v2093
        %v2110 = vadd.f32 %v2058, %v2094
        %v2111 = vadd.f32 %v2059, %v2095
        %v2112 = vadd.f32 %v2060, %v2096
        %v2113 = vadd.f32 %v2061, %v2097
        %v2114 = vadd.f32 %v2062, %v2098
        %s2115 = sadd.s32 120, %s301
        %s2116 = scalar_lea.vmem [#allocation2], %s2115
        %v2117 = vld [vmem:[%s2116] sm:$0xff]
        %v2118 = vld [vmem:[%s2116 + $0x8] sm:$0xff]
        %v2119 = vld [vmem:[%s2116 + $0x18] sm:$0xff]
        %v2120 = vld [vmem:[%s2116 + $0x20] sm:$0xff]
        %v2121 = vld [vmem:[%s2116 + $0x30] sm:$0xff]
        %v2122 = vld [vmem:[%s2116 + $0x38] sm:$0xff]
        %v2123 = vld [vmem:[%s2116 + $0x48] sm:$0xff]
        %v2124 = vld [vmem:[%s2116 + $0x50] sm:$0xff]
        %v2125 = vld [vmem:[%s2116 + $0x60] sm:$0xff]
        %v2126 = vld [vmem:[%s2116 + $0x68] sm:$0xff]
        %v2127 = vld [vmem:[%s2116 + $0x78] sm:$0xff]
        %v2128 = vld [vmem:[%s2116 + $0x80] sm:$0xff]
        %v2129 = vld [vmem:[%s2116 + $0x90] sm:$0xff]
        %v2130 = vld [vmem:[%s2116 + $0x98] sm:$0xff]
        %v2131 = vld [vmem:[%s2116 + $0xa8] sm:$0xff]
        %v2132 = vld [vmem:[%s2116 + $0xb0] sm:$0xff]
        %v2133 = vlaneseq
        %v2134 = vshrl.u32 %v2133, 7
        %v2135 = vsub.s32 0, %v2134
        %v2136 = vrot.slane %v286, %v2135
        %v2137 = vmul.f32 %v2117, %v2136
        %v2138 = vmul.f32 %v2118, %v2136
        %v2139 = vmul.f32 %v2119, %v2136
        %v2140 = vmul.f32 %v2120, %v2136
        %v2141 = vmul.f32 %v2121, %v2136
        %v2142 = vmul.f32 %v2122, %v2136
        %v2143 = vmul.f32 %v2123, %v2136
        %v2144 = vmul.f32 %v2124, %v2136
        %v2145 = vmul.f32 %v2125, %v2136
        %v2146 = vmul.f32 %v2126, %v2136
        %v2147 = vmul.f32 %v2127, %v2136
        %v2148 = vmul.f32 %v2128, %v2136
        %v2149 = vmul.f32 %v2129, %v2136
        %v2150 = vmul.f32 %v2130, %v2136
        %v2151 = vmul.f32 %v2131, %v2136
        %v2152 = vmul.f32 %v2132, %v2136
        %v2153 = vadd.f32 %v2099, %v2137
        %v2154 = vadd.f32 %v2100, %v2138
        %v2155 = vadd.f32 %v2101, %v2139
        %v2156 = vadd.f32 %v2102, %v2140
        %v2157 = vadd.f32 %v2103, %v2141
        %v2158 = vadd.f32 %v2104, %v2142
        %v2159 = vadd.f32 %v2105, %v2143
        %v2160 = vadd.f32 %v2106, %v2144
        %v2161 = vadd.f32 %v2107, %v2145
        %v2162 = vadd.f32 %v2108, %v2146
        %v2163 = vadd.f32 %v2109, %v2147
        %v2164 = vadd.f32 %v2110, %v2148
        %v2165 = vadd.f32 %v2111, %v2149
        %v2166 = vadd.f32 %v2112, %v2150
        %v2167 = vadd.f32 %v2113, %v2151
        %v2168 = vadd.f32 %v2114, %v2152
        %v2169 = vld [vmem:[%s2116 + $0x1] sm:$0xff]
        %v2170 = vld [vmem:[%s2116 + $0x9] sm:$0xff]
        %v2171 = vld [vmem:[%s2116 + $0x19] sm:$0xff]
        %v2172 = vld [vmem:[%s2116 + $0x21] sm:$0xff]
        %v2173 = vld [vmem:[%s2116 + $0x31] sm:$0xff]
        %v2174 = vld [vmem:[%s2116 + $0x39] sm:$0xff]
        %v2175 = vld [vmem:[%s2116 + $0x49] sm:$0xff]
        %v2176 = vld [vmem:[%s2116 + $0x51] sm:$0xff]
        %v2177 = vld [vmem:[%s2116 + $0x61] sm:$0xff]
        %v2178 = vld [vmem:[%s2116 + $0x69] sm:$0xff]
        %v2179 = vld [vmem:[%s2116 + $0x79] sm:$0xff]
        %v2180 = vld [vmem:[%s2116 + $0x81] sm:$0xff]
        %v2181 = vld [vmem:[%s2116 + $0x91] sm:$0xff]
        %v2182 = vld [vmem:[%s2116 + $0x99] sm:$0xff]
        %v2183 = vld [vmem:[%s2116 + $0xa9] sm:$0xff]
        %v2184 = vld [vmem:[%s2116 + $0xb1] sm:$0xff]
        %v2185 = vlaneseq
        %v2186 = vshrl.u32 %v2185, 7
        %v2187 = vsub.s32 0, %v2186
        %v2188 = vrot.slane %v287, %v2187
        %v2189 = vmul.f32 %v2169, %v2188
        %v2190 = vmul.f32 %v2170, %v2188
        %v2191 = vmul.f32 %v2171, %v2188
        %v2192 = vmul.f32 %v2172, %v2188
        %v2193 = vmul.f32 %v2173, %v2188
        %v2194 = vmul.f32 %v2174, %v2188
        %v2195 = vmul.f32 %v2175, %v2188
        %v2196 = vmul.f32 %v2176, %v2188
        %v2197 = vmul.f32 %v2177, %v2188
        %v2198 = vmul.f32 %v2178, %v2188
        %v2199 = vmul.f32 %v2179, %v2188
        %v2200 = vmul.f32 %v2180, %v2188
        %v2201 = vmul.f32 %v2181, %v2188
        %v2202 = vmul.f32 %v2182, %v2188
        %v2203 = vmul.f32 %v2183, %v2188
        %v2204 = vmul.f32 %v2184, %v2188
        %v2205 = vadd.f32 %v2153, %v2189
        %v2206 = vadd.f32 %v2154, %v2190
        %v2207 = vadd.f32 %v2155, %v2191
        %v2208 = vadd.f32 %v2156, %v2192
        %v2209 = vadd.f32 %v2157, %v2193
        %v2210 = vadd.f32 %v2158, %v2194
        %v2211 = vadd.f32 %v2159, %v2195
        %v2212 = vadd.f32 %v2160, %v2196
        %v2213 = vadd.f32 %v2161, %v2197
        %v2214 = vadd.f32 %v2162, %v2198
        %v2215 = vadd.f32 %v2163, %v2199
        %v2216 = vadd.f32 %v2164, %v2200
        %v2217 = vadd.f32 %v2165, %v2201
        %v2218 = vadd.f32 %v2166, %v2202
        %v2219 = vadd.f32 %v2167, %v2203
        %v2220 = vadd.f32 %v2168, %v2204
        %v2221 = vld [vmem:[%s2116 + $0x2] sm:$0xff]
        %v2222 = vld [vmem:[%s2116 + $0xa] sm:$0xff]
        %v2223 = vld [vmem:[%s2116 + $0x1a] sm:$0xff]
        %v2224 = vld [vmem:[%s2116 + $0x22] sm:$0xff]
        %v2225 = vld [vmem:[%s2116 + $0x32] sm:$0xff]
        %v2226 = vld [vmem:[%s2116 + $0x3a] sm:$0xff]
        %v2227 = vld [vmem:[%s2116 + $0x4a] sm:$0xff]
        %v2228 = vld [vmem:[%s2116 + $0x52] sm:$0xff]
        %v2229 = vld [vmem:[%s2116 + $0x62] sm:$0xff]
        %v2230 = vld [vmem:[%s2116 + $0x6a] sm:$0xff]
        %v2231 = vld [vmem:[%s2116 + $0x7a] sm:$0xff]
        %v2232 = vld [vmem:[%s2116 + $0x82] sm:$0xff]
        %v2233 = vld [vmem:[%s2116 + $0x92] sm:$0xff]
        %v2234 = vld [vmem:[%s2116 + $0x9a] sm:$0xff]
        %v2235 = vld [vmem:[%s2116 + $0xaa] sm:$0xff]
        %v2236 = vld [vmem:[%s2116 + $0xb2] sm:$0xff]
        %v2237 = vlaneseq
        %v2238 = vshrl.u32 %v2237, 7
        %v2239 = vsub.s32 0, %v2238
        %v2240 = vrot.slane %v288, %v2239
        %v2241 = vmul.f32 %v2221, %v2240
        %v2242 = vmul.f32 %v2222, %v2240
        %v2243 = vmul.f32 %v2223, %v2240
        %v2244 = vmul.f32 %v2224, %v2240
        %v2245 = vmul.f32 %v2225, %v2240
        %v2246 = vmul.f32 %v2226, %v2240
        %v2247 = vmul.f32 %v2227, %v2240
        %v2248 = vmul.f32 %v2228, %v2240
        %v2249 = vmul.f32 %v2229, %v2240
        %v2250 = vmul.f32 %v2230, %v2240
        %v2251 = vmul.f32 %v2231, %v2240
        %v2252 = vmul.f32 %v2232, %v2240
        %v2253 = vmul.f32 %v2233, %v2240
        %v2254 = vmul.f32 %v2234, %v2240
        %v2255 = vmul.f32 %v2235, %v2240
        %v2256 = vmul.f32 %v2236, %v2240
        %v2257 = vadd.f32 %v2205, %v2241
        %v2258 = vadd.f32 %v2206, %v2242
        %v2259 = vadd.f32 %v2207, %v2243
        %v2260 = vadd.f32 %v2208, %v2244
        %v2261 = vadd.f32 %v2209, %v2245
        %v2262 = vadd.f32 %v2210, %v2246
        %v2263 = vadd.f32 %v2211, %v2247
        %v2264 = vadd.f32 %v2212, %v2248
        %v2265 = vadd.f32 %v2213, %v2249
        %v2266 = vadd.f32 %v2214, %v2250
        %v2267 = vadd.f32 %v2215, %v2251
        %v2268 = vadd.f32 %v2216, %v2252
        %v2269 = vadd.f32 %v2217, %v2253
        %v2270 = vadd.f32 %v2218, %v2254
        %v2271 = vadd.f32 %v2219, %v2255
        %v2272 = vadd.f32 %v2220, %v2256
        %v2273 = vld [vmem:[%s2116 + $0x3] sm:$0xff]
        %v2274 = vld [vmem:[%s2116 + $0xb] sm:$0xff]
        %v2275 = vld [vmem:[%s2116 + $0x1b] sm:$0xff]
        %v2276 = vld [vmem:[%s2116 + $0x23] sm:$0xff]
        %v2277 = vld [vmem:[%s2116 + $0x33] sm:$0xff]
        %v2278 = vld [vmem:[%s2116 + $0x3b] sm:$0xff]
        %v2279 = vld [vmem:[%s2116 + $0x4b] sm:$0xff]
        %v2280 = vld [vmem:[%s2116 + $0x53] sm:$0xff]
        %v2281 = vld [vmem:[%s2116 + $0x63] sm:$0xff]
        %v2282 = vld [vmem:[%s2116 + $0x6b] sm:$0xff]
        %v2283 = vld [vmem:[%s2116 + $0x7b] sm:$0xff]
        %v2284 = vld [vmem:[%s2116 + $0x83] sm:$0xff]
        %v2285 = vld [vmem:[%s2116 + $0x93] sm:$0xff]
        %v2286 = vld [vmem:[%s2116 + $0x9b] sm:$0xff]
        %v2287 = vld [vmem:[%s2116 + $0xab] sm:$0xff]
        %v2288 = vld [vmem:[%s2116 + $0xb3] sm:$0xff]
        %v2289 = vlaneseq
        %v2290 = vshrl.u32 %v2289, 7
        %v2291 = vsub.s32 0, %v2290
        %v2292 = vrot.slane %v289, %v2291
        %v2293 = vmul.f32 %v2273, %v2292
        %v2294 = vmul.f32 %v2274, %v2292
        %v2295 = vmul.f32 %v2275, %v2292
        %v2296 = vmul.f32 %v2276, %v2292
        %v2297 = vmul.f32 %v2277, %v2292
        %v2298 = vmul.f32 %v2278, %v2292
        %v2299 = vmul.f32 %v2279, %v2292
        %v2300 = vmul.f32 %v2280, %v2292
        %v2301 = vmul.f32 %v2281, %v2292
        %v2302 = vmul.f32 %v2282, %v2292
        %v2303 = vmul.f32 %v2283, %v2292
        %v2304 = vmul.f32 %v2284, %v2292
        %v2305 = vmul.f32 %v2285, %v2292
        %v2306 = vmul.f32 %v2286, %v2292
        %v2307 = vmul.f32 %v2287, %v2292
        %v2308 = vmul.f32 %v2288, %v2292
        %v2309 = vadd.f32 %v2257, %v2293
        %v2310 = vadd.f32 %v2258, %v2294
        %v2311 = vadd.f32 %v2259, %v2295
        %v2312 = vadd.f32 %v2260, %v2296
        %v2313 = vadd.f32 %v2261, %v2297
        %v2314 = vadd.f32 %v2262, %v2298
        %v2315 = vadd.f32 %v2263, %v2299
        %v2316 = vadd.f32 %v2264, %v2300
        %v2317 = vadd.f32 %v2265, %v2301
        %v2318 = vadd.f32 %v2266, %v2302
        %v2319 = vadd.f32 %v2267, %v2303
        %v2320 = vadd.f32 %v2268, %v2304
        %v2321 = vadd.f32 %v2269, %v2305
        %v2322 = vadd.f32 %v2270, %v2306
        %v2323 = vadd.f32 %v2271, %v2307
        %v2324 = vadd.f32 %v2272, %v2308
        %v2325 = vld [vmem:[%s2116 + $0x4] sm:$0xff]
        %v2326 = vld [vmem:[%s2116 + $0xc] sm:$0xff]
        %v2327 = vld [vmem:[%s2116 + $0x1c] sm:$0xff]
        %v2328 = vld [vmem:[%s2116 + $0x24] sm:$0xff]
        %v2329 = vld [vmem:[%s2116 + $0x34] sm:$0xff]
        %v2330 = vld [vmem:[%s2116 + $0x3c] sm:$0xff]
        %v2331 = vld [vmem:[%s2116 + $0x4c] sm:$0xff]
        %v2332 = vld [vmem:[%s2116 + $0x54] sm:$0xff]
        %v2333 = vld [vmem:[%s2116 + $0x64] sm:$0xff]
        %v2334 = vld [vmem:[%s2116 + $0x6c] sm:$0xff]
        %v2335 = vld [vmem:[%s2116 + $0x7c] sm:$0xff]
        %v2336 = vld [vmem:[%s2116 + $0x84] sm:$0xff]
        %v2337 = vld [vmem:[%s2116 + $0x94] sm:$0xff]
        %v2338 = vld [vmem:[%s2116 + $0x9c] sm:$0xff]
        %v2339 = vld [vmem:[%s2116 + $0xac] sm:$0xff]
        %v2340 = vld [vmem:[%s2116 + $0xb4] sm:$0xff]
        %v2341 = vlaneseq
        %v2342 = vshrl.u32 %v2341, 7
        %v2343 = vsub.s32 0, %v2342
        %v2344 = vrot.slane %v290, %v2343
        %v2345 = vmul.f32 %v2325, %v2344
        %v2346 = vmul.f32 %v2326, %v2344
        %v2347 = vmul.f32 %v2327, %v2344
        %v2348 = vmul.f32 %v2328, %v2344
        %v2349 = vmul.f32 %v2329, %v2344
        %v2350 = vmul.f32 %v2330, %v2344
        %v2351 = vmul.f32 %v2331, %v2344
        %v2352 = vmul.f32 %v2332, %v2344
        %v2353 = vmul.f32 %v2333, %v2344
        %v2354 = vmul.f32 %v2334, %v2344
        %v2355 = vmul.f32 %v2335, %v2344
        %v2356 = vmul.f32 %v2336, %v2344
        %v2357 = vmul.f32 %v2337, %v2344
        %v2358 = vmul.f32 %v2338, %v2344
        %v2359 = vmul.f32 %v2339, %v2344
        %v2360 = vmul.f32 %v2340, %v2344
        %v2361 = vadd.f32 %v2309, %v2345
        %v2362 = vadd.f32 %v2310, %v2346
        %v2363 = vadd.f32 %v2311, %v2347
        %v2364 = vadd.f32 %v2312, %v2348
        %v2365 = vadd.f32 %v2313, %v2349
        %v2366 = vadd.f32 %v2314, %v2350
        %v2367 = vadd.f32 %v2315, %v2351
        %v2368 = vadd.f32 %v2316, %v2352
        %v2369 = vadd.f32 %v2317, %v2353
        %v2370 = vadd.f32 %v2318, %v2354
        %v2371 = vadd.f32 %v2319, %v2355
        %v2372 = vadd.f32 %v2320, %v2356
        %v2373 = vadd.f32 %v2321, %v2357
        %v2374 = vadd.f32 %v2322, %v2358
        %v2375 = vadd.f32 %v2323, %v2359
        %v2376 = vadd.f32 %v2324, %v2360
        %v2377 = vld [vmem:[%s2116 + $0x5] sm:$0xff]
        %v2378 = vld [vmem:[%s2116 + $0xd] sm:$0xff]
        %v2379 = vld [vmem:[%s2116 + $0x1d] sm:$0xff]
        %v2380 = vld [vmem:[%s2116 + $0x25] sm:$0xff]
        %v2381 = vld [vmem:[%s2116 + $0x35] sm:$0xff]
        %v2382 = vld [vmem:[%s2116 + $0x3d] sm:$0xff]
        %v2383 = vld [vmem:[%s2116 + $0x4d] sm:$0xff]
        %v2384 = vld [vmem:[%s2116 + $0x55] sm:$0xff]
        %v2385 = vld [vmem:[%s2116 + $0x65] sm:$0xff]
        %v2386 = vld [vmem:[%s2116 + $0x6d] sm:$0xff]
        %v2387 = vld [vmem:[%s2116 + $0x7d] sm:$0xff]
        %v2388 = vld [vmem:[%s2116 + $0x85] sm:$0xff]
        %v2389 = vld [vmem:[%s2116 + $0x95] sm:$0xff]
        %v2390 = vld [vmem:[%s2116 + $0x9d] sm:$0xff]
        %v2391 = vld [vmem:[%s2116 + $0xad] sm:$0xff]
        %v2392 = vld [vmem:[%s2116 + $0xb5] sm:$0xff]
        %v2393 = vlaneseq
        %v2394 = vshrl.u32 %v2393, 7
        %v2395 = vsub.s32 0, %v2394
        %v2396 = vrot.slane %v291, %v2395
        %v2397 = vmul.f32 %v2377, %v2396
        %v2398 = vmul.f32 %v2378, %v2396
        %v2399 = vmul.f32 %v2379, %v2396
        %v2400 = vmul.f32 %v2380, %v2396
        %v2401 = vmul.f32 %v2381, %v2396
        %v2402 = vmul.f32 %v2382, %v2396
        %v2403 = vmul.f32 %v2383, %v2396
        %v2404 = vmul.f32 %v2384, %v2396
        %v2405 = vmul.f32 %v2385, %v2396
        %v2406 = vmul.f32 %v2386, %v2396
        %v2407 = vmul.f32 %v2387, %v2396
        %v2408 = vmul.f32 %v2388, %v2396
        %v2409 = vmul.f32 %v2389, %v2396
        %v2410 = vmul.f32 %v2390, %v2396
        %v2411 = vmul.f32 %v2391, %v2396
        %v2412 = vmul.f32 %v2392, %v2396
        %v2413 = vadd.f32 %v2361, %v2397
        %v2414 = vadd.f32 %v2362, %v2398
        %v2415 = vadd.f32 %v2363, %v2399
        %v2416 = vadd.f32 %v2364, %v2400
        %v2417 = vadd.f32 %v2365, %v2401
        %v2418 = vadd.f32 %v2366, %v2402
        %v2419 = vadd.f32 %v2367, %v2403
        %v2420 = vadd.f32 %v2368, %v2404
        %v2421 = vadd.f32 %v2369, %v2405
        %v2422 = vadd.f32 %v2370, %v2406
        %v2423 = vadd.f32 %v2371, %v2407
        %v2424 = vadd.f32 %v2372, %v2408
        %v2425 = vadd.f32 %v2373, %v2409
        %v2426 = vadd.f32 %v2374, %v2410
        %v2427 = vadd.f32 %v2375, %v2411
        %v2428 = vadd.f32 %v2376, %v2412
        %v2429 = vld [vmem:[%s2116 + $0x6] sm:$0xff]
        %v2430 = vld [vmem:[%s2116 + $0xe] sm:$0xff]
        %v2431 = vld [vmem:[%s2116 + $0x1e] sm:$0xff]
        %v2432 = vld [vmem:[%s2116 + $0x26] sm:$0xff]
        %v2433 = vld [vmem:[%s2116 + $0x36] sm:$0xff]
        %v2434 = vld [vmem:[%s2116 + $0x3e] sm:$0xff]
        %v2435 = vld [vmem:[%s2116 + $0x4e] sm:$0xff]
        %v2436 = vld [vmem:[%s2116 + $0x56] sm:$0xff]
        %v2437 = vld [vmem:[%s2116 + $0x66] sm:$0xff]
        %v2438 = vld [vmem:[%s2116 + $0x6e] sm:$0xff]
        %v2439 = vld [vmem:[%s2116 + $0x7e] sm:$0xff]
        %v2440 = vld [vmem:[%s2116 + $0x86] sm:$0xff]
        %v2441 = vld [vmem:[%s2116 + $0x96] sm:$0xff]
        %v2442 = vld [vmem:[%s2116 + $0x9e] sm:$0xff]
        %v2443 = vld [vmem:[%s2116 + $0xae] sm:$0xff]
        %v2444 = vld [vmem:[%s2116 + $0xb6] sm:$0xff]
        %v2445 = vlaneseq
        %v2446 = vshrl.u32 %v2445, 7
        %v2447 = vsub.s32 0, %v2446
        %v2448 = vrot.slane %v292, %v2447
        %v2449 = vmul.f32 %v2429, %v2448
        %v2450 = vmul.f32 %v2430, %v2448
        %v2451 = vmul.f32 %v2431, %v2448
        %v2452 = vmul.f32 %v2432, %v2448
        %v2453 = vmul.f32 %v2433, %v2448
        %v2454 = vmul.f32 %v2434, %v2448
        %v2455 = vmul.f32 %v2435, %v2448
        %v2456 = vmul.f32 %v2436, %v2448
        %v2457 = vmul.f32 %v2437, %v2448
        %v2458 = vmul.f32 %v2438, %v2448
        %v2459 = vmul.f32 %v2439, %v2448
        %v2460 = vmul.f32 %v2440, %v2448
        %v2461 = vmul.f32 %v2441, %v2448
        %v2462 = vmul.f32 %v2442, %v2448
        %v2463 = vmul.f32 %v2443, %v2448
        %v2464 = vmul.f32 %v2444, %v2448
        %v2465 = vadd.f32 %v2413, %v2449
        %v2466 = vadd.f32 %v2414, %v2450
        %v2467 = vadd.f32 %v2415, %v2451
        %v2468 = vadd.f32 %v2416, %v2452
        %v2469 = vadd.f32 %v2417, %v2453
        %v2470 = vadd.f32 %v2418, %v2454
        %v2471 = vadd.f32 %v2419, %v2455
        %v2472 = vadd.f32 %v2420, %v2456
        %v2473 = vadd.f32 %v2421, %v2457
        %v2474 = vadd.f32 %v2422, %v2458
        %v2475 = vadd.f32 %v2423, %v2459
        %v2476 = vadd.f32 %v2424, %v2460
        %v2477 = vadd.f32 %v2425, %v2461
        %v2478 = vadd.f32 %v2426, %v2462
        %v2479 = vadd.f32 %v2427, %v2463
        %v2480 = vadd.f32 %v2428, %v2464
        %s2481 = sadd.s32 144, %s301
        %s2482 = scalar_lea.vmem [#allocation2], %s2481
        %v2483 = vld [vmem:[%s2482] sm:$0xff]
        %v2484 = vld [vmem:[%s2482 + $0x8] sm:$0xff]
        %v2485 = vld [vmem:[%s2482 + $0x18] sm:$0xff]
        %v2486 = vld [vmem:[%s2482 + $0x20] sm:$0xff]
        %v2487 = vld [vmem:[%s2482 + $0x30] sm:$0xff]
        %v2488 = vld [vmem:[%s2482 + $0x38] sm:$0xff]
        %v2489 = vld [vmem:[%s2482 + $0x48] sm:$0xff]
        %v2490 = vld [vmem:[%s2482 + $0x50] sm:$0xff]
        %v2491 = vld [vmem:[%s2482 + $0x60] sm:$0xff]
        %v2492 = vld [vmem:[%s2482 + $0x68] sm:$0xff]
        %v2493 = vld [vmem:[%s2482 + $0x78] sm:$0xff]
        %v2494 = vld [vmem:[%s2482 + $0x80] sm:$0xff]
        %v2495 = vld [vmem:[%s2482 + $0x90] sm:$0xff]
        %v2496 = vld [vmem:[%s2482 + $0x98] sm:$0xff]
        %v2497 = vld [vmem:[%s2482 + $0xa8] sm:$0xff]
        %v2498 = vld [vmem:[%s2482 + $0xb0] sm:$0xff]
        %v2499 = vlaneseq
        %v2500 = vshrl.u32 %v2499, 7
        %v2501 = vsub.s32 0, %v2500
        %v2502 = vrot.slane %v293, %v2501
        %v2503 = vmul.f32 %v2483, %v2502
        %v2504 = vmul.f32 %v2484, %v2502
        %v2505 = vmul.f32 %v2485, %v2502
        %v2506 = vmul.f32 %v2486, %v2502
        %v2507 = vmul.f32 %v2487, %v2502
        %v2508 = vmul.f32 %v2488, %v2502
        %v2509 = vmul.f32 %v2489, %v2502
        %v2510 = vmul.f32 %v2490, %v2502
        %v2511 = vmul.f32 %v2491, %v2502
        %v2512 = vmul.f32 %v2492, %v2502
        %v2513 = vmul.f32 %v2493, %v2502
        %v2514 = vmul.f32 %v2494, %v2502
        %v2515 = vmul.f32 %v2495, %v2502
        %v2516 = vmul.f32 %v2496, %v2502
        %v2517 = vmul.f32 %v2497, %v2502
        %v2518 = vmul.f32 %v2498, %v2502
        %v2519 = vadd.f32 %v2465, %v2503
        %v2520 = vadd.f32 %v2466, %v2504
        %v2521 = vadd.f32 %v2467, %v2505
        %v2522 = vadd.f32 %v2468, %v2506
        %v2523 = vadd.f32 %v2469, %v2507
        %v2524 = vadd.f32 %v2470, %v2508
        %v2525 = vadd.f32 %v2471, %v2509
        %v2526 = vadd.f32 %v2472, %v2510
        %v2527 = vadd.f32 %v2473, %v2511
        %v2528 = vadd.f32 %v2474, %v2512
        %v2529 = vadd.f32 %v2475, %v2513
        %v2530 = vadd.f32 %v2476, %v2514
        %v2531 = vadd.f32 %v2477, %v2515
        %v2532 = vadd.f32 %v2478, %v2516
        %v2533 = vadd.f32 %v2479, %v2517
        %v2534 = vadd.f32 %v2480, %v2518
        %v2535 = vld [vmem:[%s2482 + $0x1] sm:$0xff]
        %v2536 = vld [vmem:[%s2482 + $0x9] sm:$0xff]
        %v2537 = vld [vmem:[%s2482 + $0x19] sm:$0xff]
        %v2538 = vld [vmem:[%s2482 + $0x21] sm:$0xff]
        %v2539 = vld [vmem:[%s2482 + $0x31] sm:$0xff]
        %v2540 = vld [vmem:[%s2482 + $0x39] sm:$0xff]
        %v2541 = vld [vmem:[%s2482 + $0x49] sm:$0xff]
        %v2542 = vld [vmem:[%s2482 + $0x51] sm:$0xff]
        %v2543 = vld [vmem:[%s2482 + $0x61] sm:$0xff]
        %v2544 = vld [vmem:[%s2482 + $0x69] sm:$0xff]
        %v2545 = vld [vmem:[%s2482 + $0x79] sm:$0xff]
        %v2546 = vld [vmem:[%s2482 + $0x81] sm:$0xff]
        %v2547 = vld [vmem:[%s2482 + $0x91] sm:$0xff]
        %v2548 = vld [vmem:[%s2482 + $0x99] sm:$0xff]
        %v2549 = vld [vmem:[%s2482 + $0xa9] sm:$0xff]
        %v2550 = vld [vmem:[%s2482 + $0xb1] sm:$0xff]
        %v2551 = vlaneseq
        %v2552 = vshrl.u32 %v2551, 7
        %v2553 = vsub.s32 0, %v2552
        %v2554 = vrot.slane %v294, %v2553
        %v2555 = vmul.f32 %v2535, %v2554
        %v2556 = vmul.f32 %v2536, %v2554
        %v2557 = vmul.f32 %v2537, %v2554
        %v2558 = vmul.f32 %v2538, %v2554
        %v2559 = vmul.f32 %v2539, %v2554
        %v2560 = vmul.f32 %v2540, %v2554
        %v2561 = vmul.f32 %v2541, %v2554
        %v2562 = vmul.f32 %v2542, %v2554
        %v2563 = vmul.f32 %v2543, %v2554
        %v2564 = vmul.f32 %v2544, %v2554
        %v2565 = vmul.f32 %v2545, %v2554
        %v2566 = vmul.f32 %v2546, %v2554
        %v2567 = vmul.f32 %v2547, %v2554
        %v2568 = vmul.f32 %v2548, %v2554
        %v2569 = vmul.f32 %v2549, %v2554
        %v2570 = vmul.f32 %v2550, %v2554
        %v2571 = vadd.f32 %v2519, %v2555
        %v2572 = vadd.f32 %v2520, %v2556
        %v2573 = vadd.f32 %v2521, %v2557
        %v2574 = vadd.f32 %v2522, %v2558
        %v2575 = vadd.f32 %v2523, %v2559
        %v2576 = vadd.f32 %v2524, %v2560
        %v2577 = vadd.f32 %v2525, %v2561
        %v2578 = vadd.f32 %v2526, %v2562
        %v2579 = vadd.f32 %v2527, %v2563
        %v2580 = vadd.f32 %v2528, %v2564
        %v2581 = vadd.f32 %v2529, %v2565
        %v2582 = vadd.f32 %v2530, %v2566
        %v2583 = vadd.f32 %v2531, %v2567
        %v2584 = vadd.f32 %v2532, %v2568
        %v2585 = vadd.f32 %v2533, %v2569
        %v2586 = vadd.f32 %v2534, %v2570
        %v2587 = vld [vmem:[%s2482 + $0x2] sm:$0xff]
        %v2588 = vld [vmem:[%s2482 + $0xa] sm:$0xff]
        %v2589 = vld [vmem:[%s2482 + $0x1a] sm:$0xff]
        %v2590 = vld [vmem:[%s2482 + $0x22] sm:$0xff]
        %v2591 = vld [vmem:[%s2482 + $0x32] sm:$0xff]
        %v2592 = vld [vmem:[%s2482 + $0x3a] sm:$0xff]
        %v2593 = vld [vmem:[%s2482 + $0x4a] sm:$0xff]
        %v2594 = vld [vmem:[%s2482 + $0x52] sm:$0xff]
        %v2595 = vld [vmem:[%s2482 + $0x62] sm:$0xff]
        %v2596 = vld [vmem:[%s2482 + $0x6a] sm:$0xff]
        %v2597 = vld [vmem:[%s2482 + $0x7a] sm:$0xff]
        %v2598 = vld [vmem:[%s2482 + $0x82] sm:$0xff]
        %v2599 = vld [vmem:[%s2482 + $0x92] sm:$0xff]
        %v2600 = vld [vmem:[%s2482 + $0x9a] sm:$0xff]
        %v2601 = vld [vmem:[%s2482 + $0xaa] sm:$0xff]
        %v2602 = vld [vmem:[%s2482 + $0xb2] sm:$0xff]
        %v2603 = vlaneseq
        %v2604 = vshrl.u32 %v2603, 7
        %v2605 = vsub.s32 0, %v2604
        %v2606 = vrot.slane %v295, %v2605
        %v2607 = vmul.f32 %v2587, %v2606
        %v2608 = vmul.f32 %v2588, %v2606
        %v2609 = vmul.f32 %v2589, %v2606
        %v2610 = vmul.f32 %v2590, %v2606
        %v2611 = vmul.f32 %v2591, %v2606
        %v2612 = vmul.f32 %v2592, %v2606
        %v2613 = vmul.f32 %v2593, %v2606
        %v2614 = vmul.f32 %v2594, %v2606
        %v2615 = vmul.f32 %v2595, %v2606
        %v2616 = vmul.f32 %v2596, %v2606
        %v2617 = vmul.f32 %v2597, %v2606
        %v2618 = vmul.f32 %v2598, %v2606
        %v2619 = vmul.f32 %v2599, %v2606
        %v2620 = vmul.f32 %v2600, %v2606
        %v2621 = vmul.f32 %v2601, %v2606
        %v2622 = vmul.f32 %v2602, %v2606
        %v2623 = vadd.f32 %v2571, %v2607
        %v2624 = vadd.f32 %v2572, %v2608
        %v2625 = vadd.f32 %v2573, %v2609
        %v2626 = vadd.f32 %v2574, %v2610
        %v2627 = vadd.f32 %v2575, %v2611
        %v2628 = vadd.f32 %v2576, %v2612
        %v2629 = vadd.f32 %v2577, %v2613
        %v2630 = vadd.f32 %v2578, %v2614
        %v2631 = vadd.f32 %v2579, %v2615
        %v2632 = vadd.f32 %v2580, %v2616
        %v2633 = vadd.f32 %v2581, %v2617
        %v2634 = vadd.f32 %v2582, %v2618
        %v2635 = vadd.f32 %v2583, %v2619
        %v2636 = vadd.f32 %v2584, %v2620
        %v2637 = vadd.f32 %v2585, %v2621
        %v2638 = vadd.f32 %v2586, %v2622
        %v2639 = vld [vmem:[%s2482 + $0x3] sm:$0xff]
        %v2640 = vld [vmem:[%s2482 + $0xb] sm:$0xff]
        %v2641 = vld [vmem:[%s2482 + $0x1b] sm:$0xff]
        %v2642 = vld [vmem:[%s2482 + $0x23] sm:$0xff]
        %v2643 = vld [vmem:[%s2482 + $0x33] sm:$0xff]
        %v2644 = vld [vmem:[%s2482 + $0x3b] sm:$0xff]
        %v2645 = vld [vmem:[%s2482 + $0x4b] sm:$0xff]
        %v2646 = vld [vmem:[%s2482 + $0x53] sm:$0xff]
        %v2647 = vld [vmem:[%s2482 + $0x63] sm:$0xff]
        %v2648 = vld [vmem:[%s2482 + $0x6b] sm:$0xff]
        %v2649 = vld [vmem:[%s2482 + $0x7b] sm:$0xff]
        %v2650 = vld [vmem:[%s2482 + $0x83] sm:$0xff]
        %v2651 = vld [vmem:[%s2482 + $0x93] sm:$0xff]
        %v2652 = vld [vmem:[%s2482 + $0x9b] sm:$0xff]
        %v2653 = vld [vmem:[%s2482 + $0xab] sm:$0xff]
        %v2654 = vld [vmem:[%s2482 + $0xb3] sm:$0xff]
        %v2655 = vlaneseq
        %v2656 = vshrl.u32 %v2655, 7
        %v2657 = vsub.s32 0, %v2656
        %v2658 = vrot.slane %v296, %v2657
        %v2659 = vmul.f32 %v2639, %v2658
        %v2660 = vmul.f32 %v2640, %v2658
        %v2661 = vmul.f32 %v2641, %v2658
        %v2662 = vmul.f32 %v2642, %v2658
        %v2663 = vmul.f32 %v2643, %v2658
        %v2664 = vmul.f32 %v2644, %v2658
        %v2665 = vmul.f32 %v2645, %v2658
        %v2666 = vmul.f32 %v2646, %v2658
        %v2667 = vmul.f32 %v2647, %v2658
        %v2668 = vmul.f32 %v2648, %v2658
        %v2669 = vmul.f32 %v2649, %v2658
        %v2670 = vmul.f32 %v2650, %v2658
        %v2671 = vmul.f32 %v2651, %v2658
        %v2672 = vmul.f32 %v2652, %v2658
        %v2673 = vmul.f32 %v2653, %v2658
        %v2674 = vmul.f32 %v2654, %v2658
        %v2675 = vadd.f32 %v2623, %v2659
        %v2676 = vadd.f32 %v2624, %v2660
        %v2677 = vadd.f32 %v2625, %v2661
        %v2678 = vadd.f32 %v2626, %v2662
        %v2679 = vadd.f32 %v2627, %v2663
        %v2680 = vadd.f32 %v2628, %v2664
        %v2681 = vadd.f32 %v2629, %v2665
        %v2682 = vadd.f32 %v2630, %v2666
        %v2683 = vadd.f32 %v2631, %v2667
        %v2684 = vadd.f32 %v2632, %v2668
        %v2685 = vadd.f32 %v2633, %v2669
        %v2686 = vadd.f32 %v2634, %v2670
        %v2687 = vadd.f32 %v2635, %v2671
        %v2688 = vadd.f32 %v2636, %v2672
        %v2689 = vadd.f32 %v2637, %v2673
        %v2690 = vadd.f32 %v2638, %v2674
        %v2691 = vld [vmem:[%s2482 + $0x4] sm:$0xff]
        %v2692 = vld [vmem:[%s2482 + $0xc] sm:$0xff]
        %v2693 = vld [vmem:[%s2482 + $0x1c] sm:$0xff]
        %v2694 = vld [vmem:[%s2482 + $0x24] sm:$0xff]
        %v2695 = vld [vmem:[%s2482 + $0x34] sm:$0xff]
        %v2696 = vld [vmem:[%s2482 + $0x3c] sm:$0xff]
        %v2697 = vld [vmem:[%s2482 + $0x4c] sm:$0xff]
        %v2698 = vld [vmem:[%s2482 + $0x54] sm:$0xff]
        %v2699 = vld [vmem:[%s2482 + $0x64] sm:$0xff]
        %v2700 = vld [vmem:[%s2482 + $0x6c] sm:$0xff]
        %v2701 = vld [vmem:[%s2482 + $0x7c] sm:$0xff]
        %v2702 = vld [vmem:[%s2482 + $0x84] sm:$0xff]
        %v2703 = vld [vmem:[%s2482 + $0x94] sm:$0xff]
        %v2704 = vld [vmem:[%s2482 + $0x9c] sm:$0xff]
        %v2705 = vld [vmem:[%s2482 + $0xac] sm:$0xff]
        %v2706 = vld [vmem:[%s2482 + $0xb4] sm:$0xff]
        %v2707 = vlaneseq
        %v2708 = vshrl.u32 %v2707, 7
        %v2709 = vsub.s32 0, %v2708
        %v2710 = vrot.slane %v297, %v2709
        %v2711 = vmul.f32 %v2691, %v2710
        %v2712 = vmul.f32 %v2692, %v2710
        %v2713 = vmul.f32 %v2693, %v2710
        %v2714 = vmul.f32 %v2694, %v2710
        %v2715 = vmul.f32 %v2695, %v2710
        %v2716 = vmul.f32 %v2696, %v2710
        %v2717 = vmul.f32 %v2697, %v2710
        %v2718 = vmul.f32 %v2698, %v2710
        %v2719 = vmul.f32 %v2699, %v2710
        %v2720 = vmul.f32 %v2700, %v2710
        %v2721 = vmul.f32 %v2701, %v2710
        %v2722 = vmul.f32 %v2702, %v2710
        %v2723 = vmul.f32 %v2703, %v2710
        %v2724 = vmul.f32 %v2704, %v2710
        %v2725 = vmul.f32 %v2705, %v2710
        %v2726 = vmul.f32 %v2706, %v2710
        %v2727 = vadd.f32 %v2675, %v2711
        %v2728 = vadd.f32 %v2676, %v2712
        %v2729 = vadd.f32 %v2677, %v2713
        %v2730 = vadd.f32 %v2678, %v2714
        %v2731 = vadd.f32 %v2679, %v2715
        %v2732 = vadd.f32 %v2680, %v2716
        %v2733 = vadd.f32 %v2681, %v2717
        %v2734 = vadd.f32 %v2682, %v2718
        %v2735 = vadd.f32 %v2683, %v2719
        %v2736 = vadd.f32 %v2684, %v2720
        %v2737 = vadd.f32 %v2685, %v2721
        %v2738 = vadd.f32 %v2686, %v2722
        %v2739 = vadd.f32 %v2687, %v2723
        %v2740 = vadd.f32 %v2688, %v2724
        %v2741 = vadd.f32 %v2689, %v2725
        %v2742 = vadd.f32 %v2690, %v2726
        %v2743 = vld [vmem:[%s2482 + $0x5] sm:$0xff]
        %v2744 = vld [vmem:[%s2482 + $0xd] sm:$0xff]
        %v2745 = vld [vmem:[%s2482 + $0x1d] sm:$0xff]
        %v2746 = vld [vmem:[%s2482 + $0x25] sm:$0xff]
        %v2747 = vld [vmem:[%s2482 + $0x35] sm:$0xff]
        %v2748 = vld [vmem:[%s2482 + $0x3d] sm:$0xff]
        %v2749 = vld [vmem:[%s2482 + $0x4d] sm:$0xff]
        %v2750 = vld [vmem:[%s2482 + $0x55] sm:$0xff]
        %v2751 = vld [vmem:[%s2482 + $0x65] sm:$0xff]
        %v2752 = vld [vmem:[%s2482 + $0x6d] sm:$0xff]
        %v2753 = vld [vmem:[%s2482 + $0x7d] sm:$0xff]
        %v2754 = vld [vmem:[%s2482 + $0x85] sm:$0xff]
        %v2755 = vld [vmem:[%s2482 + $0x95] sm:$0xff]
        %v2756 = vld [vmem:[%s2482 + $0x9d] sm:$0xff]
        %v2757 = vld [vmem:[%s2482 + $0xad] sm:$0xff]
        %v2758 = vld [vmem:[%s2482 + $0xb5] sm:$0xff]
        %v2759 = vlaneseq
        %v2760 = vshrl.u32 %v2759, 7
        %v2761 = vsub.s32 0, %v2760
        %v2762 = vrot.slane %v298, %v2761
        %v2763 = vmul.f32 %v2743, %v2762
        %v2764 = vmul.f32 %v2744, %v2762
        %v2765 = vmul.f32 %v2745, %v2762
        %v2766 = vmul.f32 %v2746, %v2762
        %v2767 = vmul.f32 %v2747, %v2762
        %v2768 = vmul.f32 %v2748, %v2762
        %v2769 = vmul.f32 %v2749, %v2762
        %v2770 = vmul.f32 %v2750, %v2762
        %v2771 = vmul.f32 %v2751, %v2762
        %v2772 = vmul.f32 %v2752, %v2762
        %v2773 = vmul.f32 %v2753, %v2762
        %v2774 = vmul.f32 %v2754, %v2762
        %v2775 = vmul.f32 %v2755, %v2762
        %v2776 = vmul.f32 %v2756, %v2762
        %v2777 = vmul.f32 %v2757, %v2762
        %v2778 = vmul.f32 %v2758, %v2762
        %v2779 = vadd.f32 %v2727, %v2763
        %v2780 = vadd.f32 %v2728, %v2764
        %v2781 = vadd.f32 %v2729, %v2765
        %v2782 = vadd.f32 %v2730, %v2766
        %v2783 = vadd.f32 %v2731, %v2767
        %v2784 = vadd.f32 %v2732, %v2768
        %v2785 = vadd.f32 %v2733, %v2769
        %v2786 = vadd.f32 %v2734, %v2770
        %v2787 = vadd.f32 %v2735, %v2771
        %v2788 = vadd.f32 %v2736, %v2772
        %v2789 = vadd.f32 %v2737, %v2773
        %v2790 = vadd.f32 %v2738, %v2774
        %v2791 = vadd.f32 %v2739, %v2775
        %v2792 = vadd.f32 %v2740, %v2776
        %v2793 = vadd.f32 %v2741, %v2777
        %v2794 = vadd.f32 %v2742, %v2778
        %v2795 = vld [vmem:[%s2482 + $0x6] sm:$0xff]
        %v2796 = vld [vmem:[%s2482 + $0xe] sm:$0xff]
        %v2797 = vld [vmem:[%s2482 + $0x1e] sm:$0xff]
        %v2798 = vld [vmem:[%s2482 + $0x26] sm:$0xff]
        %v2799 = vld [vmem:[%s2482 + $0x36] sm:$0xff]
        %v2800 = vld [vmem:[%s2482 + $0x3e] sm:$0xff]
        %v2801 = vld [vmem:[%s2482 + $0x4e] sm:$0xff]
        %v2802 = vld [vmem:[%s2482 + $0x56] sm:$0xff]
        %v2803 = vld [vmem:[%s2482 + $0x66] sm:$0xff]
        %v2804 = vld [vmem:[%s2482 + $0x6e] sm:$0xff]
        %v2805 = vld [vmem:[%s2482 + $0x7e] sm:$0xff]
        %v2806 = vld [vmem:[%s2482 + $0x86] sm:$0xff]
        %v2807 = vld [vmem:[%s2482 + $0x96] sm:$0xff]
        %v2808 = vld [vmem:[%s2482 + $0x9e] sm:$0xff]
        %v2809 = vld [vmem:[%s2482 + $0xae] sm:$0xff]
        %v2810 = vld [vmem:[%s2482 + $0xb6] sm:$0xff]
        %v2811 = vlaneseq
        %v2812 = vshrl.u32 %v2811, 7
        %v2813 = vsub.s32 0, %v2812
        %v2814 = vrot.slane %v299, %v2813
        %v2815 = vmul.f32 %v2795, %v2814
        %v2816 = vmul.f32 %v2796, %v2814
        %v2817 = vmul.f32 %v2797, %v2814
        %v2818 = vmul.f32 %v2798, %v2814
        %v2819 = vmul.f32 %v2799, %v2814
        %v2820 = vmul.f32 %v2800, %v2814
        %v2821 = vmul.f32 %v2801, %v2814
        %v2822 = vmul.f32 %v2802, %v2814
        %v2823 = vmul.f32 %v2803, %v2814
        %v2824 = vmul.f32 %v2804, %v2814
        %v2825 = vmul.f32 %v2805, %v2814
        %v2826 = vmul.f32 %v2806, %v2814
        %v2827 = vmul.f32 %v2807, %v2814
        %v2828 = vmul.f32 %v2808, %v2814
        %v2829 = vmul.f32 %v2809, %v2814
        %v2830 = vmul.f32 %v2810, %v2814
        %v2831 = vadd.f32 %v2779, %v2815
        %v2832 = vadd.f32 %v2780, %v2816
        %v2833 = vadd.f32 %v2781, %v2817
        %v2834 = vadd.f32 %v2782, %v2818
        %v2835 = vadd.f32 %v2783, %v2819
        %v2836 = vadd.f32 %v2784, %v2820
        %v2837 = vadd.f32 %v2785, %v2821
        %v2838 = vadd.f32 %v2786, %v2822
        %v2839 = vadd.f32 %v2787, %v2823
        %v2840 = vadd.f32 %v2788, %v2824
        %v2841 = vadd.f32 %v2789, %v2825
        %v2842 = vadd.f32 %v2790, %v2826
        %v2843 = vadd.f32 %v2791, %v2827
        %v2844 = vadd.f32 %v2792, %v2828
        %v2845 = vadd.f32 %v2793, %v2829
        %v2846 = vadd.f32 %v2794, %v2830
        %v2848 = vlaneseq
        %v2849 = vshrl.u32 %v2848, 7
        %v2850 = vsub.s32 0, %v2849
        %v2851 = vrot.slane %v300, %v2850
        %v2853 = vadd.f32 %v2831, %v2851
        %v2854 = vadd.f32 %v2832, %v2851
        %v2855 = vadd.f32 %v2833, %v2851
        %v2856 = vadd.f32 %v2834, %v2851
        %v2857 = vadd.f32 %v2835, %v2851
        %v2858 = vadd.f32 %v2836, %v2851
        %v2859 = vadd.f32 %v2837, %v2851
        %v2860 = vadd.f32 %v2838, %v2851
        %v2861 = vadd.f32 %v2839, %v2851
        %v2862 = vadd.f32 %v2840, %v2851
        %v2863 = vadd.f32 %v2841, %v2851
        %v2864 = vadd.f32 %v2842, %v2851
        %v2865 = vadd.f32 %v2843, %v2851
        %v2866 = vadd.f32 %v2844, %v2851
        %v2867 = vadd.f32 %v2845, %v2851
        %v2868 = vadd.f32 %v2846, %v2851
        %2869 = vst [vmem:[%s178] sm:$0xff] %v2853
        %2870 = vst [vmem:[%s178 + $0x8] sm:$0xff] %v2854
        %2871 = vst [vmem:[%s178 + $0x10] sm:$0xff] %v2855
        %2872 = vst [vmem:[%s178 + $0x18] sm:$0xff] %v2856
        %2873 = vst [vmem:[%s178 + $0x20] sm:$0xff] %v2857
        %2874 = vst [vmem:[%s178 + $0x28] sm:$0xff] %v2858
        %2875 = vst [vmem:[%s178 + $0x30] sm:$0xff] %v2859
        %2876 = vst [vmem:[%s178 + $0x38] sm:$0xff] %v2860
        %2877 = vst [vmem:[%s178 + $0x40] sm:$0xff] %v2861
        %2878 = vst [vmem:[%s178 + $0x48] sm:$0xff] %v2862
        %2879 = vst [vmem:[%s178 + $0x50] sm:$0xff] %v2863
        %2880 = vst [vmem:[%s178 + $0x58] sm:$0xff] %v2864
        %2881 = vst [vmem:[%s178 + $0x60] sm:$0xff] %v2865
        %2882 = vst [vmem:[%s178 + $0x68] sm:$0xff] %v2866
        %2883 = vst [vmem:[%s178 + $0x70] sm:$0xff] %v2867
        %2884 = vst [vmem:[%s178 + $0x78] sm:$0xff] %v2868
        %s2885 = sand.u32 %s101, 1
        %s2886 = scalar_lea.sflag [#allocation6], %s2885
        %s2887 = sand.u32 %s101, 1
        %s2888 = smul.addr %s2887, 128
        %s2889 = scalar_lea.vmem [#allocation7], %s2888
        // Predicated region
        $region49: #{tpu_custom_call.1} parent=27 // pred_check
          %p2890 = pneg %p111
        $region50: #{tpu_custom_call.1} parent=27 // pred_check_branch
          %2892 = sbr.rel (%p2890) target = $region52
        $region51: #{tpu_custom_call.1} parent=27 // pred_region
          %s2893 = smul.u32 8, %s25
          %s2895 = ssub.s32 2048, 2048
          %2896 = vsyncadd %s2886, %s2895
          %s2897 = smul.addr %s2893, 2
          %s2898 = sadd.s32 %s23, %s2897
          %s2899 = smul.addr %s24, 32
          %s2900 = sadd.s32 %s2898, %s2899
          %s2901 = smul.addr %s2900, 128
          %s2902 = scalar_lea.hbm %s3, %s2901
          %s2903 = sshll.u32 %s2889, 4
          %s2904 = int_to_ptr.vmem [resolvable:$true] %s2903
          %2909 = dma.vmem_to_hbm [thread:$0]  %s2904, 2048, %s2902, %s2886, 128, 128, 8
        $region52: #{tpu_custom_call.1} parent=27 // pred_fallthru
          _
      $region28: #{tpu_custom_call.1} parent=5 // pred_fallthru
        _
      %p2910 = scmp.le.s32.totalorder 2, %s13
      // Predicated region
      $region53: #{tpu_custom_call.1} parent=5 // pred_check
        %p2911 = pneg %p2910
      $region54: #{tpu_custom_call.1} parent=5 // pred_check_branch
        %2913 = sbr.rel (%p2911) target = $region56
      $region55: #{tpu_custom_call.1} parent=5 // pred_region
        %s2914 = ssub.s32 %s13, 2
        // Predicated region
        $region57: #{tpu_custom_call.1} parent=55 // pred_check
          %p2915 = pneg %p117
        $region58: #{tpu_custom_call.1} parent=55 // pred_check_branch
          %2917 = sbr.rel (%p2915) target = $region60
        $region59: #{tpu_custom_call.1} parent=55 // pred_region
          %s2918 = sand.u32 %s102, 1
          %s2919 = scalar_lea.sflag [#allocation6], %s2918
          %s2920 = sand.u32 %s102, 1
          %s2921 = smul.addr %s2920, 128
          %s2922 = scalar_lea.vmem [#allocation7], %s2921
          %2923 = dma.done %s2919, 2048
        $region60: #{tpu_custom_call.1} parent=55 // pred_fallthru
          _
      $region56: #{tpu_custom_call.1} parent=5 // pred_fallthru
        _
    $region6: #{tpu_custom_call.1} parent=1 // loop_footer
      %s17 = sadd.s32 1, %s13
    $region7: #{tpu_custom_call.1} parent=1 // loop_footer_branch
      %12 = sbr.rel target = $region3
    $region8: #{tpu_custom_call.1} parent=1 // loop_exit
      _
    %2924 = vsyncpa [#allocation5], 1
    %s2925 = scalar_lea.sflag [#allocation5], 1
    %2926 = vsyncpa %s2925, 1
    %2927 = vsyncpa [#allocation6], 1
    %s2928 = scalar_lea.sflag [#allocation6], 1
    %2929 = vsyncpa %s2928, 1
  %2930 = vsyncmov [#allocation3]
  %s2931 = vpop.sfrf %2930
  %p2932 = scmp.eq.s32.totalorder %s2931, 0
  %p2933 = pneg %p2932
  %2935 = shalt.err (%p2933)
  %s2936 = scalar_lea.sflag [#allocation3], 1
  %2937 = vsyncmov %s2936
  %s2938 = vpop.sfrf %2937
  %p2939 = scmp.eq.s32.totalorder %s2938, 0
  %p2940 = pneg %p2939
  %2942 = shalt.err (%p2940)

</llo_original>
